<compile_context>
chip_gen: v6e
topology: v6e:2x2x1
jax: 0.10.0
libtpu: 0.0.40
codegen_flags: <defaults>
</compile_context>

<pallas_src>
import jax
import jax.numpy as jnp
import numpy as np
from jax.experimental import pallas as pl
from jax.experimental.pallas import tpu as pltpu


def _round_up(x, m):
    return ((x + m - 1) // m) * m


def _pad_to(a, shape):
    return jnp.pad(a, [(0, s - d) for d, s in zip(a.shape, shape)])


# ------------------------------- fused kernel ------------------------------- #

def _build_encoder_kernel(cfg, T0, CBUF, PAD0):
    down_t = cfg["down_t"]
    stride_t = cfg["stride_t"]
    depth = cfg["depth"]
    dgr = cfg["dilation_growth_rate"]
    Kt, pad_t = 2 * stride_t, stride_t // 2
    dilations = [dgr ** j for j in range(depth)][::-1]      # reverse_dilation=True

    def kernel(x_ref, w0, b0, wd, bd, wr1, br1, wr2, br2, wo, bo,
               out_ref, buf_a, buf_b):
        bufs = (buf_a, buf_b)
        dirty = [0, 0]     # trace-time bookkeeping: live rows past PAD0 per buffer

        def store(dst, val):
            t = val.shape[0]
            bufs[dst][pl.ds(PAD0, t), :] = val
            if dirty[dst] > t:       # keep the zero halo invariant when T shrinks
                bufs[dst][pl.ds(PAD0 + t, dirty[dst] - t), :] = (
                    jnp.zeros((dirty[dst] - t, CBUF), jnp.float32))
            dirty[dst] = t

        def conv(src, t_in, K, stride, dilation, pad, wget, bias):
            # Sum of per-tap MXU matmuls (bf16 in, f32 accumulate).  Zero padding
            # comes from the halo kept around the data in the VMEM buffer; the
            # downsampling stride is a strided pl.ds read.
            t_out = (t_in + 2 * pad - dilation * (K - 1) - 1) // stride + 1
            acc = jnp.zeros((t_out, CBUF), jnp.float32) + bias
            for k in range(K):
                start = PAD0 - pad + k * dilation
                if stride == 1:
                    xk = bufs[src][pl.ds(start, t_out), :]
                else:
                    xk = bufs[src][pl.ds(start, t_out, stride=stride), :]
                acc = acc + jnp.dot(xk.astype(jnp.bfloat16), wget(k),
                                    preferred_element_type=jnp.float32)
            return acc, t_out

        # Scratch persists across grid steps -> reset, then stage this sample.
        buf_a[...] = jnp.zeros_like(buf_a)
        buf_b[...] = jnp.zeros_like(buf_b)
        buf_a[pl.ds(PAD0, T0), :] = x_ref[...]
        dirty[0] = T0

        cur, t = 0, T0

        # Conv1d(C_in, W, 3, 1, 1) + ReLU
        y, t = conv(cur, t, 3, 1, 1, 1, lambda k: w0[k], b0[...])
        store(1 - cur, jnp.maximum(y, 0.0))
        cur = 1 - cur

        r = 0
        for i in range(down_t):
            # Conv1d(W, W, 2*stride_t, stride_t, stride_t//2)
            y, t = conv(cur, t, Kt, stride_t, 1, pad_t,
                        lambda k, i=i: wd[i, k], bd[i])
            store(1 - cur, y)
            cur = 1 - cur
            # Resnet1D(W, depth, dgr) with reverse_dilation=True
            for d in dilations:
                # relu(x) computed once and staged in the spare buffer
                # (its halo stays zero, and relu(0) == 0 matches the reference).
                store(1 - cur, jnp.maximum(bufs[cur][pl.ds(PAD0, t), :], 0.0))
                h, _ = conv(1 - cur, t, 3, 1, d, d,
                            lambda k, r=r: wr1[r, k], br1[r])
                h = jnp.maximum(h, 0.0).astype(jnp.bfloat16)
                y = jnp.dot(h, wr2[r], preferred_element_type=jnp.float32) + br2[r]
                y = y + bufs[cur][pl.ds(PAD0, t), :]          # residual
                store(1 - cur, y)
                cur = 1 - cur
                r += 1

        # Conv1d(W, C_out, 3, 1, 1) -> straight to the lane-dense output block
        y, _ = conv(cur, t, 3, 1, 1, 1, lambda k: wo[k], bo[...])
        out_ref[...] = y.astype(out_ref.dtype)

    return kernel


# ------------------------- parameter init & packing ------------------------- #

def init_encoder_params(key, *, input_emb_width, output_emb_width, down_t,
                        stride_t, width, depth, dilation_growth_rate):
    keys = iter(jax.random.split(key, 256))

    def winit(shape, fan_in):
        return jax.random.normal(next(keys), shape, jnp.float32) / jnp.sqrt(float(fan_in))

    Kt = 2 * stride_t
    dilations = [dilation_growth_rate ** j for j in range(depth)][::-1]
    params = {
        "conv_in": {"w": winit((3, input_emb_width, width), 3 * input_emb_width),
                    "b": winit((width,), 3 * input_emb_width)},
        "down": [], "res": [], "res_dilations": [],
        "conv_out": {"w": winit((3, width, output_emb_width), 3 * width),
                     "b": winit((output_emb_width,), 3 * width)},
    }
    for _ in range(down_t):
        params["down"].append({"w": winit((Kt, width, width), Kt * width),
                               "b": winit((width,), Kt * width)})
        for d in dilations:
            params["res"].append({"w1": winit((3, width, width), 3 * width),
                                  "b1": winit((width,), 3 * width),
                                  "w2": winit((width, width), width),
                                  "b2": winit((width,), width)})
            params["res_dilations"].append(d)
    return params


def _pack_params(params, CBUF):
    bf16, f32 = jnp.bfloat16, jnp.float32
    ci, co = params["conv_in"], params["conv_out"]
    w0 = _pad_to(ci["w"], (3, CBUF, CBUF)).astype(bf16)
    b0 = _pad_to(ci["b"][None, :], (1, CBUF)).astype(f32)
    wd = jnp.stack([_pad_to(p["w"], (p["w"].shape[0], CBUF, CBUF))
                    for p in params["down"]]).astype(bf16)
    bd = jnp.stack([_pad_to(p["b"][None, :], (1, CBUF))
                    for p in params["down"]]).astype(f32)
    wr1 = jnp.stack([_pad_to(p["w1"], (3, CBUF, CBUF))
                     for p in params["res"]]).astype(bf16)
    br1 = jnp.stack([_pad_to(p["b1"][None, :], (1, CBUF))
                     for p in params["res"]]).astype(f32)
    wr2 = jnp.stack([_pad_to(p["w2"], (CBUF, CBUF))
                     for p in params["res"]]).astype(bf16)
    br2 = jnp.stack([_pad_to(p["b2"][None, :], (1, CBUF))
                     for p in params["res"]]).astype(f32)
    wo = _pad_to(co["w"], (3, CBUF, CBUF)).astype(bf16)
    bo = _pad_to(co["b"][None, :], (1, CBUF)).astype(f32)
    return (w0, b0, wd, bd, wr1, br1, wr2, br2, wo, bo)


# --------------------------------- forward ---------------------------------- #

def encoder_forward(x_nct, params, cfg):
    """x_nct: (N, C_in, T) float32 (PyTorch layout). Returns (N, C_out, T_out)."""
    N, C_in, T0 = x_nct.shape
    W, C_out = cfg["width"], cfg["output_emb_width"]
    down_t, stride_t = cfg["down_t"], cfg["stride_t"]
    depth, dgr = cfg["depth"], cfg["dilation_growth_rate"]
    Kt, pad_t = 2 * stride_t, stride_t // 2

    CBUF = _round_up(max(C_in, W, C_out), 128)             # lane-dense channels
    max_pad = max([1, pad_t] + [dgr ** j for j in range(depth)])
    PAD0 = _round_up(max_pad, 8)                           # aligned zero halo
    BUF_LEN = T0 + 2 * PAD0

    t = T0
    for _ in range(down_t):
        t = (t + 2 * pad_t - Kt) // stride_t + 1
    T_f = t

    packed = _pack_params(params, CBUF)
    kernel = _build_encoder_kernel(cfg, T0, CBUF, PAD0)

    x = jnp.transpose(x_nct, (0, 2, 1))                    # NCT -> NTC (once)
    x = _pad_to(x, (N, T0, CBUF)).astype(jnp.float32)

    weight_specs = [pl.BlockSpec(a.shape, lambda n, nd=a.ndim: (0,) * nd)
                    for a in packed]

    out = pl.pallas_call(
        kernel,
        out_shape=jax.ShapeDtypeStruct((N, T_f, CBUF), jnp.float32),
        grid=(N,),
        in_specs=[pl.BlockSpec((None, T0, CBUF), lambda n: (n, 0, 0))]
                 + weight_specs,
        out_specs=pl.BlockSpec((None, T_f, CBUF), lambda n: (n, 0, 0)),
        scratch_shapes=[pltpu.VMEM((BUF_LEN, CBUF), jnp.float32),
                        pltpu.VMEM((BUF_LEN, CBUF), jnp.float32)],
        compiler_params=pltpu.CompilerParams(
            dimension_semantics=("parallel",),             # megacore on v7x
            vmem_limit_bytes=64 * 1024 * 1024),
    )(x, *packed)

    return jnp.transpose(out[:, :, :C_out], (0, 2, 1))     # NTC -> NCT


# ----------------------------- pure-JAX reference ---------------------------- #

def _ref_conv1d(x, w, b, stride, dilation, pad):
    # Mirrors the kernel's bf16-in / f32-accumulate MXU math exactly.
    xb = x.astype(jnp.bfloat16)
    wb = jnp.transpose(w, (2, 1, 0)).astype(jnp.bfloat16)   # (C_out, C_in, K)
    y = jax.lax.conv_general_dilated(
        xb, wb, window_strides=(stride,), padding=[(pad, pad)],
        rhs_dilation=(dilation,), dimension_numbers=("NCH", "OIH", "NCH"),
        preferred_element_type=jnp.float32)
    return y + b[None, :, None]


def ref_forward(x, params, cfg):
    stride_t = cfg["stride_t"]
    Kt, pad_t = 2 * stride_t, stride_t // 2
    x = jax.nn.relu(_ref_conv1d(x, params["conv_in"]["w"],
                                params["conv_in"]["b"], 1, 1, 1))
    r = 0
    for i in range(cfg["down_t"]):
        pd = params["down"][i]
        x = _ref_conv1d(x, pd["w"], pd["b"], stride_t, 1, pad_t)
        for _ in range(cfg["depth"]):
            d = params["res_dilations"][r]
            pr = params["res"][r]
            h = jax.nn.relu(x)
            h = _ref_conv1d(h, pr["w1"], pr["b1"], 1, d, d)
            h = jax.nn.relu(h)
            h = _ref_conv1d(h, pr["w2"][None, :, :], pr["b2"], 1, 1, 0)
            x = x + h
            r += 1
    return _ref_conv1d(x, params["conv_out"]["w"], params["conv_out"]["b"], 1, 1, 1)


# ------------------------------------ main ----------------------------------- #

if __name__ == "__main__":
    key = jax.random.PRNGKey(0)
    k_x, k_p = jax.random.split(key)

    # small shapes consistent with the module's forward
    N, C_IN, T = 2, 4, 16
    cfg = dict(input_emb_width=C_IN, output_emb_width=32, down_t=2, stride_t=2,
               width=32, depth=3, dilation_growth_rate=3)

    x = jax.random.normal(k_x, (N, C_IN, T), jnp.float32)   # PyTorch NCT input
    params = init_encoder_params(k_p, **cfg)

    out = jax.block_until_ready(encoder_forward(x, params, cfg))
    ref = jax.block_until_ready(ref_forward(x, params, cfg))

    T_out = T // (cfg["stride_t"] ** cfg["down_t"])
    assert out.shape == (N, cfg["output_emb_width"], T_out), out.shape
    # Both paths use bf16 inputs with f32 accumulation; remaining differences are
    # only f32 accumulation order, far below this tolerance.
    np.testing.assert_allclose(np.asarray(out), np.asarray(ref), rtol=1e-2, atol=1e-2)

    print("KERNEL_OK")
</pallas_src>

<mosaic_0001>
module attributes {stable_mosaic.version = 11 : i64} {
  func.func @kernel(%arg0: i32, %arg1: memref<1x16x128xf32, #tpu.memory_space<vmem>>, %arg2: memref<3x128x128xbf16, #tpu.memory_space<vmem>>, %arg3: memref<1x128xf32, #tpu.memory_space<vmem>>, %arg4: memref<2x4x128x128xbf16, #tpu.memory_space<vmem>>, %arg5: memref<2x1x128xf32, #tpu.memory_space<vmem>>, %arg6: memref<6x3x128x128xbf16, #tpu.memory_space<vmem>>, %arg7: memref<6x1x128xf32, #tpu.memory_space<vmem>>, %arg8: memref<6x128x128xbf16, #tpu.memory_space<vmem>>, %arg9: memref<6x1x128xf32, #tpu.memory_space<vmem>>, %arg10: memref<3x128x128xbf16, #tpu.memory_space<vmem>>, %arg11: memref<1x128xf32, #tpu.memory_space<vmem>>, %arg12: memref<1x4x128xf32, #tpu.memory_space<vmem>>, %arg13: memref<48x128xf32, #tpu.memory_space<vmem>>, %arg14: memref<48x128xf32, #tpu.memory_space<vmem>>) attributes {dimension_semantics = [#tpu.dimension_semantics<parallel>], iteration_bounds = array<i64: 2>, scalar_prefetch = 0 : i64, scratch_operands = 2 : i64, tpu.core_type = #tpu.core_type<tc>, window_params = [{transform_indices = @transform_0, window_bounds = array<i64: 1, 16, 128>}, {pipeline_mode = #tpu.pipeline_mode<synchronous>, transform_indices = @transform_1, window_bounds = array<i64: 3, 128, 128>}, {pipeline_mode = #tpu.pipeline_mode<synchronous>, transform_indices = @transform_2, window_bounds = array<i64: 1, 128>}, {pipeline_mode = #tpu.pipeline_mode<synchronous>, transform_indices = @transform_3, window_bounds = array<i64: 2, 4, 128, 128>}, {pipeline_mode = #tpu.pipeline_mode<synchronous>, transform_indices = @transform_4, window_bounds = array<i64: 2, 1, 128>}, {pipeline_mode = #tpu.pipeline_mode<synchronous>, transform_indices = @transform_5, window_bounds = array<i64: 6, 3, 128, 128>}, {pipeline_mode = #tpu.pipeline_mode<synchronous>, transform_indices = @transform_6, window_bounds = array<i64: 6, 1, 128>}, {pipeline_mode = #tpu.pipeline_mode<synchronous>, transform_indices = @transform_7, window_bounds = array<i64: 6, 128, 128>}, {pipeline_mode = #tpu.pipeline_mode<synchronous>, transform_indices = @transform_8, window_bounds = array<i64: 6, 1, 128>}, {pipeline_mode = #tpu.pipeline_mode<synchronous>, transform_indices = @transform_9, window_bounds = array<i64: 3, 128, 128>}, {pipeline_mode = #tpu.pipeline_mode<synchronous>, transform_indices = @transform_10, window_bounds = array<i64: 1, 128>}, {transform_indices = @transform_11, window_bounds = array<i64: 1, 4, 128>}]} {
    %cst = arith.constant 0.000000e+00 : f32
    %0 = vector.broadcast %cst : f32 to vector<48x128xf32>
    %c0 = arith.constant 0 : index
    %c0_0 = arith.constant 0 : index
    %1 = vector.load %arg13[%c0, %c0_0] : memref<48x128xf32, #tpu.memory_space<vmem>>, vector<48x128xf32>
    tpu.vector_store %arg13[%c0, %c0_0], %0 {strides = array<i32>} : memref<48x128xf32, #tpu.memory_space<vmem>>, vector<48x128xf32>,
    %cst_1 = arith.constant 0.000000e+00 : f32
    %2 = vector.broadcast %cst_1 : f32 to vector<48x128xf32>
    %c0_2 = arith.constant 0 : index
    %c0_3 = arith.constant 0 : index
    %3 = vector.load %arg14[%c0_2, %c0_3] : memref<48x128xf32, #tpu.memory_space<vmem>>, vector<48x128xf32>
    tpu.vector_store %arg14[%c0_2, %c0_3], %2 {strides = array<i32>} : memref<48x128xf32, #tpu.memory_space<vmem>>, vector<48x128xf32>,
    %c0_4 = arith.constant 0 : index
    %c0_5 = arith.constant 0 : index
    %c0_6 = arith.constant 0 : index
    %4 = vector.load %arg1[%c0_4, %c0_5, %c0_6] : memref<1x16x128xf32, #tpu.memory_space<vmem>>, vector<1x16x128xf32>
    %5 = vector.shape_cast %4 : vector<1x16x128xf32> to vector<16x128xf32>
    %c16 = arith.constant 16 : index
    %c0_7 = arith.constant 0 : index
    %6 = vector.load %arg13[%c16, %c0_7] : memref<48x128xf32, #tpu.memory_space<vmem>>, vector<16x128xf32>
    tpu.vector_store %arg13[%c16, %c0_7], %5 {strides = array<i32>} : memref<48x128xf32, #tpu.memory_space<vmem>>, vector<16x128xf32>,
    %c0_8 = arith.constant 0 : index
    %c0_9 = arith.constant 0 : index
    %7 = vector.load %arg3[%c0_8, %c0_9] : memref<1x128xf32, #tpu.memory_space<vmem>>, vector<1x128xf32>
    %cst_10 = arith.constant 0.000000e+00 : f32
    %8 = vector.broadcast %cst_10 : f32 to vector<16x128xf32>
    %9 = vector.broadcast %7 : vector<1x128xf32> to vector<16x128xf32>
    %10 = arith.addf %8, %9 : vector<16x128xf32>
    %c15 = arith.constant 15 : index
    %c0_11 = arith.constant 0 : index
    %11 = vector.load %arg13[%c15, %c0_11] : memref<48x128xf32, #tpu.memory_space<vmem>>, vector<16x128xf32>
    %12 = arith.truncf %11 : vector<16x128xf32> to vector<16x128xbf16>
    %c0_12 = arith.constant 0 : index
    %c0_13 = arith.constant 0 : index
    %c0_14 = arith.constant 0 : index
    %13 = vector.load %arg2[%c0_12, %c0_13, %c0_14] : memref<3x128x128xbf16, #tpu.memory_space<vmem>>, vector<1x128x128xbf16>
    %14 = vector.shape_cast %13 : vector<1x128x128xbf16> to vector<128x128xbf16>
    %cst_15 = arith.constant dense<0.000000e+00> : vector<16x128xf32>
    %15 = tpu.matmul %12, %14, %cst_15 {dimension_numbers = #tpu.dot_dimension_numbers<[1], [0], [0], [1], [0, 0, 1, 1], [], []>} : vector<16x128xbf16>, vector<128x128xbf16>, vector<16x128xf32> -> vector<16x128xf32>
    %16 = arith.addf %10, %15 : vector<16x128xf32>
    %c16_16 = arith.constant 16 : index
    %c0_17 = arith.constant 0 : index
    %17 = vector.load %arg13[%c16_16, %c0_17] : memref<48x128xf32, #tpu.memory_space<vmem>>, vector<16x128xf32>
    %18 = arith.truncf %17 : vector<16x128xf32> to vector<16x128xbf16>
    %c1 = arith.constant 1 : index
    %c0_18 = arith.constant 0 : index
    %c0_19 = arith.constant 0 : index
    %19 = vector.load %arg2[%c1, %c0_18, %c0_19] : memref<3x128x128xbf16, #tpu.memory_space<vmem>>, vector<1x128x128xbf16>
    %20 = vector.shape_cast %19 : vector<1x128x128xbf16> to vector<128x128xbf16>
    %cst_20 = arith.constant dense<0.000000e+00> : vector<16x128xf32>
    %21 = tpu.matmul %18, %20, %cst_20 {dimension_numbers = #tpu.dot_dimension_numbers<[1], [0], [0], [1], [0, 0, 1, 1], [], []>} : vector<16x128xbf16>, vector<128x128xbf16>, vector<16x128xf32> -> vector<16x128xf32>
    %22 = arith.addf %16, %21 : vector<16x128xf32>
    %c17 = arith.constant 17 : index
    %c0_21 = arith.constant 0 : index
    %23 = vector.load %arg13[%c17, %c0_21] : memref<48x128xf32, #tpu.memory_space<vmem>>, vector<16x128xf32>
    %24 = arith.truncf %23 : vector<16x128xf32> to vector<16x128xbf16>
    %c2 = arith.constant 2 : index
    %c0_22 = arith.constant 0 : index
    %c0_23 = arith.constant 0 : index
    %25 = vector.load %arg2[%c2, %c0_22, %c0_23] : memref<3x128x128xbf16, #tpu.memory_space<vmem>>, vector<1x128x128xbf16>
    %26 = vector.shape_cast %25 : vector<1x128x128xbf16> to vector<128x128xbf16>
    %cst_24 = arith.constant dense<0.000000e+00> : vector<16x128xf32>
    %27 = tpu.matmul %24, %26, %cst_24 {dimension_numbers = #tpu.dot_dimension_numbers<[1], [0], [0], [1], [0, 0, 1, 1], [], []>} : vector<16x128xbf16>, vector<128x128xbf16>, vector<16x128xf32> -> vector<16x128xf32>
    %28 = arith.addf %22, %27 : vector<16x128xf32>
    %cst_25 = arith.constant 0.000000e+00 : f32
    %29 = vector.broadcast %cst_25 : f32 to vector<16x128xf32>
    %30 = arith.maximumf %28, %29 : vector<16x128xf32>
    %c16_26 = arith.constant 16 : index
    %c0_27 = arith.constant 0 : index
    %31 = vector.load %arg14[%c16_26, %c0_27] : memref<48x128xf32, #tpu.memory_space<vmem>>, vector<16x128xf32>
    tpu.vector_store %arg14[%c16_26, %c0_27], %30 {strides = array<i32>} : memref<48x128xf32, #tpu.memory_space<vmem>>, vector<16x128xf32>,
    %c0_28 = arith.constant 0 : index
    %c0_29 = arith.constant 0 : index
    %c0_30 = arith.constant 0 : index
    %32 = vector.load %arg5[%c0_28, %c0_29, %c0_30] : memref<2x1x128xf32, #tpu.memory_space<vmem>>, vector<1x1x128xf32>
    %33 = vector.shape_cast %32 : vector<1x1x128xf32> to vector<1x128xf32>
    %cst_31 = arith.constant 0.000000e+00 : f32
    %34 = vector.broadcast %cst_31 : f32 to vector<8x128xf32>
    %35 = vector.broadcast %33 : vector<1x128xf32> to vector<8x128xf32>
    %36 = arith.addf %34, %35 : vector<8x128xf32>
    %c15_32 = arith.constant 15 : index
    %c0_33 = arith.constant 0 : index
    %37 = tpu.strided_load %arg14[%c15_32, %c0_33] {strides = array<i32: 2, 1>} : memref<48x128xf32, #tpu.memory_space<vmem>>, vector<8x128xf32>
    %38 = arith.truncf %37 : vector<8x128xf32> to vector<8x128xbf16>
    %c0_34 = arith.constant 0 : index
    %c0_35 = arith.constant 0 : index
    %c0_36 = arith.constant 0 : index
    %c0_37 = arith.constant 0 : index
    %39 = vector.load %arg4[%c0_34, %c0_35, %c0_36, %c0_37] : memref<2x4x128x128xbf16, #tpu.memory_space<vmem>>, vector<1x1x128x128xbf16>
    %40 = vector.shape_cast %39 : vector<1x1x128x128xbf16> to vector<128x128xbf16>
    %cst_38 = arith.constant dense<0.000000e+00> : vector<8x128xf32>
    %41 = tpu.matmul %38, %40, %cst_38 {dimension_numbers = #tpu.dot_dimension_numbers<[1], [0], [0], [1], [0, 0, 1, 1], [], []>} : vector<8x128xbf16>, vector<128x128xbf16>, vector<8x128xf32> -> vector<8x128xf32>
    %42 = arith.addf %36, %41 : vector<8x128xf32>
    %c16_39 = arith.constant 16 : index
    %c0_40 = arith.constant 0 : index
    %43 = tpu.strided_load %arg14[%c16_39, %c0_40] {strides = array<i32: 2, 1>} : memref<48x128xf32, #tpu.memory_space<vmem>>, vector<8x128xf32>
    %44 = arith.truncf %43 : vector<8x128xf32> to vector<8x128xbf16>
    %c0_41 = arith.constant 0 : index
    %c1_42 = arith.constant 1 : index
    %c0_43 = arith.constant 0 : index
    %c0_44 = arith.constant 0 : index
    %45 = vector.load %arg4[%c0_41, %c1_42, %c0_43, %c0_44] : memref<2x4x128x128xbf16, #tpu.memory_space<vmem>>, vector<1x1x128x128xbf16>
    %46 = vector.shape_cast %45 : vector<1x1x128x128xbf16> to vector<128x128xbf16>
    %cst_45 = arith.constant dense<0.000000e+00> : vector<8x128xf32>
    %47 = tpu.matmul %44, %46, %cst_45 {dimension_numbers = #tpu.dot_dimension_numbers<[1], [0], [0], [1], [0, 0, 1, 1], [], []>} : vector<8x128xbf16>, vector<128x128xbf16>, vector<8x128xf32> -> vector<8x128xf32>
    %48 = arith.addf %42, %47 : vector<8x128xf32>
    %c17_46 = arith.constant 17 : index
    %c0_47 = arith.constant 0 : index
    %49 = tpu.strided_load %arg14[%c17_46, %c0_47] {strides = array<i32: 2, 1>} : memref<48x128xf32, #tpu.memory_space<vmem>>, vector<8x128xf32>
    %50 = arith.truncf %49 : vector<8x128xf32> to vector<8x128xbf16>
    %c0_48 = arith.constant 0 : index
    %c2_49 = arith.constant 2 : index
    %c0_50 = arith.constant 0 : index
    %c0_51 = arith.constant 0 : index
    %51 = vector.load %arg4[%c0_48, %c2_49, %c0_50, %c0_51] : memref<2x4x128x128xbf16, #tpu.memory_space<vmem>>, vector<1x1x128x128xbf16>
    %52 = vector.shape_cast %51 : vector<1x1x128x128xbf16> to vector<128x128xbf16>
    %cst_52 = arith.constant dense<0.000000e+00> : vector<8x128xf32>
    %53 = tpu.matmul %50, %52, %cst_52 {dimension_numbers = #tpu.dot_dimension_numbers<[1], [0], [0], [1], [0, 0, 1, 1], [], []>} : vector<8x128xbf16>, vector<128x128xbf16>, vector<8x128xf32> -> vector<8x128xf32>
    %54 = arith.addf %48, %53 : vector<8x128xf32>
    %c18 = arith.constant 18 : index
    %c0_53 = arith.constant 0 : index
    %55 = tpu.strided_load %arg14[%c18, %c0_53] {strides = array<i32: 2, 1>} : memref<48x128xf32, #tpu.memory_space<vmem>>, vector<8x128xf32>
    %56 = arith.truncf %55 : vector<8x128xf32> to vector<8x128xbf16>
    %c0_54 = arith.constant 0 : index
    %c3 = arith.constant 3 : index
    %c0_55 = arith.constant 0 : index
    %c0_56 = arith.constant 0 : index
    %57 = vector.load %arg4[%c0_54, %c3, %c0_55, %c0_56] : memref<2x4x128x128xbf16, #tpu.memory_space<vmem>>, vector<1x1x128x128xbf16>
    %58 = vector.shape_cast %57 : vector<1x1x128x128xbf16> to vector<128x128xbf16>
    %cst_57 = arith.constant dense<0.000000e+00> : vector<8x128xf32>
    %59 = tpu.matmul %56, %58, %cst_57 {dimension_numbers = #tpu.dot_dimension_numbers<[1], [0], [0], [1], [0, 0, 1, 1], [], []>} : vector<8x128xbf16>, vector<128x128xbf16>, vector<8x128xf32> -> vector<8x128xf32>
    %60 = arith.addf %54, %59 : vector<8x128xf32>
    %c16_58 = arith.constant 16 : index
    %c0_59 = arith.constant 0 : index
    %61 = vector.load %arg13[%c16_58, %c0_59] : memref<48x128xf32, #tpu.memory_space<vmem>>, vector<8x128xf32>
    tpu.vector_store %arg13[%c16_58, %c0_59], %60 {strides = array<i32>} : memref<48x128xf32, #tpu.memory_space<vmem>>, vector<8x128xf32>,
    %cst_60 = arith.constant 0.000000e+00 : f32
    %62 = vector.broadcast %cst_60 : f32 to vector<8x128xf32>
    %c24 = arith.constant 24 : index
    %c0_61 = arith.constant 0 : index
    %63 = vector.load %arg13[%c24, %c0_61] : memref<48x128xf32, #tpu.memory_space<vmem>>, vector<8x128xf32>
    tpu.vector_store %arg13[%c24, %c0_61], %62 {strides = array<i32>} : memref<48x128xf32, #tpu.memory_space<vmem>>, vector<8x128xf32>,
    %c16_62 = arith.constant 16 : index
    %c0_63 = arith.constant 0 : index
    %64 = vector.load %arg13[%c16_62, %c0_63] : memref<48x128xf32, #tpu.memory_space<vmem>>, vector<8x128xf32>
    %cst_64 = arith.constant 0.000000e+00 : f32
    %65 = vector.broadcast %cst_64 : f32 to vector<8x128xf32>
    %66 = arith.maximumf %64, %65 : vector<8x128xf32>
    %c16_65 = arith.constant 16 : index
    %c0_66 = arith.constant 0 : index
    %67 = vector.load %arg14[%c16_65, %c0_66] : memref<48x128xf32, #tpu.memory_space<vmem>>, vector<8x128xf32>
    tpu.vector_store %arg14[%c16_65, %c0_66], %66 {strides = array<i32>} : memref<48x128xf32, #tpu.memory_space<vmem>>, vector<8x128xf32>,
    %cst_67 = arith.constant 0.000000e+00 : f32
    %68 = vector.broadcast %cst_67 : f32 to vector<8x128xf32>
    %c24_68 = arith.constant 24 : index
    %c0_69 = arith.constant 0 : index
    %69 = vector.load %arg14[%c24_68, %c0_69] : memref<48x128xf32, #tpu.memory_space<vmem>>, vector<8x128xf32>
    tpu.vector_store %arg14[%c24_68, %c0_69], %68 {strides = array<i32>} : memref<48x128xf32, #tpu.memory_space<vmem>>, vector<8x128xf32>,
    %c0_70 = arith.constant 0 : index
    %c0_71 = arith.constant 0 : index
    %c0_72 = arith.constant 0 : index
    %70 = vector.load %arg7[%c0_70, %c0_71, %c0_72] : memref<6x1x128xf32, #tpu.memory_space<vmem>>, vector<1x1x128xf32>
    %71 = vector.shape_cast %70 : vector<1x1x128xf32> to vector<1x128xf32>
    %cst_73 = arith.constant 0.000000e+00 : f32
    %72 = vector.broadcast %cst_73 : f32 to vector<8x128xf32>
    %73 = vector.broadcast %71 : vector<1x128xf32> to vector<8x128xf32>
    %74 = arith.addf %72, %73 : vector<8x128xf32>
    %c7 = arith.constant 7 : index
    %c0_74 = arith.constant 0 : index
    %75 = vector.load %arg14[%c7, %c0_74] : memref<48x128xf32, #tpu.memory_space<vmem>>, vector<8x128xf32>
    %76 = arith.truncf %75 : vector<8x128xf32> to vector<8x128xbf16>
    %c0_75 = arith.constant 0 : index
    %c0_76 = arith.constant 0 : index
    %c0_77 = arith.constant 0 : index
    %c0_78 = arith.constant 0 : index
    %77 = vector.load %arg6[%c0_75, %c0_76, %c0_77, %c0_78] : memref<6x3x128x128xbf16, #tpu.memory_space<vmem>>, vector<1x1x128x128xbf16>
    %78 = vector.shape_cast %77 : vector<1x1x128x128xbf16> to vector<128x128xbf16>
    %cst_79 = arith.constant dense<0.000000e+00> : vector<8x128xf32>
    %79 = tpu.matmul %76, %78, %cst_79 {dimension_numbers = #tpu.dot_dimension_numbers<[1], [0], [0], [1], [0, 0, 1, 1], [], []>} : vector<8x128xbf16>, vector<128x128xbf16>, vector<8x128xf32> -> vector<8x128xf32>
    %80 = arith.addf %74, %79 : vector<8x128xf32>
    %c16_80 = arith.constant 16 : index
    %c0_81 = arith.constant 0 : index
    %81 = vector.load %arg14[%c16_80, %c0_81] : memref<48x128xf32, #tpu.memory_space<vmem>>, vector<8x128xf32>
    %82 = arith.truncf %81 : vector<8x128xf32> to vector<8x128xbf16>
    %c0_82 = arith.constant 0 : index
    %c1_83 = arith.constant 1 : index
    %c0_84 = arith.constant 0 : index
    %c0_85 = arith.constant 0 : index
    %83 = vector.load %arg6[%c0_82, %c1_83, %c0_84, %c0_85] : memref<6x3x128x128xbf16, #tpu.memory_space<vmem>>, vector<1x1x128x128xbf16>
    %84 = vector.shape_cast %83 : vector<1x1x128x128xbf16> to vector<128x128xbf16>
    %cst_86 = arith.constant dense<0.000000e+00> : vector<8x128xf32>
    %85 = tpu.matmul %82, %84, %cst_86 {dimension_numbers = #tpu.dot_dimension_numbers<[1], [0], [0], [1], [0, 0, 1, 1], [], []>} : vector<8x128xbf16>, vector<128x128xbf16>, vector<8x128xf32> -> vector<8x128xf32>
    %86 = arith.addf %80, %85 : vector<8x128xf32>
    %c25 = arith.constant 25 : index
    %c0_87 = arith.constant 0 : index
    %87 = vector.load %arg14[%c25, %c0_87] : memref<48x128xf32, #tpu.memory_space<vmem>>, vector<8x128xf32>
    %88 = arith.truncf %87 : vector<8x128xf32> to vector<8x128xbf16>
    %c0_88 = arith.constant 0 : index
    %c2_89 = arith.constant 2 : index
    %c0_90 = arith.constant 0 : index
    %c0_91 = arith.constant 0 : index
    %89 = vector.load %arg6[%c0_88, %c2_89, %c0_90, %c0_91] : memref<6x3x128x128xbf16, #tpu.memory_space<vmem>>, vector<1x1x128x128xbf16>
    %90 = vector.shape_cast %89 : vector<1x1x128x128xbf16> to vector<128x128xbf16>
    %cst_92 = arith.constant dense<0.000000e+00> : vector<8x128xf32>
    %91 = tpu.matmul %88, %90, %cst_92 {dimension_numbers = #tpu.dot_dimension_numbers<[1], [0], [0], [1], [0, 0, 1, 1], [], []>} : vector<8x128xbf16>, vector<128x128xbf16>, vector<8x128xf32> -> vector<8x128xf32>
    %92 = arith.addf %86, %91 : vector<8x128xf32>
    %cst_93 = arith.constant 0.000000e+00 : f32
    %93 = vector.broadcast %cst_93 : f32 to vector<8x128xf32>
    %94 = arith.maximumf %92, %93 : vector<8x128xf32>
    %95 = arith.truncf %94 : vector<8x128xf32> to vector<8x128xbf16>
    %c0_94 = arith.constant 0 : index
    %c0_95 = arith.constant 0 : index
    %c0_96 = arith.constant 0 : index
    %96 = vector.load %arg8[%c0_94, %c0_95, %c0_96] : memref<6x128x128xbf16, #tpu.memory_space<vmem>>, vector<1x128x128xbf16>
    %97 = vector.shape_cast %96 : vector<1x128x128xbf16> to vector<128x128xbf16>
    %cst_97 = arith.constant dense<0.000000e+00> : vector<8x128xf32>
    %98 = tpu.matmul %95, %97, %cst_97 {dimension_numbers = #tpu.dot_dimension_numbers<[1], [0], [0], [1], [0, 0, 1, 1], [], []>} : vector<8x128xbf16>, vector<128x128xbf16>, vector<8x128xf32> -> vector<8x128xf32>
    %c0_98 = arith.constant 0 : index
    %c0_99 = arith.constant 0 : index
    %c0_100 = arith.constant 0 : index
    %99 = vector.load %arg9[%c0_98, %c0_99, %c0_100] : memref<6x1x128xf32, #tpu.memory_space<vmem>>, vector<1x1x128xf32>
    %100 = vector.shape_cast %99 : vector<1x1x128xf32> to vector<1x128xf32>
    %101 = vector.broadcast %100 : vector<1x128xf32> to vector<8x128xf32>
    %102 = arith.addf %98, %101 : vector<8x128xf32>
    %c16_101 = arith.constant 16 : index
    %c0_102 = arith.constant 0 : index
    %103 = vector.load %arg13[%c16_101, %c0_102] : memref<48x128xf32, #tpu.memory_space<vmem>>, vector<8x128xf32>
    %104 = arith.addf %102, %103 : vector<8x128xf32>
    %c16_103 = arith.constant 16 : index
    %c0_104 = arith.constant 0 : index
    %105 = vector.load %arg14[%c16_103, %c0_104] : memref<48x128xf32, #tpu.memory_space<vmem>>, vector<8x128xf32>
    tpu.vector_store %arg14[%c16_103, %c0_104], %104 {strides = array<i32>} : memref<48x128xf32, #tpu.memory_space<vmem>>, vector<8x128xf32>,
    %c16_105 = arith.constant 16 : index
    %c0_106 = arith.constant 0 : index
    %106 = vector.load %arg14[%c16_105, %c0_106] : memref<48x128xf32, #tpu.memory_space<vmem>>, vector<8x128xf32>
    %cst_107 = arith.constant 0.000000e+00 : f32
    %107 = vector.broadcast %cst_107 : f32 to vector<8x128xf32>
    %108 = arith.maximumf %106, %107 : vector<8x128xf32>
    %c16_108 = arith.constant 16 : index
    %c0_109 = arith.constant 0 : index
    %109 = vector.load %arg13[%c16_108, %c0_109] : memref<48x128xf32, #tpu.memory_space<vmem>>, vector<8x128xf32>
    tpu.vector_store %arg13[%c16_108, %c0_109], %108 {strides = array<i32>} : memref<48x128xf32, #tpu.memory_space<vmem>>, vector<8x128xf32>,
    %c1_110 = arith.constant 1 : index
    %c0_111 = arith.constant 0 : index
    %c0_112 = arith.constant 0 : index
    %110 = vector.load %arg7[%c1_110, %c0_111, %c0_112] : memref<6x1x128xf32, #tpu.memory_space<vmem>>, vector<1x1x128xf32>
    %111 = vector.shape_cast %110 : vector<1x1x128xf32> to vector<1x128xf32>
    %cst_113 = arith.constant 0.000000e+00 : f32
    %112 = vector.broadcast %cst_113 : f32 to vector<8x128xf32>
    %113 = vector.broadcast %111 : vector<1x128xf32> to vector<8x128xf32>
    %114 = arith.addf %112, %113 : vector<8x128xf32>
    %c13 = arith.constant 13 : index
    %c0_114 = arith.constant 0 : index
    %115 = vector.load %arg13[%c13, %c0_114] : memref<48x128xf32, #tpu.memory_space<vmem>>, vector<8x128xf32>
    %116 = arith.truncf %115 : vector<8x128xf32> to vector<8x128xbf16>
    %c1_115 = arith.constant 1 : index
    %c0_116 = arith.constant 0 : index
    %c0_117 = arith.constant 0 : index
    %c0_118 = arith.constant 0 : index
    %117 = vector.load %arg6[%c1_115, %c0_116, %c0_117, %c0_118] : memref<6x3x128x128xbf16, #tpu.memory_space<vmem>>, vector<1x1x128x128xbf16>
    %118 = vector.shape_cast %117 : vector<1x1x128x128xbf16> to vector<128x128xbf16>
    %cst_119 = arith.constant dense<0.000000e+00> : vector<8x128xf32>
    %119 = tpu.matmul %116, %118, %cst_119 {dimension_numbers = #tpu.dot_dimension_numbers<[1], [0], [0], [1], [0, 0, 1, 1], [], []>} : vector<8x128xbf16>, vector<128x128xbf16>, vector<8x128xf32> -> vector<8x128xf32>
    %120 = arith.addf %114, %119 : vector<8x128xf32>
    %c16_120 = arith.constant 16 : index
    %c0_121 = arith.constant 0 : index
    %121 = vector.load %arg13[%c16_120, %c0_121] : memref<48x128xf32, #tpu.memory_space<vmem>>, vector<8x128xf32>
    %122 = arith.truncf %121 : vector<8x128xf32> to vector<8x128xbf16>
    %c1_122 = arith.constant 1 : index
    %c1_123 = arith.constant 1 : index
    %c0_124 = arith.constant 0 : index
    %c0_125 = arith.constant 0 : index
    %123 = vector.load %arg6[%c1_122, %c1_123, %c0_124, %c0_125] : memref<6x3x128x128xbf16, #tpu.memory_space<vmem>>, vector<1x1x128x128xbf16>
    %124 = vector.shape_cast %123 : vector<1x1x128x128xbf16> to vector<128x128xbf16>
    %cst_126 = arith.constant dense<0.000000e+00> : vector<8x128xf32>
    %125 = tpu.matmul %122, %124, %cst_126 {dimension_numbers = #tpu.dot_dimension_numbers<[1], [0], [0], [1], [0, 0, 1, 1], [], []>} : vector<8x128xbf16>, vector<128x128xbf16>, vector<8x128xf32> -> vector<8x128xf32>
    %126 = arith.addf %120, %125 : vector<8x128xf32>
    %c19 = arith.constant 19 : index
    %c0_127 = arith.constant 0 : index
    %127 = vector.load %arg13[%c19, %c0_127] : memref<48x128xf32, #tpu.memory_space<vmem>>, vector<8x128xf32>
    %128 = arith.truncf %127 : vector<8x128xf32> to vector<8x128xbf16>
    %c1_128 = arith.constant 1 : index
    %c2_129 = arith.constant 2 : index
    %c0_130 = arith.constant 0 : index
    %c0_131 = arith.constant 0 : index
    %129 = vector.load %arg6[%c1_128, %c2_129, %c0_130, %c0_131] : memref<6x3x128x128xbf16, #tpu.memory_space<vmem>>, vector<1x1x128x128xbf16>
    %130 = vector.shape_cast %129 : vector<1x1x128x128xbf16> to vector<128x128xbf16>
    %cst_132 = arith.constant dense<0.000000e+00> : vector<8x128xf32>
    %131 = tpu.matmul %128, %130, %cst_132 {dimension_numbers = #tpu.dot_dimension_numbers<[1], [0], [0], [1], [0, 0, 1, 1], [], []>} : vector<8x128xbf16>, vector<128x128xbf16>, vector<8x128xf32> -> vector<8x128xf32>
    %132 = arith.addf %126, %131 : vector<8x128xf32>
    %cst_133 = arith.constant 0.000000e+00 : f32
    %133 = vector.broadcast %cst_133 : f32 to vector<8x128xf32>
    %134 = arith.maximumf %132, %133 : vector<8x128xf32>
    %135 = arith.truncf %134 : vector<8x128xf32> to vector<8x128xbf16>
    %c1_134 = arith.constant 1 : index
    %c0_135 = arith.constant 0 : index
    %c0_136 = arith.constant 0 : index
    %136 = vector.load %arg8[%c1_134, %c0_135, %c0_136] : memref<6x128x128xbf16, #tpu.memory_space<vmem>>, vector<1x128x128xbf16>
    %137 = vector.shape_cast %136 : vector<1x128x128xbf16> to vector<128x128xbf16>
    %cst_137 = arith.constant dense<0.000000e+00> : vector<8x128xf32>
    %138 = tpu.matmul %135, %137, %cst_137 {dimension_numbers = #tpu.dot_dimension_numbers<[1], [0], [0], [1], [0, 0, 1, 1], [], []>} : vector<8x128xbf16>, vector<128x128xbf16>, vector<8x128xf32> -> vector<8x128xf32>
    %c1_138 = arith.constant 1 : index
    %c0_139 = arith.constant 0 : index
    %c0_140 = arith.constant 0 : index
    %139 = vector.load %arg9[%c1_138, %c0_139, %c0_140] : memref<6x1x128xf32, #tpu.memory_space<vmem>>, vector<1x1x128xf32>
    %140 = vector.shape_cast %139 : vector<1x1x128xf32> to vector<1x128xf32>
    %141 = vector.broadcast %140 : vector<1x128xf32> to vector<8x128xf32>
    %142 = arith.addf %138, %141 : vector<8x128xf32>
    %c16_141 = arith.constant 16 : index
    %c0_142 = arith.constant 0 : index
    %143 = vector.load %arg14[%c16_141, %c0_142] : memref<48x128xf32, #tpu.memory_space<vmem>>, vector<8x128xf32>
    %144 = arith.addf %142, %143 : vector<8x128xf32>
    %c16_143 = arith.constant 16 : index
    %c0_144 = arith.constant 0 : index
    %145 = vector.load %arg13[%c16_143, %c0_144] : memref<48x128xf32, #tpu.memory_space<vmem>>, vector<8x128xf32>
    tpu.vector_store %arg13[%c16_143, %c0_144], %144 {strides = array<i32>} : memref<48x128xf32, #tpu.memory_space<vmem>>, vector<8x128xf32>,
    %c16_145 = arith.constant 16 : index
    %c0_146 = arith.constant 0 : index
    %146 = vector.load %arg13[%c16_145, %c0_146] : memref<48x128xf32, #tpu.memory_space<vmem>>, vector<8x128xf32>
    %cst_147 = arith.constant 0.000000e+00 : f32
    %147 = vector.broadcast %cst_147 : f32 to vector<8x128xf32>
    %148 = arith.maximumf %146, %147 : vector<8x128xf32>
    %c16_148 = arith.constant 16 : index
    %c0_149 = arith.constant 0 : index
    %149 = vector.load %arg14[%c16_148, %c0_149] : memref<48x128xf32, #tpu.memory_space<vmem>>, vector<8x128xf32>
    tpu.vector_store %arg14[%c16_148, %c0_149], %148 {strides = array<i32>} : memref<48x128xf32, #tpu.memory_space<vmem>>, vector<8x128xf32>,
    %c2_150 = arith.constant 2 : index
    %c0_151 = arith.constant 0 : index
    %c0_152 = arith.constant 0 : index
    %150 = vector.load %arg7[%c2_150, %c0_151, %c0_152] : memref<6x1x128xf32, #tpu.memory_space<vmem>>, vector<1x1x128xf32>
    %151 = vector.shape_cast %150 : vector<1x1x128xf32> to vector<1x128xf32>
    %cst_153 = arith.constant 0.000000e+00 : f32
    %152 = vector.broadcast %cst_153 : f32 to vector<8x128xf32>
    %153 = vector.broadcast %151 : vector<1x128xf32> to vector<8x128xf32>
    %154 = arith.addf %152, %153 : vector<8x128xf32>
    %c15_154 = arith.constant 15 : index
    %c0_155 = arith.constant 0 : index
    %155 = vector.load %arg14[%c15_154, %c0_155] : memref<48x128xf32, #tpu.memory_space<vmem>>, vector<8x128xf32>
    %156 = arith.truncf %155 : vector<8x128xf32> to vector<8x128xbf16>
    %c2_156 = arith.constant 2 : index
    %c0_157 = arith.constant 0 : index
    %c0_158 = arith.constant 0 : index
    %c0_159 = arith.constant 0 : index
    %157 = vector.load %arg6[%c2_156, %c0_157, %c0_158, %c0_159] : memref<6x3x128x128xbf16, #tpu.memory_space<vmem>>, vector<1x1x128x128xbf16>
    %158 = vector.shape_cast %157 : vector<1x1x128x128xbf16> to vector<128x128xbf16>
    %cst_160 = arith.constant dense<0.000000e+00> : vector<8x128xf32>
    %159 = tpu.matmul %156, %158, %cst_160 {dimension_numbers = #tpu.dot_dimension_numbers<[1], [0], [0], [1], [0, 0, 1, 1], [], []>} : vector<8x128xbf16>, vector<128x128xbf16>, vector<8x128xf32> -> vector<8x128xf32>
    %160 = arith.addf %154, %159 : vector<8x128xf32>
    %c16_161 = arith.constant 16 : index
    %c0_162 = arith.constant 0 : index
    %161 = vector.load %arg14[%c16_161, %c0_162] : memref<48x128xf32, #tpu.memory_space<vmem>>, vector<8x128xf32>
    %162 = arith.truncf %161 : vector<8x128xf32> to vector<8x128xbf16>
    %c2_163 = arith.constant 2 : index
    %c1_164 = arith.constant 1 : index
    %c0_165 = arith.constant 0 : index
    %c0_166 = arith.constant 0 : index
    %163 = vector.load %arg6[%c2_163, %c1_164, %c0_165, %c0_166] : memref<6x3x128x128xbf16, #tpu.memory_space<vmem>>, vector<1x1x128x128xbf16>
    %164 = vector.shape_cast %163 : vector<1x1x128x128xbf16> to vector<128x128xbf16>
    %cst_167 = arith.constant dense<0.000000e+00> : vector<8x128xf32>
    %165 = tpu.matmul %162, %164, %cst_167 {dimension_numbers = #tpu.dot_dimension_numbers<[1], [0], [0], [1], [0, 0, 1, 1], [], []>} : vector<8x128xbf16>, vector<128x128xbf16>, vector<8x128xf32> -> vector<8x128xf32>
    %166 = arith.addf %160, %165 : vector<8x128xf32>
    %c17_168 = arith.constant 17 : index
    %c0_169 = arith.constant 0 : index
    %167 = vector.load %arg14[%c17_168, %c0_169] : memref<48x128xf32, #tpu.memory_space<vmem>>, vector<8x128xf32>
    %168 = arith.truncf %167 : vector<8x128xf32> to vector<8x128xbf16>
    %c2_170 = arith.constant 2 : index
    %c2_171 = arith.constant 2 : index
    %c0_172 = arith.constant 0 : index
    %c0_173 = arith.constant 0 : index
    %169 = vector.load %arg6[%c2_170, %c2_171, %c0_172, %c0_173] : memref<6x3x128x128xbf16, #tpu.memory_space<vmem>>, vector<1x1x128x128xbf16>
    %170 = vector.shape_cast %169 : vector<1x1x128x128xbf16> to vector<128x128xbf16>
    %cst_174 = arith.constant dense<0.000000e+00> : vector<8x128xf32>
    %171 = tpu.matmul %168, %170, %cst_174 {dimension_numbers = #tpu.dot_dimension_numbers<[1], [0], [0], [1], [0, 0, 1, 1], [], []>} : vector<8x128xbf16>, vector<128x128xbf16>, vector<8x128xf32> -> vector<8x128xf32>
    %172 = arith.addf %166, %171 : vector<8x128xf32>
    %cst_175 = arith.constant 0.000000e+00 : f32
    %173 = vector.broadcast %cst_175 : f32 to vector<8x128xf32>
    %174 = arith.maximumf %172, %173 : vector<8x128xf32>
    %175 = arith.truncf %174 : vector<8x128xf32> to vector<8x128xbf16>
    %c2_176 = arith.constant 2 : index
    %c0_177 = arith.constant 0 : index
    %c0_178 = arith.constant 0 : index
    %176 = vector.load %arg8[%c2_176, %c0_177, %c0_178] : memref<6x128x128xbf16, #tpu.memory_space<vmem>>, vector<1x128x128xbf16>
    %177 = vector.shape_cast %176 : vector<1x128x128xbf16> to vector<128x128xbf16>
    %cst_179 = arith.constant dense<0.000000e+00> : vector<8x128xf32>
    %178 = tpu.matmul %175, %177, %cst_179 {dimension_numbers = #tpu.dot_dimension_numbers<[1], [0], [0], [1], [0, 0, 1, 1], [], []>} : vector<8x128xbf16>, vector<128x128xbf16>, vector<8x128xf32> -> vector<8x128xf32>
    %c2_180 = arith.constant 2 : index
    %c0_181 = arith.constant 0 : index
    %c0_182 = arith.constant 0 : index
    %179 = vector.load %arg9[%c2_180, %c0_181, %c0_182] : memref<6x1x128xf32, #tpu.memory_space<vmem>>, vector<1x1x128xf32>
    %180 = vector.shape_cast %179 : vector<1x1x128xf32> to vector<1x128xf32>
    %181 = vector.broadcast %180 : vector<1x128xf32> to vector<8x128xf32>
    %182 = arith.addf %178, %181 : vector<8x128xf32>
    %c16_183 = arith.constant 16 : index
    %c0_184 = arith.constant 0 : index
    %183 = vector.load %arg13[%c16_183, %c0_184] : memref<48x128xf32, #tpu.memory_space<vmem>>, vector<8x128xf32>
    %184 = arith.addf %182, %183 : vector<8x128xf32>
    %c16_185 = arith.constant 16 : index
    %c0_186 = arith.constant 0 : index
    %185 = vector.load %arg14[%c16_185, %c0_186] : memref<48x128xf32, #tpu.memory_space<vmem>>, vector<8x128xf32>
    tpu.vector_store %arg14[%c16_185, %c0_186], %184 {strides = array<i32>} : memref<48x128xf32, #tpu.memory_space<vmem>>, vector<8x128xf32>,
    %c1_187 = arith.constant 1 : index
    %c0_188 = arith.constant 0 : index
    %c0_189 = arith.constant 0 : index
    %186 = vector.load %arg5[%c1_187, %c0_188, %c0_189] : memref<2x1x128xf32, #tpu.memory_space<vmem>>, vector<1x1x128xf32>
    %187 = vector.shape_cast %186 : vector<1x1x128xf32> to vector<1x128xf32>
    %cst_190 = arith.constant 0.000000e+00 : f32
    %188 = vector.broadcast %cst_190 : f32 to vector<4x128xf32>
    %189 = vector.broadcast %187 : vector<1x128xf32> to vector<4x128xf32>
    %190 = arith.addf %188, %189 : vector<4x128xf32>
    %c15_191 = arith.constant 15 : index
    %c0_192 = arith.constant 0 : index
    %191 = tpu.strided_load %arg14[%c15_191, %c0_192] {strides = array<i32: 2, 1>} : memref<48x128xf32, #tpu.memory_space<vmem>>, vector<4x128xf32>
    %192 = arith.truncf %191 : vector<4x128xf32> to vector<4x128xbf16>
    %c1_193 = arith.constant 1 : index
    %c0_194 = arith.constant 0 : index
    %c0_195 = arith.constant 0 : index
    %c0_196 = arith.constant 0 : index
    %193 = vector.load %arg4[%c1_193, %c0_194, %c0_195, %c0_196] : memref<2x4x128x128xbf16, #tpu.memory_space<vmem>>, vector<1x1x128x128xbf16>
    %194 = vector.shape_cast %193 : vector<1x1x128x128xbf16> to vector<128x128xbf16>
    %cst_197 = arith.constant dense<0.000000e+00> : vector<4x128xf32>
    %195 = tpu.matmul %192, %194, %cst_197 {dimension_numbers = #tpu.dot_dimension_numbers<[1], [0], [0], [1], [0, 0, 1, 1], [], []>} : vector<4x128xbf16>, vector<128x128xbf16>, vector<4x128xf32> -> vector<4x128xf32>
    %196 = arith.addf %190, %195 : vector<4x128xf32>
    %c16_198 = arith.constant 16 : index
    %c0_199 = arith.constant 0 : index
    %197 = tpu.strided_load %arg14[%c16_198, %c0_199] {strides = array<i32: 2, 1>} : memref<48x128xf32, #tpu.memory_space<vmem>>, vector<4x128xf32>
    %198 = arith.truncf %197 : vector<4x128xf32> to vector<4x128xbf16>
    %c1_200 = arith.constant 1 : index
    %c1_201 = arith.constant 1 : index
    %c0_202 = arith.constant 0 : index
    %c0_203 = arith.constant 0 : index
    %199 = vector.load %arg4[%c1_200, %c1_201, %c0_202, %c0_203] : memref<2x4x128x128xbf16, #tpu.memory_space<vmem>>, vector<1x1x128x128xbf16>
    %200 = vector.shape_cast %199 : vector<1x1x128x128xbf16> to vector<128x128xbf16>
    %cst_204 = arith.constant dense<0.000000e+00> : vector<4x128xf32>
    %201 = tpu.matmul %198, %200, %cst_204 {dimension_numbers = #tpu.dot_dimension_numbers<[1], [0], [0], [1], [0, 0, 1, 1], [], []>} : vector<4x128xbf16>, vector<128x128xbf16>, vector<4x128xf32> -> vector<4x128xf32>
    %202 = arith.addf %196, %201 : vector<4x128xf32>
    %c17_205 = arith.constant 17 : index
    %c0_206 = arith.constant 0 : index
    %203 = tpu.strided_load %arg14[%c17_205, %c0_206] {strides = array<i32: 2, 1>} : memref<48x128xf32, #tpu.memory_space<vmem>>, vector<4x128xf32>
    %204 = arith.truncf %203 : vector<4x128xf32> to vector<4x128xbf16>
    %c1_207 = arith.constant 1 : index
    %c2_208 = arith.constant 2 : index
    %c0_209 = arith.constant 0 : index
    %c0_210 = arith.constant 0 : index
    %205 = vector.load %arg4[%c1_207, %c2_208, %c0_209, %c0_210] : memref<2x4x128x128xbf16, #tpu.memory_space<vmem>>, vector<1x1x128x128xbf16>
    %206 = vector.shape_cast %205 : vector<1x1x128x128xbf16> to vector<128x128xbf16>
    %cst_211 = arith.constant dense<0.000000e+00> : vector<4x128xf32>
    %207 = tpu.matmul %204, %206, %cst_211 {dimension_numbers = #tpu.dot_dimension_numbers<[1], [0], [0], [1], [0, 0, 1, 1], [], []>} : vector<4x128xbf16>, vector<128x128xbf16>, vector<4x128xf32> -> vector<4x128xf32>
    %208 = arith.addf %202, %207 : vector<4x128xf32>
    %c18_212 = arith.constant 18 : index
    %c0_213 = arith.constant 0 : index
    %209 = tpu.strided_load %arg14[%c18_212, %c0_213] {strides = array<i32: 2, 1>} : memref<48x128xf32, #tpu.memory_space<vmem>>, vector<4x128xf32>
    %210 = arith.truncf %209 : vector<4x128xf32> to vector<4x128xbf16>
    %c1_214 = arith.constant 1 : index
    %c3_215 = arith.constant 3 : index
    %c0_216 = arith.constant 0 : index
    %c0_217 = arith.constant 0 : index
    %211 = vector.load %arg4[%c1_214, %c3_215, %c0_216, %c0_217] : memref<2x4x128x128xbf16, #tpu.memory_space<vmem>>, vector<1x1x128x128xbf16>
    %212 = vector.shape_cast %211 : vector<1x1x128x128xbf16> to vector<128x128xbf16>
    %cst_218 = arith.constant dense<0.000000e+00> : vector<4x128xf32>
    %213 = tpu.matmul %210, %212, %cst_218 {dimension_numbers = #tpu.dot_dimension_numbers<[1], [0], [0], [1], [0, 0, 1, 1], [], []>} : vector<4x128xbf16>, vector<128x128xbf16>, vector<4x128xf32> -> vector<4x128xf32>
    %214 = arith.addf %208, %213 : vector<4x128xf32>
    %c16_219 = arith.constant 16 : index
    %c0_220 = arith.constant 0 : index
    %215 = vector.load %arg13[%c16_219, %c0_220] : memref<48x128xf32, #tpu.memory_space<vmem>>, vector<4x128xf32>
    tpu.vector_store %arg13[%c16_219, %c0_220], %214 {strides = array<i32>} : memref<48x128xf32, #tpu.memory_space<vmem>>, vector<4x128xf32>,
    %cst_221 = arith.constant 0.000000e+00 : f32
    %216 = vector.broadcast %cst_221 : f32 to vector<4x128xf32>
    %c20 = arith.constant 20 : index
    %c0_222 = arith.constant 0 : index
    %217 = vector.load %arg13[%c20, %c0_222] : memref<48x128xf32, #tpu.memory_space<vmem>>, vector<4x128xf32>
    tpu.vector_store %arg13[%c20, %c0_222], %216 {strides = array<i32>} : memref<48x128xf32, #tpu.memory_space<vmem>>, vector<4x128xf32>,
    %c16_223 = arith.constant 16 : index
    %c0_224 = arith.constant 0 : index
    %218 = vector.load %arg13[%c16_223, %c0_224] : memref<48x128xf32, #tpu.memory_space<vmem>>, vector<4x128xf32>
    %cst_225 = arith.constant 0.000000e+00 : f32
    %219 = vector.broadcast %cst_225 : f32 to vector<4x128xf32>
    %220 = arith.maximumf %218, %219 : vector<4x128xf32>
    %c16_226 = arith.constant 16 : index
    %c0_227 = arith.constant 0 : index
    %221 = vector.load %arg14[%c16_226, %c0_227] : memref<48x128xf32, #tpu.memory_space<vmem>>, vector<4x128xf32>
    tpu.vector_store %arg14[%c16_226, %c0_227], %220 {strides = array<i32>} : memref<48x128xf32, #tpu.memory_space<vmem>>, vector<4x128xf32>,
    %cst_228 = arith.constant 0.000000e+00 : f32
    %222 = vector.broadcast %cst_228 : f32 to vector<4x128xf32>
    %c20_229 = arith.constant 20 : index
    %c0_230 = arith.constant 0 : index
    %223 = vector.load %arg14[%c20_229, %c0_230] : memref<48x128xf32, #tpu.memory_space<vmem>>, vector<4x128xf32>
    tpu.vector_store %arg14[%c20_229, %c0_230], %222 {strides = array<i32>} : memref<48x128xf32, #tpu.memory_space<vmem>>, vector<4x128xf32>,
    %c3_231 = arith.constant 3 : index
    %c0_232 = arith.constant 0 : index
    %c0_233 = arith.constant 0 : index
    %224 = vector.load %arg7[%c3_231, %c0_232, %c0_233] : memref<6x1x128xf32, #tpu.memory_space<vmem>>, vector<1x1x128xf32>
    %225 = vector.shape_cast %224 : vector<1x1x128xf32> to vector<1x128xf32>
    %cst_234 = arith.constant 0.000000e+00 : f32
    %226 = vector.broadcast %cst_234 : f32 to vector<4x128xf32>
    %227 = vector.broadcast %225 : vector<1x128xf32> to vector<4x128xf32>
    %228 = arith.addf %226, %227 : vector<4x128xf32>
    %c7_235 = arith.constant 7 : index
    %c0_236 = arith.constant 0 : index
    %229 = vector.load %arg14[%c7_235, %c0_236] : memref<48x128xf32, #tpu.memory_space<vmem>>, vector<4x128xf32>
    %230 = arith.truncf %229 : vector<4x128xf32> to vector<4x128xbf16>
    %c3_237 = arith.constant 3 : index
    %c0_238 = arith.constant 0 : index
    %c0_239 = arith.constant 0 : index
    %c0_240 = arith.constant 0 : index
    %231 = vector.load %arg6[%c3_237, %c0_238, %c0_239, %c0_240] : memref<6x3x128x128xbf16, #tpu.memory_space<vmem>>, vector<1x1x128x128xbf16>
    %232 = vector.shape_cast %231 : vector<1x1x128x128xbf16> to vector<128x128xbf16>
    %cst_241 = arith.constant dense<0.000000e+00> : vector<4x128xf32>
    %233 = tpu.matmul %230, %232, %cst_241 {dimension_numbers = #tpu.dot_dimension_numbers<[1], [0], [0], [1], [0, 0, 1, 1], [], []>} : vector<4x128xbf16>, vector<128x128xbf16>, vector<4x128xf32> -> vector<4x128xf32>
    %234 = arith.addf %228, %233 : vector<4x128xf32>
    %c16_242 = arith.constant 16 : index
    %c0_243 = arith.constant 0 : index
    %235 = vector.load %arg14[%c16_242, %c0_243] : memref<48x128xf32, #tpu.memory_space<vmem>>, vector<4x128xf32>
    %236 = arith.truncf %235 : vector<4x128xf32> to vector<4x128xbf16>
    %c3_244 = arith.constant 3 : index
    %c1_245 = arith.constant 1 : index
    %c0_246 = arith.constant 0 : index
    %c0_247 = arith.constant 0 : index
    %237 = vector.load %arg6[%c3_244, %c1_245, %c0_246, %c0_247] : memref<6x3x128x128xbf16, #tpu.memory_space<vmem>>, vector<1x1x128x128xbf16>
    %238 = vector.shape_cast %237 : vector<1x1x128x128xbf16> to vector<128x128xbf16>
    %cst_248 = arith.constant dense<0.000000e+00> : vector<4x128xf32>
    %239 = tpu.matmul %236, %238, %cst_248 {dimension_numbers = #tpu.dot_dimension_numbers<[1], [0], [0], [1], [0, 0, 1, 1], [], []>} : vector<4x128xbf16>, vector<128x128xbf16>, vector<4x128xf32> -> vector<4x128xf32>
    %240 = arith.addf %234, %239 : vector<4x128xf32>
    %c25_249 = arith.constant 25 : index
    %c0_250 = arith.constant 0 : index
    %241 = vector.load %arg14[%c25_249, %c0_250] : memref<48x128xf32, #tpu.memory_space<vmem>>, vector<4x128xf32>
    %242 = arith.truncf %241 : vector<4x128xf32> to vector<4x128xbf16>
    %c3_251 = arith.constant 3 : index
    %c2_252 = arith.constant 2 : index
    %c0_253 = arith.constant 0 : index
    %c0_254 = arith.constant 0 : index
    %243 = vector.load %arg6[%c3_251, %c2_252, %c0_253, %c0_254] : memref<6x3x128x128xbf16, #tpu.memory_space<vmem>>, vector<1x1x128x128xbf16>
    %244 = vector.shape_cast %243 : vector<1x1x128x128xbf16> to vector<128x128xbf16>
    %cst_255 = arith.constant dense<0.000000e+00> : vector<4x128xf32>
    %245 = tpu.matmul %242, %244, %cst_255 {dimension_numbers = #tpu.dot_dimension_numbers<[1], [0], [0], [1], [0, 0, 1, 1], [], []>} : vector<4x128xbf16>, vector<128x128xbf16>, vector<4x128xf32> -> vector<4x128xf32>
    %246 = arith.addf %240, %245 : vector<4x128xf32>
    %cst_256 = arith.constant 0.000000e+00 : f32
    %247 = vector.broadcast %cst_256 : f32 to vector<4x128xf32>
    %248 = arith.maximumf %246, %247 : vector<4x128xf32>
    %249 = arith.truncf %248 : vector<4x128xf32> to vector<4x128xbf16>
    %c3_257 = arith.constant 3 : index
    %c0_258 = arith.constant 0 : index
    %c0_259 = arith.constant 0 : index
    %250 = vector.load %arg8[%c3_257, %c0_258, %c0_259] : memref<6x128x128xbf16, #tpu.memory_space<vmem>>, vector<1x128x128xbf16>
    %251 = vector.shape_cast %250 : vector<1x128x128xbf16> to vector<128x128xbf16>
    %cst_260 = arith.constant dense<0.000000e+00> : vector<4x128xf32>
    %252 = tpu.matmul %249, %251, %cst_260 {dimension_numbers = #tpu.dot_dimension_numbers<[1], [0], [0], [1], [0, 0, 1, 1], [], []>} : vector<4x128xbf16>, vector<128x128xbf16>, vector<4x128xf32> -> vector<4x128xf32>
    %c3_261 = arith.constant 3 : index
    %c0_262 = arith.constant 0 : index
    %c0_263 = arith.constant 0 : index
    %253 = vector.load %arg9[%c3_261, %c0_262, %c0_263] : memref<6x1x128xf32, #tpu.memory_space<vmem>>, vector<1x1x128xf32>
    %254 = vector.shape_cast %253 : vector<1x1x128xf32> to vector<1x128xf32>
    %255 = vector.broadcast %254 : vector<1x128xf32> to vector<4x128xf32>
    %256 = arith.addf %252, %255 : vector<4x128xf32>
    %c16_264 = arith.constant 16 : index
    %c0_265 = arith.constant 0 : index
    %257 = vector.load %arg13[%c16_264, %c0_265] : memref<48x128xf32, #tpu.memory_space<vmem>>, vector<4x128xf32>
    %258 = arith.addf %256, %257 : vector<4x128xf32>
    %c16_266 = arith.constant 16 : index
    %c0_267 = arith.constant 0 : index
    %259 = vector.load %arg14[%c16_266, %c0_267] : memref<48x128xf32, #tpu.memory_space<vmem>>, vector<4x128xf32>
    tpu.vector_store %arg14[%c16_266, %c0_267], %258 {strides = array<i32>} : memref<48x128xf32, #tpu.memory_space<vmem>>, vector<4x128xf32>,
    %c16_268 = arith.constant 16 : index
    %c0_269 = arith.constant 0 : index
    %260 = vector.load %arg14[%c16_268, %c0_269] : memref<48x128xf32, #tpu.memory_space<vmem>>, vector<4x128xf32>
    %cst_270 = arith.constant 0.000000e+00 : f32
    %261 = vector.broadcast %cst_270 : f32 to vector<4x128xf32>
    %262 = arith.maximumf %260, %261 : vector<4x128xf32>
    %c16_271 = arith.constant 16 : index
    %c0_272 = arith.constant 0 : index
    %263 = vector.load %arg13[%c16_271, %c0_272] : memref<48x128xf32, #tpu.memory_space<vmem>>, vector<4x128xf32>
    tpu.vector_store %arg13[%c16_271, %c0_272], %262 {strides = array<i32>} : memref<48x128xf32, #tpu.memory_space<vmem>>, vector<4x128xf32>,
    %c4 = arith.constant 4 : index
    %c0_273 = arith.constant 0 : index
    %c0_274 = arith.constant 0 : index
    %264 = vector.load %arg7[%c4, %c0_273, %c0_274] : memref<6x1x128xf32, #tpu.memory_space<vmem>>, vector<1x1x128xf32>
    %265 = vector.shape_cast %264 : vector<1x1x128xf32> to vector<1x128xf32>
    %cst_275 = arith.constant 0.000000e+00 : f32
    %266 = vector.broadcast %cst_275 : f32 to vector<4x128xf32>
    %267 = vector.broadcast %265 : vector<1x128xf32> to vector<4x128xf32>
    %268 = arith.addf %266, %267 : vector<4x128xf32>
    %c13_276 = arith.constant 13 : index
    %c0_277 = arith.constant 0 : index
    %269 = vector.load %arg13[%c13_276, %c0_277] : memref<48x128xf32, #tpu.memory_space<vmem>>, vector<4x128xf32>
    %270 = arith.truncf %269 : vector<4x128xf32> to vector<4x128xbf16>
    %c4_278 = arith.constant 4 : index
    %c0_279 = arith.constant 0 : index
    %c0_280 = arith.constant 0 : index
    %c0_281 = arith.constant 0 : index
    %271 = vector.load %arg6[%c4_278, %c0_279, %c0_280, %c0_281] : memref<6x3x128x128xbf16, #tpu.memory_space<vmem>>, vector<1x1x128x128xbf16>
    %272 = vector.shape_cast %271 : vector<1x1x128x128xbf16> to vector<128x128xbf16>
    %cst_282 = arith.constant dense<0.000000e+00> : vector<4x128xf32>
    %273 = tpu.matmul %270, %272, %cst_282 {dimension_numbers = #tpu.dot_dimension_numbers<[1], [0], [0], [1], [0, 0, 1, 1], [], []>} : vector<4x128xbf16>, vector<128x128xbf16>, vector<4x128xf32> -> vector<4x128xf32>
    %274 = arith.addf %268, %273 : vector<4x128xf32>
    %c16_283 = arith.constant 16 : index
    %c0_284 = arith.constant 0 : index
    %275 = vector.load %arg13[%c16_283, %c0_284] : memref<48x128xf32, #tpu.memory_space<vmem>>, vector<4x128xf32>
    %276 = arith.truncf %275 : vector<4x128xf32> to vector<4x128xbf16>
    %c4_285 = arith.constant 4 : index
    %c1_286 = arith.constant 1 : index
    %c0_287 = arith.constant 0 : index
    %c0_288 = arith.constant 0 : index
    %277 = vector.load %arg6[%c4_285, %c1_286, %c0_287, %c0_288] : memref<6x3x128x128xbf16, #tpu.memory_space<vmem>>, vector<1x1x128x128xbf16>
    %278 = vector.shape_cast %277 : vector<1x1x128x128xbf16> to vector<128x128xbf16>
    %cst_289 = arith.constant dense<0.000000e+00> : vector<4x128xf32>
    %279 = tpu.matmul %276, %278, %cst_289 {dimension_numbers = #tpu.dot_dimension_numbers<[1], [0], [0], [1], [0, 0, 1, 1], [], []>} : vector<4x128xbf16>, vector<128x128xbf16>, vector<4x128xf32> -> vector<4x128xf32>
    %280 = arith.addf %274, %279 : vector<4x128xf32>
    %c19_290 = arith.constant 19 : index
    %c0_291 = arith.constant 0 : index
    %281 = vector.load %arg13[%c19_290, %c0_291] : memref<48x128xf32, #tpu.memory_space<vmem>>, vector<4x128xf32>
    %282 = arith.truncf %281 : vector<4x128xf32> to vector<4x128xbf16>
    %c4_292 = arith.constant 4 : index
    %c2_293 = arith.constant 2 : index
    %c0_294 = arith.constant 0 : index
    %c0_295 = arith.constant 0 : index
    %283 = vector.load %arg6[%c4_292, %c2_293, %c0_294, %c0_295] : memref<6x3x128x128xbf16, #tpu.memory_space<vmem>>, vector<1x1x128x128xbf16>
    %284 = vector.shape_cast %283 : vector<1x1x128x128xbf16> to vector<128x128xbf16>
    %cst_296 = arith.constant dense<0.000000e+00> : vector<4x128xf32>
    %285 = tpu.matmul %282, %284, %cst_296 {dimension_numbers = #tpu.dot_dimension_numbers<[1], [0], [0], [1], [0, 0, 1, 1], [], []>} : vector<4x128xbf16>, vector<128x128xbf16>, vector<4x128xf32> -> vector<4x128xf32>
    %286 = arith.addf %280, %285 : vector<4x128xf32>
    %cst_297 = arith.constant 0.000000e+00 : f32
    %287 = vector.broadcast %cst_297 : f32 to vector<4x128xf32>
    %288 = arith.maximumf %286, %287 : vector<4x128xf32>
    %289 = arith.truncf %288 : vector<4x128xf32> to vector<4x128xbf16>
    %c4_298 = arith.constant 4 : index
    %c0_299 = arith.constant 0 : index
    %c0_300 = arith.constant 0 : index
    %290 = vector.load %arg8[%c4_298, %c0_299, %c0_300] : memref<6x128x128xbf16, #tpu.memory_space<vmem>>, vector<1x128x128xbf16>
    %291 = vector.shape_cast %290 : vector<1x128x128xbf16> to vector<128x128xbf16>
    %cst_301 = arith.constant dense<0.000000e+00> : vector<4x128xf32>
    %292 = tpu.matmul %289, %291, %cst_301 {dimension_numbers = #tpu.dot_dimension_numbers<[1], [0], [0], [1], [0, 0, 1, 1], [], []>} : vector<4x128xbf16>, vector<128x128xbf16>, vector<4x128xf32> -> vector<4x128xf32>
    %c4_302 = arith.constant 4 : index
    %c0_303 = arith.constant 0 : index
    %c0_304 = arith.constant 0 : index
    %293 = vector.load %arg9[%c4_302, %c0_303, %c0_304] : memref<6x1x128xf32, #tpu.memory_space<vmem>>, vector<1x1x128xf32>
    %294 = vector.shape_cast %293 : vector<1x1x128xf32> to vector<1x128xf32>
    %295 = vector.broadcast %294 : vector<1x128xf32> to vector<4x128xf32>
    %296 = arith.addf %292, %295 : vector<4x128xf32>
    %c16_305 = arith.constant 16 : index
    %c0_306 = arith.constant 0 : index
    %297 = vector.load %arg14[%c16_305, %c0_306] : memref<48x128xf32, #tpu.memory_space<vmem>>, vector<4x128xf32>
    %298 = arith.addf %296, %297 : vector<4x128xf32>
    %c16_307 = arith.constant 16 : index
    %c0_308 = arith.constant 0 : index
    %299 = vector.load %arg13[%c16_307, %c0_308] : memref<48x128xf32, #tpu.memory_space<vmem>>, vector<4x128xf32>
    tpu.vector_store %arg13[%c16_307, %c0_308], %298 {strides = array<i32>} : memref<48x128xf32, #tpu.memory_space<vmem>>, vector<4x128xf32>,
    %c16_309 = arith.constant 16 : index
    %c0_310 = arith.constant 0 : index
    %300 = vector.load %arg13[%c16_309, %c0_310] : memref<48x128xf32, #tpu.memory_space<vmem>>, vector<4x128xf32>
    %cst_311 = arith.constant 0.000000e+00 : f32
    %301 = vector.broadcast %cst_311 : f32 to vector<4x128xf32>
    %302 = arith.maximumf %300, %301 : vector<4x128xf32>
    %c16_312 = arith.constant 16 : index
    %c0_313 = arith.constant 0 : index
    %303 = vector.load %arg14[%c16_312, %c0_313] : memref<48x128xf32, #tpu.memory_space<vmem>>, vector<4x128xf32>
    tpu.vector_store %arg14[%c16_312, %c0_313], %302 {strides = array<i32>} : memref<48x128xf32, #tpu.memory_space<vmem>>, vector<4x128xf32>,
    %c5 = arith.constant 5 : index
    %c0_314 = arith.constant 0 : index
    %c0_315 = arith.constant 0 : index
    %304 = vector.load %arg7[%c5, %c0_314, %c0_315] : memref<6x1x128xf32, #tpu.memory_space<vmem>>, vector<1x1x128xf32>
    %305 = vector.shape_cast %304 : vector<1x1x128xf32> to vector<1x128xf32>
    %cst_316 = arith.constant 0.000000e+00 : f32
    %306 = vector.broadcast %cst_316 : f32 to vector<4x128xf32>
    %307 = vector.broadcast %305 : vector<1x128xf32> to vector<4x128xf32>
    %308 = arith.addf %306, %307 : vector<4x128xf32>
    %c15_317 = arith.constant 15 : index
    %c0_318 = arith.constant 0 : index
    %309 = vector.load %arg14[%c15_317, %c0_318] : memref<48x128xf32, #tpu.memory_space<vmem>>, vector<4x128xf32>
    %310 = arith.truncf %309 : vector<4x128xf32> to vector<4x128xbf16>
    %c5_319 = arith.constant 5 : index
    %c0_320 = arith.constant 0 : index
    %c0_321 = arith.constant 0 : index
    %c0_322 = arith.constant 0 : index
    %311 = vector.load %arg6[%c5_319, %c0_320, %c0_321, %c0_322] : memref<6x3x128x128xbf16, #tpu.memory_space<vmem>>, vector<1x1x128x128xbf16>
    %312 = vector.shape_cast %311 : vector<1x1x128x128xbf16> to vector<128x128xbf16>
    %cst_323 = arith.constant dense<0.000000e+00> : vector<4x128xf32>
    %313 = tpu.matmul %310, %312, %cst_323 {dimension_numbers = #tpu.dot_dimension_numbers<[1], [0], [0], [1], [0, 0, 1, 1], [], []>} : vector<4x128xbf16>, vector<128x128xbf16>, vector<4x128xf32> -> vector<4x128xf32>
    %314 = arith.addf %308, %313 : vector<4x128xf32>
    %c16_324 = arith.constant 16 : index
    %c0_325 = arith.constant 0 : index
    %315 = vector.load %arg14[%c16_324, %c0_325] : memref<48x128xf32, #tpu.memory_space<vmem>>, vector<4x128xf32>
    %316 = arith.truncf %315 : vector<4x128xf32> to vector<4x128xbf16>
    %c5_326 = arith.constant 5 : index
    %c1_327 = arith.constant 1 : index
    %c0_328 = arith.constant 0 : index
    %c0_329 = arith.constant 0 : index
    %317 = vector.load %arg6[%c5_326, %c1_327, %c0_328, %c0_329] : memref<6x3x128x128xbf16, #tpu.memory_space<vmem>>, vector<1x1x128x128xbf16>
    %318 = vector.shape_cast %317 : vector<1x1x128x128xbf16> to vector<128x128xbf16>
    %cst_330 = arith.constant dense<0.000000e+00> : vector<4x128xf32>
    %319 = tpu.matmul %316, %318, %cst_330 {dimension_numbers = #tpu.dot_dimension_numbers<[1], [0], [0], [1], [0, 0, 1, 1], [], []>} : vector<4x128xbf16>, vector<128x128xbf16>, vector<4x128xf32> -> vector<4x128xf32>
    %320 = arith.addf %314, %319 : vector<4x128xf32>
    %c17_331 = arith.constant 17 : index
    %c0_332 = arith.constant 0 : index
    %321 = vector.load %arg14[%c17_331, %c0_332] : memref<48x128xf32, #tpu.memory_space<vmem>>, vector<4x128xf32>
    %322 = arith.truncf %321 : vector<4x128xf32> to vector<4x128xbf16>
    %c5_333 = arith.constant 5 : index
    %c2_334 = arith.constant 2 : index
    %c0_335 = arith.constant 0 : index
    %c0_336 = arith.constant 0 : index
    %323 = vector.load %arg6[%c5_333, %c2_334, %c0_335, %c0_336] : memref<6x3x128x128xbf16, #tpu.memory_space<vmem>>, vector<1x1x128x128xbf16>
    %324 = vector.shape_cast %323 : vector<1x1x128x128xbf16> to vector<128x128xbf16>
    %cst_337 = arith.constant dense<0.000000e+00> : vector<4x128xf32>
    %325 = tpu.matmul %322, %324, %cst_337 {dimension_numbers = #tpu.dot_dimension_numbers<[1], [0], [0], [1], [0, 0, 1, 1], [], []>} : vector<4x128xbf16>, vector<128x128xbf16>, vector<4x128xf32> -> vector<4x128xf32>
    %326 = arith.addf %320, %325 : vector<4x128xf32>
    %cst_338 = arith.constant 0.000000e+00 : f32
    %327 = vector.broadcast %cst_338 : f32 to vector<4x128xf32>
    %328 = arith.maximumf %326, %327 : vector<4x128xf32>
    %329 = arith.truncf %328 : vector<4x128xf32> to vector<4x128xbf16>
    %c5_339 = arith.constant 5 : index
    %c0_340 = arith.constant 0 : index
    %c0_341 = arith.constant 0 : index
    %330 = vector.load %arg8[%c5_339, %c0_340, %c0_341] : memref<6x128x128xbf16, #tpu.memory_space<vmem>>, vector<1x128x128xbf16>
    %331 = vector.shape_cast %330 : vector<1x128x128xbf16> to vector<128x128xbf16>
    %cst_342 = arith.constant dense<0.000000e+00> : vector<4x128xf32>
    %332 = tpu.matmul %329, %331, %cst_342 {dimension_numbers = #tpu.dot_dimension_numbers<[1], [0], [0], [1], [0, 0, 1, 1], [], []>} : vector<4x128xbf16>, vector<128x128xbf16>, vector<4x128xf32> -> vector<4x128xf32>
    %c5_343 = arith.constant 5 : index
    %c0_344 = arith.constant 0 : index
    %c0_345 = arith.constant 0 : index
    %333 = vector.load %arg9[%c5_343, %c0_344, %c0_345] : memref<6x1x128xf32, #tpu.memory_space<vmem>>, vector<1x1x128xf32>
    %334 = vector.shape_cast %333 : vector<1x1x128xf32> to vector<1x128xf32>
    %335 = vector.broadcast %334 : vector<1x128xf32> to vector<4x128xf32>
    %336 = arith.addf %332, %335 : vector<4x128xf32>
    %c16_346 = arith.constant 16 : index
    %c0_347 = arith.constant 0 : index
    %337 = vector.load %arg13[%c16_346, %c0_347] : memref<48x128xf32, #tpu.memory_space<vmem>>, vector<4x128xf32>
    %338 = arith.addf %336, %337 : vector<4x128xf32>
    %c16_348 = arith.constant 16 : index
    %c0_349 = arith.constant 0 : index
    %339 = vector.load %arg14[%c16_348, %c0_349] : memref<48x128xf32, #tpu.memory_space<vmem>>, vector<4x128xf32>
    tpu.vector_store %arg14[%c16_348, %c0_349], %338 {strides = array<i32>} : memref<48x128xf32, #tpu.memory_space<vmem>>, vector<4x128xf32>,
    %c0_350 = arith.constant 0 : index
    %c0_351 = arith.constant 0 : index
    %340 = vector.load %arg11[%c0_350, %c0_351] : memref<1x128xf32, #tpu.memory_space<vmem>>, vector<1x128xf32>
    %cst_352 = arith.constant 0.000000e+00 : f32
    %341 = vector.broadcast %cst_352 : f32 to vector<4x128xf32>
    %342 = vector.broadcast %340 : vector<1x128xf32> to vector<4x128xf32>
    %343 = arith.addf %341, %342 : vector<4x128xf32>
    %c15_353 = arith.constant 15 : index
    %c0_354 = arith.constant 0 : index
    %344 = vector.load %arg14[%c15_353, %c0_354] : memref<48x128xf32, #tpu.memory_space<vmem>>, vector<4x128xf32>
    %345 = arith.truncf %344 : vector<4x128xf32> to vector<4x128xbf16>
    %c0_355 = arith.constant 0 : index
    %c0_356 = arith.constant 0 : index
    %c0_357 = arith.constant 0 : index
    %346 = vector.load %arg10[%c0_355, %c0_356, %c0_357] : memref<3x128x128xbf16, #tpu.memory_space<vmem>>, vector<1x128x128xbf16>
    %347 = vector.shape_cast %346 : vector<1x128x128xbf16> to vector<128x128xbf16>
    %cst_358 = arith.constant dense<0.000000e+00> : vector<4x128xf32>
    %348 = tpu.matmul %345, %347, %cst_358 {dimension_numbers = #tpu.dot_dimension_numbers<[1], [0], [0], [1], [0, 0, 1, 1], [], []>} : vector<4x128xbf16>, vector<128x128xbf16>, vector<4x128xf32> -> vector<4x128xf32>
    %349 = arith.addf %343, %348 : vector<4x128xf32>
    %c16_359 = arith.constant 16 : index
    %c0_360 = arith.constant 0 : index
    %350 = vector.load %arg14[%c16_359, %c0_360] : memref<48x128xf32, #tpu.memory_space<vmem>>, vector<4x128xf32>
    %351 = arith.truncf %350 : vector<4x128xf32> to vector<4x128xbf16>
    %c1_361 = arith.constant 1 : index
    %c0_362 = arith.constant 0 : index
    %c0_363 = arith.constant 0 : index
    %352 = vector.load %arg10[%c1_361, %c0_362, %c0_363] : memref<3x128x128xbf16, #tpu.memory_space<vmem>>, vector<1x128x128xbf16>
    %353 = vector.shape_cast %352 : vector<1x128x128xbf16> to vector<128x128xbf16>
    %cst_364 = arith.constant dense<0.000000e+00> : vector<4x128xf32>
    %354 = tpu.matmul %351, %353, %cst_364 {dimension_numbers = #tpu.dot_dimension_numbers<[1], [0], [0], [1], [0, 0, 1, 1], [], []>} : vector<4x128xbf16>, vector<128x128xbf16>, vector<4x128xf32> -> vector<4x128xf32>
    %355 = arith.addf %349, %354 : vector<4x128xf32>
    %c17_365 = arith.constant 17 : index
    %c0_366 = arith.constant 0 : index
    %356 = vector.load %arg14[%c17_365, %c0_366] : memref<48x128xf32, #tpu.memory_space<vmem>>, vector<4x128xf32>
    %357 = arith.truncf %356 : vector<4x128xf32> to vector<4x128xbf16>
    %c2_367 = arith.constant 2 : index
    %c0_368 = arith.constant 0 : index
    %c0_369 = arith.constant 0 : index
    %358 = vector.load %arg10[%c2_367, %c0_368, %c0_369] : memref<3x128x128xbf16, #tpu.memory_space<vmem>>, vector<1x128x128xbf16>
    %359 = vector.shape_cast %358 : vector<1x128x128xbf16> to vector<128x128xbf16>
    %cst_370 = arith.constant dense<0.000000e+00> : vector<4x128xf32>
    %360 = tpu.matmul %357, %359, %cst_370 {dimension_numbers = #tpu.dot_dimension_numbers<[1], [0], [0], [1], [0, 0, 1, 1], [], []>} : vector<4x128xbf16>, vector<128x128xbf16>, vector<4x128xf32> -> vector<4x128xf32>
    %361 = arith.addf %355, %360 : vector<4x128xf32>
    %c0_371 = arith.constant 0 : index
    %c0_372 = arith.constant 0 : index
    %c0_373 = arith.constant 0 : index
    %362 = vector.load %arg12[%c0_371, %c0_372, %c0_373] : memref<1x4x128xf32, #tpu.memory_space<vmem>>, vector<1x4x128xf32>
    %363 = vector.shape_cast %362 : vector<1x4x128xf32> to vector<4x128xf32>
    %364 = vector.shape_cast %361 : vector<4x128xf32> to vector<1x4x128xf32>
    tpu.vector_store %arg12[%c0_371, %c0_372, %c0_373], %364 {strides = array<i32>} : memref<1x4x128xf32, #tpu.memory_space<vmem>>, vector<1x4x128xf32>,
    return
  }
  func.func @transform_0(%arg0: i32) -> (i32, i32, i32) {
    %c0_i32 = arith.constant 0 : i32
    %c0_i32_0 = arith.constant 0 : i32
    %c0_i32_1 = arith.constant 0 : i32
    return %arg0, %c0_i32, %c0_i32_0 : i32, i32, i32
  }
  func.func @transform_1(%arg0: i32) -> (i32, i32, i32) {
    %c0_i32 = arith.constant 0 : i32
    %c0_i32_0 = arith.constant 0 : i32
    %c0_i32_1 = arith.constant 0 : i32
    %c0_i32_2 = arith.constant 0 : i32
    return %c0_i32, %c0_i32_0, %c0_i32_1 : i32, i32, i32
  }
  func.func @transform_2(%arg0: i32) -> (i32, i32) {
    %c0_i32 = arith.constant 0 : i32
    %c0_i32_0 = arith.constant 0 : i32
    %c0_i32_1 = arith.constant 0 : i32
    return %c0_i32, %c0_i32_0 : i32, i32
  }
  func.func @transform_3(%arg0: i32) -> (i32, i32, i32, i32) {
    %c0_i32 = arith.constant 0 : i32
    %c0_i32_0 = arith.constant 0 : i32
    %c0_i32_1 = arith.constant 0 : i32
    %c0_i32_2 = arith.constant 0 : i32
    %c0_i32_3 = arith.constant 0 : i32
    return %c0_i32, %c0_i32_0, %c0_i32_1, %c0_i32_2 : i32, i32, i32, i32
  }
  func.func @transform_4(%arg0: i32) -> (i32, i32, i32) {
    %c0_i32 = arith.constant 0 : i32
    %c0_i32_0 = arith.constant 0 : i32
    %c0_i32_1 = arith.constant 0 : i32
    %c0_i32_2 = arith.constant 0 : i32
    return %c0_i32, %c0_i32_0, %c0_i32_1 : i32, i32, i32
  }
  func.func @transform_5(%arg0: i32) -> (i32, i32, i32, i32) {
    %c0_i32 = arith.constant 0 : i32
    %c0_i32_0 = arith.constant 0 : i32
    %c0_i32_1 = arith.constant 0 : i32
    %c0_i32_2 = arith.constant 0 : i32
    %c0_i32_3 = arith.constant 0 : i32
    return %c0_i32, %c0_i32_0, %c0_i32_1, %c0_i32_2 : i32, i32, i32, i32
  }
  func.func @transform_6(%arg0: i32) -> (i32, i32, i32) {
    %c0_i32 = arith.constant 0 : i32
    %c0_i32_0 = arith.constant 0 : i32
    %c0_i32_1 = arith.constant 0 : i32
    %c0_i32_2 = arith.constant 0 : i32
    return %c0_i32, %c0_i32_0, %c0_i32_1 : i32, i32, i32
  }
  func.func @transform_7(%arg0: i32) -> (i32, i32, i32) {
    %c0_i32 = arith.constant 0 : i32
    %c0_i32_0 = arith.constant 0 : i32
    %c0_i32_1 = arith.constant 0 : i32
    %c0_i32_2 = arith.constant 0 : i32
    return %c0_i32, %c0_i32_0, %c0_i32_1 : i32, i32, i32
  }
  func.func @transform_8(%arg0: i32) -> (i32, i32, i32) {
    %c0_i32 = arith.constant 0 : i32
    %c0_i32_0 = arith.constant 0 : i32
    %c0_i32_1 = arith.constant 0 : i32
    %c0_i32_2 = arith.constant 0 : i32
    return %c0_i32, %c0_i32_0, %c0_i32_1 : i32, i32, i32
  }
  func.func @transform_9(%arg0: i32) -> (i32, i32, i32) {
    %c0_i32 = arith.constant 0 : i32
    %c0_i32_0 = arith.constant 0 : i32
    %c0_i32_1 = arith.constant 0 : i32
    %c0_i32_2 = arith.constant 0 : i32
    return %c0_i32, %c0_i32_0, %c0_i32_1 : i32, i32, i32
  }
  func.func @transform_10(%arg0: i32) -> (i32, i32) {
    %c0_i32 = arith.constant 0 : i32
    %c0_i32_0 = arith.constant 0 : i32
    %c0_i32_1 = arith.constant 0 : i32
    return %c0_i32, %c0_i32_0 : i32, i32
  }
  func.func @transform_11(%arg0: i32) -> (i32, i32, i32) {
    %c0_i32 = arith.constant 0 : i32
    %c0_i32_0 = arith.constant 0 : i32
    %c0_i32_1 = arith.constant 0 : i32
    return %arg0, %c0_i32, %c0_i32_0 : i32, i32, i32
  }
}

</mosaic_0001>

<llo_original>
// kernel: tpu_custom_call.1
$region0: #{tpu_custom_call.1}
  #allocation0 [shape = 'u32[]', space=smem, size = 0x4, offset = 0x4, fixed_abs, tag = 'smem constant byte address 0x4 - core index']
  #allocation1 [shape = 'u32[144,128]{1,0:T(1,128)}', space=vmem, size = 0x12000, scoped, tag = 'internal scratch']
  #allocation2 [shape = 'f32[48,128]{1,0:T(8,128)}', space=vmem, size = 0x6000, scoped, tag = 'scratch operand']
  #allocation3 [shape = 'f32[48,128]{1,0:T(8,128)}', space=vmem, size = 0x6000, scoped, tag = 'scratch operand']
  %s0 = inlined_call_operand.hbm [shape: f32[2,16,128], index: 0, kind: input, shape index: {}]
  %s1 = inlined_call_operand.hbm [shape: bf16[3,128,128], index: 1, kind: input, shape index: {}]
  %s2 = inlined_call_operand.hbm [shape: f32[1,128], index: 2, kind: input, shape index: {}]
  %s3 = inlined_call_operand.hbm [shape: bf16[2,4,128,128], index: 3, kind: input, shape index: {}]
  %s4 = inlined_call_operand.hbm [shape: f32[2,1,128], index: 4, kind: input, shape index: {}]
  %s5 = inlined_call_operand.hbm [shape: bf16[6,3,128,128], index: 5, kind: input, shape index: {}]
  %s6 = inlined_call_operand.vmem [shape: f32[6,1,128], index: 6, kind: input, shape index: {}]
  %s7 = inlined_call_operand.hbm [shape: bf16[6,128,128], index: 7, kind: input, shape index: {}]
  %s8 = inlined_call_operand.vmem [shape: f32[6,1,128], index: 8, kind: input, shape index: {}]
  %s9 = inlined_call_operand.hbm [shape: bf16[3,128,128], index: 9, kind: input, shape index: {}]
  %s10 = inlined_call_operand.vmem [shape: f32[1,128], index: 10, kind: input, shape index: {}]
  %s11 = inlined_call_operand.hbm [shape: f32[2,4,128], index: 11, kind: output, shape index: {}]
  %s12 = sld [smem:[#allocation0]]
  $region109: #{tpu_custom_call.1} parent=0
    _
  %s14 = ssub.s32 1, %s12
  %s15 = scalar_select 0, %s14, %s12
  $region1: #{tpu_custom_call.1} parent=0
    #allocation4 [shape = 'u8[16384]{0}', space=vmem, size = 0x4000, scoped, tag = 'input window, operand 0']
    #allocation5 [shape = 's32[2]{0}', space=sflag, size = 0x8, scoped, tag = 'scoped memory for tpu_custom_call.1']
    #allocation6 [shape = 's32[2]{0}', space=sflag, size = 0x8, scoped, tag = 'scoped memory for tpu_custom_call.1']
    #allocation7 [shape = 'u8[98304]{0}', space=vmem, size = 0x18000, scoped, tag = 'input window, operand 1, single buffered']
    #allocation8 [shape = 's32[1]{0}', space=sflag, size = 0x4, scoped, tag = 'scoped memory for tpu_custom_call.1']
    #allocation9 [shape = 'u8[512]{0}', space=vmem, size = 0x400, scoped, tag = 'input window, operand 2, single buffered']
    #allocation10 [shape = 'u8[262144]{0}', space=vmem, size = 0x40000, scoped, tag = 'input window, operand 3, single buffered']
    #allocation11 [shape = 's32[1]{0}', space=sflag, size = 0x4, scoped, tag = 'scoped memory for tpu_custom_call.1']
    #allocation12 [shape = 'u8[1024]{0}', space=vmem, size = 0x400, scoped, tag = 'input window, operand 4, single buffered']
    #allocation13 [shape = 'u8[589824]{0}', space=vmem, size = 0x90000, scoped, tag = 'input window, operand 5, single buffered']
    #allocation14 [shape = 's32[1]{0}', space=sflag, size = 0x4, scoped, tag = 'scoped memory for tpu_custom_call.1']
    #allocation15 [shape = 'u8[196608]{0}', space=vmem, size = 0x30000, scoped, tag = 'input window, operand 7, single buffered']
    #allocation16 [shape = 'u8[98304]{0}', space=vmem, size = 0x18000, scoped, tag = 'input window, operand 9, single buffered']
    #allocation17 [shape = 's32[1]{0}', space=sflag, size = 0x4, scoped, tag = 'scoped memory for tpu_custom_call.1']
    #allocation18 [shape = 'u8[4096]{0}', space=vmem, size = 0x1000, scoped, tag = 'output window, operand 0']
    %16 = vsyncpa [#allocation5], 0
    %s17 = scalar_lea.sflag [#allocation5], 1
    %18 = vsyncpa %s17, 0
    %19 = vsyncpa [#allocation8], 0
    %20 = vsyncpa [#allocation11], 0
    %21 = vsyncpa [#allocation14], 0
    %22 = vsyncpa [#allocation17], 0
    %23 = vsyncpa [#allocation6], 0
    %s24 = scalar_lea.sflag [#allocation6], 1
    %25 = vsyncpa %s24, 0
    loop: start=0, step=1, limit=4
    $region2: #{tpu_custom_call.1} parent=1 // loop_pre_header
      _
    $region3: #{tpu_custom_call.1} parent=1 // loop_header
      %s27 = sphi 0, %s31
      %p28 = scmp.ge.s32.totalorder %s27, 4
      %s37 = sphi 0, %s39
      %s40 = sphi 0, %s37
      %s41 = sphi 0, %s40
      %s57 = sphi 0, %s41
      %s61 = sphi 0, %s61
      %s63 = sphi 0, %s61
      %s64 = sphi 0, %s63
      %s78 = sphi 0, %s64
      %s82 = sphi 0, %s82
      %s84 = sphi 0, %s82
      %s85 = sphi 0, %s84
      %s99 = sphi 0, %s85
      %s103 = sphi 0, %s103
      %s105 = sphi 0, %s103
      %s106 = sphi 0, %s105
      %s120 = sphi 0, %s106
      %s124 = sphi 0, %s124
      %s126 = sphi 0, %s124
      %s127 = sphi 0, %s126
      %s141 = sphi 0, %s127
      %s145 = sphi 0, %s145
      %s147 = sphi 0, %s145
      %s148 = sphi 0, %s147
      %s162 = sphi 0, %s148
      %s166 = sphi 0, %s166
      %s168 = sphi 0, %s166
      %s169 = sphi 0, %s168
      %s183 = sphi 0, %s169
      %s187 = sphi 0, %s187
      %s189 = sphi 0, %s187
      %s190 = sphi 0, %s189
      %s204 = sphi 0, %s190
      %s208 = sphi 0, %s208
      %s210 = sphi 0, %s208
      %s211 = sphi 0, %s210
      %s225 = sphi 0, %s211
      %s229 = sphi 0, %s229
      %s231 = sphi 0, %s229
      %s232 = sphi 0, %s231
      %s246 = sphi 0, %s232
      %s250 = sphi 0, %s250
      %s252 = sphi 0, %s250
      %s253 = sphi 0, %s252
      %s267 = sphi 0, %s253
      %s273 = sphi 0, %s275
      %s276 = sphi 0, %s273
      %s277 = sphi 0, %s276
      %s293 = sphi 0, %s277
    $region4: #{tpu_custom_call.1} parent=1 // loop_header_branch
      %30 = sbr.rel (%p28) target = $region8
    $region5: #{tpu_custom_call.1} parent=1 // loop_body
      %s32 = ssub.s32 %s27, 1
      %s33 = ssub.s32 %s27, 2
      %s34 = sadd.s32 %s27, 1
      %s35 = ssub.s32 %s27, %s34
      %p36 = scmp.eq.s32.totalorder %s35, 0
      %s38 = sadd.s32 %s37, 1
      %s39 = scalar_select %p36, %s37, %s38
      %p42 = pneg %p36
      %p43 = scmp.eq.s32.totalorder %s27, 1
      %p44 = por %p42, %p43
      %p45 = scmp.ne.s32.totalorder %s37, %s40
      %p46 = scmp.eq.s32.totalorder %s27, 0
      %p47 = por %p45, %p46
      %p48 = scmp.ne.s32.totalorder %s37, %s40
      %p49 = scmp.eq.s32.totalorder %s32, 1
      %p50 = por %p48, %p49
      %p51 = scmp.ne.s32.totalorder %s40, %s41
      %p52 = scmp.eq.s32.totalorder %s32, 0
      %p53 = por %p51, %p52
      %p54 = scmp.ne.s32.totalorder %s40, %s41
      %p55 = scmp.eq.s32.totalorder %s33, 1
      %p56 = por %p54, %p55
      %p58 = scmp.ne.s32.totalorder %s41, %s57
      %p59 = scmp.eq.s32.totalorder %s33, 0
      %p60 = por %p58, %p59
      %s62 = sadd.s32 %s61, 1
      %p65 = scmp.eq.s32.totalorder %s27, 1
      %p66 = scmp.ne.s32.totalorder %s61, %s63
      %p67 = scmp.eq.s32.totalorder %s27, 0
      %p68 = por %p66, %p67
      %p69 = scmp.ne.s32.totalorder %s61, %s63
      %p70 = scmp.eq.s32.totalorder %s32, 1
      %p71 = por %p69, %p70
      %p72 = scmp.ne.s32.totalorder %s63, %s64
      %p73 = scmp.eq.s32.totalorder %s32, 0
      %p74 = por %p72, %p73
      %p75 = scmp.ne.s32.totalorder %s63, %s64
      %p76 = scmp.eq.s32.totalorder %s33, 1
      %p77 = por %p75, %p76
      %p79 = scmp.ne.s32.totalorder %s64, %s78
      %p80 = scmp.eq.s32.totalorder %s33, 0
      %p81 = por %p79, %p80
      %s83 = sadd.s32 %s82, 1
      %p86 = scmp.eq.s32.totalorder %s27, 1
      %p87 = scmp.ne.s32.totalorder %s82, %s84
      %p88 = scmp.eq.s32.totalorder %s27, 0
      %p89 = por %p87, %p88
      %p90 = scmp.ne.s32.totalorder %s82, %s84
      %p91 = scmp.eq.s32.totalorder %s32, 1
      %p92 = por %p90, %p91
      %p93 = scmp.ne.s32.totalorder %s84, %s85
      %p94 = scmp.eq.s32.totalorder %s32, 0
      %p95 = por %p93, %p94
      %p96 = scmp.ne.s32.totalorder %s84, %s85
      %p97 = scmp.eq.s32.totalorder %s33, 1
      %p98 = por %p96, %p97
      %p100 = scmp.ne.s32.totalorder %s85, %s99
      %p101 = scmp.eq.s32.totalorder %s33, 0
      %p102 = por %p100, %p101
      %s104 = sadd.s32 %s103, 1
      %p107 = scmp.eq.s32.totalorder %s27, 1
      %p108 = scmp.ne.s32.totalorder %s103, %s105
      %p109 = scmp.eq.s32.totalorder %s27, 0
      %p110 = por %p108, %p109
      %p111 = scmp.ne.s32.totalorder %s103, %s105
      %p112 = scmp.eq.s32.totalorder %s32, 1
      %p113 = por %p111, %p112
      %p114 = scmp.ne.s32.totalorder %s105, %s106
      %p115 = scmp.eq.s32.totalorder %s32, 0
      %p116 = por %p114, %p115
      %p117 = scmp.ne.s32.totalorder %s105, %s106
      %p118 = scmp.eq.s32.totalorder %s33, 1
      %p119 = por %p117, %p118
      %p121 = scmp.ne.s32.totalorder %s106, %s120
      %p122 = scmp.eq.s32.totalorder %s33, 0
      %p123 = por %p121, %p122
      %s125 = sadd.s32 %s124, 1
      %p128 = scmp.eq.s32.totalorder %s27, 1
      %p129 = scmp.ne.s32.totalorder %s124, %s126
      %p130 = scmp.eq.s32.totalorder %s27, 0
      %p131 = por %p129, %p130
      %p132 = scmp.ne.s32.totalorder %s124, %s126
      %p133 = scmp.eq.s32.totalorder %s32, 1
      %p134 = por %p132, %p133
      %p135 = scmp.ne.s32.totalorder %s126, %s127
      %p136 = scmp.eq.s32.totalorder %s32, 0
      %p137 = por %p135, %p136
      %p138 = scmp.ne.s32.totalorder %s126, %s127
      %p139 = scmp.eq.s32.totalorder %s33, 1
      %p140 = por %p138, %p139
      %p142 = scmp.ne.s32.totalorder %s127, %s141
      %p143 = scmp.eq.s32.totalorder %s33, 0
      %p144 = por %p142, %p143
      %s146 = sadd.s32 %s145, 1
      %p149 = scmp.eq.s32.totalorder %s27, 1
      %p150 = scmp.ne.s32.totalorder %s145, %s147
      %p151 = scmp.eq.s32.totalorder %s27, 0
      %p152 = por %p150, %p151
      %p153 = scmp.ne.s32.totalorder %s145, %s147
      %p154 = scmp.eq.s32.totalorder %s32, 1
      %p155 = por %p153, %p154
      %p156 = scmp.ne.s32.totalorder %s147, %s148
      %p157 = scmp.eq.s32.totalorder %s32, 0
      %p158 = por %p156, %p157
      %p159 = scmp.ne.s32.totalorder %s147, %s148
      %p160 = scmp.eq.s32.totalorder %s33, 1
      %p161 = por %p159, %p160
      %p163 = scmp.ne.s32.totalorder %s148, %s162
      %p164 = scmp.eq.s32.totalorder %s33, 0
      %p165 = por %p163, %p164
      %s167 = sadd.s32 %s166, 1
      %p170 = scmp.eq.s32.totalorder %s27, 1
      %p171 = scmp.ne.s32.totalorder %s166, %s168
      %p172 = scmp.eq.s32.totalorder %s27, 0
      %p173 = por %p171, %p172
      %p174 = scmp.ne.s32.totalorder %s166, %s168
      %p175 = scmp.eq.s32.totalorder %s32, 1
      %p176 = por %p174, %p175
      %p177 = scmp.ne.s32.totalorder %s168, %s169
      %p178 = scmp.eq.s32.totalorder %s32, 0
      %p179 = por %p177, %p178
      %p180 = scmp.ne.s32.totalorder %s168, %s169
      %p181 = scmp.eq.s32.totalorder %s33, 1
      %p182 = por %p180, %p181
      %p184 = scmp.ne.s32.totalorder %s169, %s183
      %p185 = scmp.eq.s32.totalorder %s33, 0
      %p186 = por %p184, %p185
      %s188 = sadd.s32 %s187, 1
      %p191 = scmp.eq.s32.totalorder %s27, 1
      %p192 = scmp.ne.s32.totalorder %s187, %s189
      %p193 = scmp.eq.s32.totalorder %s27, 0
      %p194 = por %p192, %p193
      %p195 = scmp.ne.s32.totalorder %s187, %s189
      %p196 = scmp.eq.s32.totalorder %s32, 1
      %p197 = por %p195, %p196
      %p198 = scmp.ne.s32.totalorder %s189, %s190
      %p199 = scmp.eq.s32.totalorder %s32, 0
      %p200 = por %p198, %p199
      %p201 = scmp.ne.s32.totalorder %s189, %s190
      %p202 = scmp.eq.s32.totalorder %s33, 1
      %p203 = por %p201, %p202
      %p205 = scmp.ne.s32.totalorder %s190, %s204
      %p206 = scmp.eq.s32.totalorder %s33, 0
      %p207 = por %p205, %p206
      %s209 = sadd.s32 %s208, 1
      %p212 = scmp.eq.s32.totalorder %s27, 1
      %p213 = scmp.ne.s32.totalorder %s208, %s210
      %p214 = scmp.eq.s32.totalorder %s27, 0
      %p215 = por %p213, %p214
      %p216 = scmp.ne.s32.totalorder %s208, %s210
      %p217 = scmp.eq.s32.totalorder %s32, 1
      %p218 = por %p216, %p217
      %p219 = scmp.ne.s32.totalorder %s210, %s211
      %p220 = scmp.eq.s32.totalorder %s32, 0
      %p221 = por %p219, %p220
      %p222 = scmp.ne.s32.totalorder %s210, %s211
      %p223 = scmp.eq.s32.totalorder %s33, 1
      %p224 = por %p222, %p223
      %p226 = scmp.ne.s32.totalorder %s211, %s225
      %p227 = scmp.eq.s32.totalorder %s33, 0
      %p228 = por %p226, %p227
      %s230 = sadd.s32 %s229, 1
      %p233 = scmp.eq.s32.totalorder %s27, 1
      %p234 = scmp.ne.s32.totalorder %s229, %s231
      %p235 = scmp.eq.s32.totalorder %s27, 0
      %p236 = por %p234, %p235
      %p237 = scmp.ne.s32.totalorder %s229, %s231
      %p238 = scmp.eq.s32.totalorder %s32, 1
      %p239 = por %p237, %p238
      %p240 = scmp.ne.s32.totalorder %s231, %s232
      %p241 = scmp.eq.s32.totalorder %s32, 0
      %p242 = por %p240, %p241
      %p243 = scmp.ne.s32.totalorder %s231, %s232
      %p244 = scmp.eq.s32.totalorder %s33, 1
      %p245 = por %p243, %p244
      %p247 = scmp.ne.s32.totalorder %s232, %s246
      %p248 = scmp.eq.s32.totalorder %s33, 0
      %p249 = por %p247, %p248
      %s251 = sadd.s32 %s250, 1
      %p254 = scmp.eq.s32.totalorder %s27, 1
      %p255 = scmp.ne.s32.totalorder %s250, %s252
      %p256 = scmp.eq.s32.totalorder %s27, 0
      %p257 = por %p255, %p256
      %p258 = scmp.ne.s32.totalorder %s250, %s252
      %p259 = scmp.eq.s32.totalorder %s32, 1
      %p260 = por %p258, %p259
      %p261 = scmp.ne.s32.totalorder %s252, %s253
      %p262 = scmp.eq.s32.totalorder %s32, 0
      %p263 = por %p261, %p262
      %p264 = scmp.ne.s32.totalorder %s252, %s253
      %p265 = scmp.eq.s32.totalorder %s33, 1
      %p266 = por %p264, %p265
      %p268 = scmp.ne.s32.totalorder %s253, %s267
      %p269 = scmp.eq.s32.totalorder %s33, 0
      %p270 = por %p268, %p269
      %s271 = ssub.s32 %s27, %s34
      %p272 = scmp.eq.s32.totalorder %s271, 0
      %s274 = sadd.s32 %s273, 1
      %s275 = scalar_select %p272, %s273, %s274
      %p278 = pneg %p272
      %p279 = scmp.eq.s32.totalorder %s27, 1
      %p280 = por %p278, %p279
      %p281 = scmp.ne.s32.totalorder %s273, %s276
      %p282 = scmp.eq.s32.totalorder %s27, 0
      %p283 = por %p281, %p282
      %p284 = scmp.ne.s32.totalorder %s273, %s276
      %p285 = scmp.eq.s32.totalorder %s32, 1
      %p286 = por %p284, %p285
      %p287 = scmp.ne.s32.totalorder %s276, %s277
      %p288 = scmp.eq.s32.totalorder %s32, 0
      %p289 = por %p287, %p288
      %p290 = scmp.ne.s32.totalorder %s276, %s277
      %p291 = scmp.eq.s32.totalorder %s33, 1
      %p292 = por %p290, %p291
      %p294 = scmp.ne.s32.totalorder %s277, %s293
      %p295 = scmp.eq.s32.totalorder %s33, 0
      %p296 = por %p294, %p295
      %p297 = scmp.le.s32.totalorder 1, %s27
      %p298 = scmp.lt.s32.totalorder %s27, 3
      %p299 = pnand %p297, %p298
      %p300 = pneg %p299
      // Predicated region
      $region9: #{tpu_custom_call.1} parent=5 // pred_check
        _
      $region10: #{tpu_custom_call.1} parent=5 // pred_check_branch
        %302 = sbr.rel (%p299) target = $region12
      $region11: #{tpu_custom_call.1} parent=5 // pred_region
        %s303 = ssub.s32 %s27, 1
        // Predicated region
        $region13: #{tpu_custom_call.1} parent=11 // pred_check
          %p304 = pneg %p74
        $region14: #{tpu_custom_call.1} parent=11 // pred_check_branch
          %306 = sbr.rel (%p304) target = $region16
        $region15: #{tpu_custom_call.1} parent=11 // pred_region
          %s308 = ssub.s32 3072, 3072
          %309 = vsyncadd [#allocation8], %s308
          %s310 = sshll.u32 [#allocation7], 4
          %s311 = int_to_ptr.vmem [resolvable:$true] %s310
          %316 = dma.hbm_to_vmem [thread:$0]  %s1, 3072, %s311, [#allocation8], 64, 64, 4
        $region16: #{tpu_custom_call.1} parent=11 // pred_fallthru
          _
        // Predicated region
        $region17: #{tpu_custom_call.1} parent=11 // pred_check
          %p317 = pneg %p95
        $region18: #{tpu_custom_call.1} parent=11 // pred_check_branch
          %319 = sbr.rel (%p317) target = $region20
        $region19: #{tpu_custom_call.1} parent=11 // pred_region
          %s321 = ssub.s32 16, 16
          %322 = vsyncadd [#allocation8], %s321
          %s324 = sshll.u32 [#allocation9], 4
          %s325 = int_to_ptr.vmem [resolvable:$true] %s324
          %327 = dma.hbm_to_vmem [thread:$0]  %s2, 16, %s325, [#allocation8]
        $region20: #{tpu_custom_call.1} parent=11 // pred_fallthru
          _
        // Predicated region
        $region21: #{tpu_custom_call.1} parent=11 // pred_check
          %p328 = pneg %p116
        $region22: #{tpu_custom_call.1} parent=11 // pred_check_branch
          %330 = sbr.rel (%p328) target = $region24
        $region23: #{tpu_custom_call.1} parent=11 // pred_region
          %s332 = ssub.s32 8192, 8192
          %333 = vsyncadd [#allocation11], %s332
          %s334 = sshll.u32 [#allocation10], 4
          %s335 = int_to_ptr.vmem [resolvable:$true] %s334
          %340 = dma.hbm_to_vmem [thread:$0]  %s3, 8192, %s335, [#allocation11], 64, 64, 4
        $region24: #{tpu_custom_call.1} parent=11 // pred_fallthru
          _
        // Predicated region
        $region25: #{tpu_custom_call.1} parent=11 // pred_check
          %p341 = pneg %p137
        $region26: #{tpu_custom_call.1} parent=11 // pred_check_branch
          %343 = sbr.rel (%p341) target = $region28
        $region27: #{tpu_custom_call.1} parent=11 // pred_region
          %s345 = ssub.s32 32, 32
          %346 = vsyncadd [#allocation11], %s345
          %s347 = sshll.u32 [#allocation12], 4
          %s348 = int_to_ptr.vmem [resolvable:$true] %s347
          %353 = dma.hbm_to_vmem [thread:$0]  %s4, 32, %s348, [#allocation11], 16, 16, 1
        $region28: #{tpu_custom_call.1} parent=11 // pred_fallthru
          _
        // Predicated region
        $region29: #{tpu_custom_call.1} parent=11 // pred_check
          %p354 = pneg %p158
        $region30: #{tpu_custom_call.1} parent=11 // pred_check_branch
          %356 = sbr.rel (%p354) target = $region32
        $region31: #{tpu_custom_call.1} parent=11 // pred_region
          %s358 = ssub.s32 18432, 18432
          %359 = vsyncadd [#allocation14], %s358
          %s360 = sshll.u32 [#allocation13], 4
          %s361 = int_to_ptr.vmem [resolvable:$true] %s360
          %366 = dma.hbm_to_vmem [thread:$0]  %s5, 18432, %s361, [#allocation14], 64, 64, 4
        $region32: #{tpu_custom_call.1} parent=11 // pred_fallthru
          _
        // Predicated region
        $region33: #{tpu_custom_call.1} parent=11 // pred_check
          %p367 = pneg %p179
        $region34: #{tpu_custom_call.1} parent=11 // pred_check_branch
          %369 = sbr.rel (%p367) target = $region36
        $region35: #{tpu_custom_call.1} parent=11 // pred_region
          _
        $region36: #{tpu_custom_call.1} parent=11 // pred_fallthru
          _
        // Predicated region
        $region37: #{tpu_custom_call.1} parent=11 // pred_check
          %p370 = pneg %p200
        $region38: #{tpu_custom_call.1} parent=11 // pred_check_branch
          %372 = sbr.rel (%p370) target = $region40
        $region39: #{tpu_custom_call.1} parent=11 // pred_region
          %s374 = ssub.s32 6144, 6144
          %375 = vsyncadd [#allocation14], %s374
          %s376 = sshll.u32 [#allocation15], 4
          %s377 = int_to_ptr.vmem [resolvable:$true] %s376
          %382 = dma.hbm_to_vmem [thread:$0]  %s7, 6144, %s377, [#allocation14], 64, 64, 4
        $region40: #{tpu_custom_call.1} parent=11 // pred_fallthru
          _
        // Predicated region
        $region41: #{tpu_custom_call.1} parent=11 // pred_check
          %p383 = pneg %p221
        $region42: #{tpu_custom_call.1} parent=11 // pred_check_branch
          %385 = sbr.rel (%p383) target = $region44
        $region43: #{tpu_custom_call.1} parent=11 // pred_region
          _
        $region44: #{tpu_custom_call.1} parent=11 // pred_fallthru
          _
        // Predicated region
        $region45: #{tpu_custom_call.1} parent=11 // pred_check
          %p386 = pneg %p242
        $region46: #{tpu_custom_call.1} parent=11 // pred_check_branch
          %388 = sbr.rel (%p386) target = $region48
        $region47: #{tpu_custom_call.1} parent=11 // pred_region
          %s390 = ssub.s32 3072, 3072
          %391 = vsyncadd [#allocation17], %s390
          %s392 = sshll.u32 [#allocation16], 4
          %s393 = int_to_ptr.vmem [resolvable:$true] %s392
          %398 = dma.hbm_to_vmem [thread:$0]  %s9, 3072, %s393, [#allocation17], 64, 64, 4
        $region48: #{tpu_custom_call.1} parent=11 // pred_fallthru
          _
        // Predicated region
        $region49: #{tpu_custom_call.1} parent=11 // pred_check
          %p399 = pneg %p263
        $region50: #{tpu_custom_call.1} parent=11 // pred_check_branch
          %401 = sbr.rel (%p399) target = $region52
        $region51: #{tpu_custom_call.1} parent=11 // pred_region
          _
        $region52: #{tpu_custom_call.1} parent=11 // pred_fallthru
          _
      $region12: #{tpu_custom_call.1} parent=5 // pred_fallthru
        _
      %p402 = scmp.lt.s32.totalorder %s27, 2
      // Predicated region
      $region53: #{tpu_custom_call.1} parent=5 // pred_check
        %p403 = pneg %p402
      $region54: #{tpu_custom_call.1} parent=5 // pred_check_branch
        %405 = sbr.rel (%p403) target = $region56
      $region55: #{tpu_custom_call.1} parent=5 // pred_region
        // Predicated region
        $region57: #{tpu_custom_call.1} parent=55 // pred_check
          %p406 = pneg %p47
        $region58: #{tpu_custom_call.1} parent=55 // pred_check_branch
          %408 = sbr.rel (%p406) target = $region60
        $region59: #{tpu_custom_call.1} parent=55 // pred_region
          %s409 = sand.u32 %s37, 1
          %s410 = scalar_lea.sflag [#allocation5], %s409
          %s411 = sand.u32 %s37, 1
          %s412 = smul.addr %s411, 16
          %s413 = scalar_lea.vmem [#allocation4], %s412
          %s415 = ssub.s32 256, 256
          %416 = vsyncadd %s410, %s415
          %s417 = smul.addr %s27, 2
          %s418 = smul.addr %s417, 128
          %s419 = scalar_lea.hbm %s0, %s418
          %s420 = sshll.u32 %s413, 4
          %s421 = int_to_ptr.vmem [resolvable:$true] %s420
          %426 = dma.hbm_to_vmem [thread:$0]  %s419, 256, %s421, %s410, 128, 128, 8
        $region60: #{tpu_custom_call.1} parent=55 // pred_fallthru
          _
      $region56: #{tpu_custom_call.1} parent=5 // pred_fallthru
        _
      %p427 = scmp.le.s32.totalorder 1, %s27
      %p428 = scmp.lt.s32.totalorder %s27, 3
      %p429 = pnand %p427, %p428
      %p430 = pneg %p429
      // Predicated region
      $region61: #{tpu_custom_call.1} parent=5 // pred_check
        _
      $region62: #{tpu_custom_call.1} parent=5 // pred_check_branch
        %432 = sbr.rel (%p429) target = $region64
      $region63: #{tpu_custom_call.1} parent=5 // pred_region
        %s433 = ssub.s32 %s27, 1
        %s434 = sand.u32 %s40, 1
        %s435 = scalar_lea.sflag [#allocation5], %s434
        %s436 = sand.u32 %s40, 1
        %s437 = smul.addr %s436, 16
        %s438 = scalar_lea.vmem [#allocation4], %s437
        // Predicated region
        $region65: #{tpu_custom_call.1} parent=63 // pred_check
          %p439 = pneg %p53
        $region66: #{tpu_custom_call.1} parent=63 // pred_check_branch
          %441 = sbr.rel (%p439) target = $region68
        $region67: #{tpu_custom_call.1} parent=63 // pred_region
          %442 = dma.done %s435, 256
        $region68: #{tpu_custom_call.1} parent=63 // pred_fallthru
          _
        // Predicated region
        $region69: #{tpu_custom_call.1} parent=63 // pred_check
          %p443 = pneg %p74
        $region70: #{tpu_custom_call.1} parent=63 // pred_check_branch
          %445 = sbr.rel (%p443) target = $region72
        $region71: #{tpu_custom_call.1} parent=63 // pred_region
          %446 = dma.done [#allocation8], 3072
        $region72: #{tpu_custom_call.1} parent=63 // pred_fallthru
          _
        // Predicated region
        $region73: #{tpu_custom_call.1} parent=63 // pred_check
          %p447 = pneg %p95
        $region74: #{tpu_custom_call.1} parent=63 // pred_check_branch
          %449 = sbr.rel (%p447) target = $region76
        $region75: #{tpu_custom_call.1} parent=63 // pred_region
          %450 = dma.done [#allocation8], 16
        $region76: #{tpu_custom_call.1} parent=63 // pred_fallthru
          _
        // Predicated region
        $region77: #{tpu_custom_call.1} parent=63 // pred_check
          %p451 = pneg %p116
        $region78: #{tpu_custom_call.1} parent=63 // pred_check_branch
          %453 = sbr.rel (%p451) target = $region80
        $region79: #{tpu_custom_call.1} parent=63 // pred_region
          %454 = dma.done [#allocation11], 8192
        $region80: #{tpu_custom_call.1} parent=63 // pred_fallthru
          _
        // Predicated region
        $region81: #{tpu_custom_call.1} parent=63 // pred_check
          %p455 = pneg %p137
        $region82: #{tpu_custom_call.1} parent=63 // pred_check_branch
          %457 = sbr.rel (%p455) target = $region84
        $region83: #{tpu_custom_call.1} parent=63 // pred_region
          %458 = dma.done [#allocation11], 32
        $region84: #{tpu_custom_call.1} parent=63 // pred_fallthru
          _
        // Predicated region
        $region85: #{tpu_custom_call.1} parent=63 // pred_check
          %p459 = pneg %p158
        $region86: #{tpu_custom_call.1} parent=63 // pred_check_branch
          %461 = sbr.rel (%p459) target = $region88
        $region87: #{tpu_custom_call.1} parent=63 // pred_region
          %462 = dma.done [#allocation14], 18432
        $region88: #{tpu_custom_call.1} parent=63 // pred_fallthru
          _
        // Predicated region
        $region89: #{tpu_custom_call.1} parent=63 // pred_check
          %p463 = pneg %p200
        $region90: #{tpu_custom_call.1} parent=63 // pred_check_branch
          %465 = sbr.rel (%p463) target = $region92
        $region91: #{tpu_custom_call.1} parent=63 // pred_region
          %466 = dma.done [#allocation14], 6144
        $region92: #{tpu_custom_call.1} parent=63 // pred_fallthru
          _
        // Predicated region
        $region93: #{tpu_custom_call.1} parent=63 // pred_check
          %p467 = pneg %p242
        $region94: #{tpu_custom_call.1} parent=63 // pred_check_branch
          %469 = sbr.rel (%p467) target = $region96
        $region95: #{tpu_custom_call.1} parent=63 // pred_region
          %470 = dma.done [#allocation17], 3072
        $region96: #{tpu_custom_call.1} parent=63 // pred_fallthru
          _
        %s471 = sand.u32 %s40, 1
        %s472 = scalar_lea.sflag [#allocation5], %s471
        %s473 = sand.u32 %s40, 1
        %s474 = smul.addr %s473, 16
        %s475 = scalar_lea.vmem [#allocation4], %s474
        %p476 = pneg %p53
        %p477 = pneg %p50
        %p478 = pneg %p74
        %p479 = pneg %p71
        %p480 = pneg %p95
        %p481 = pneg %p92
        %p482 = pneg %p116
        %p483 = pneg %p113
        %p484 = pneg %p137
        %p485 = pneg %p134
        %p486 = pneg %p158
        %p487 = pneg %p155
        %p488 = pneg %p179
        %p489 = pneg %p176
        %p490 = pneg %p200
        %p491 = pneg %p197
        %p492 = pneg %p221
        %p493 = pneg %p218
        %p494 = pneg %p242
        %p495 = pneg %p239
        %p496 = pneg %p263
        %p497 = pneg %p260
        %p498 = pneg %p289
        %p499 = pneg %p286
        %s500 = sand.u32 %s276, 1
        %s501 = scalar_lea.sflag [#allocation6], %s500
        %s502 = sand.u32 %s276, 1
        %s503 = smul.addr %s502, 4
        %s504 = scalar_lea.vmem [#allocation18], %s503
        %506 = vst [vmem:[#allocation2] sm:$0xff] 0.0
        %507 = vst [vmem:[#allocation2 + $0x8] sm:$0xff] 0.0
        %508 = vst [vmem:[#allocation2 + $0x10] sm:$0xff] 0.0
        %509 = vst [vmem:[#allocation2 + $0x18] sm:$0xff] 0.0
        %510 = vst [vmem:[#allocation2 + $0x20] sm:$0xff] 0.0
        %511 = vst [vmem:[#allocation2 + $0x28] sm:$0xff] 0.0
        %512 = vst [vmem:[#allocation3] sm:$0xff] 0.0
        %513 = vst [vmem:[#allocation3 + $0x8] sm:$0xff] 0.0
        %514 = vst [vmem:[#allocation3 + $0x10] sm:$0xff] 0.0
        %515 = vst [vmem:[#allocation3 + $0x18] sm:$0xff] 0.0
        %516 = vst [vmem:[#allocation3 + $0x20] sm:$0xff] 0.0
        %517 = vst [vmem:[#allocation3 + $0x28] sm:$0xff] 0.0
        %v518 = vld [vmem:[%s438] sm:$0xff]
        %v519 = vld [vmem:[%s438 + $0x8] sm:$0xff]
        %520 = vst [vmem:[#allocation2 + $0x10] sm:$0xff] %v518
        %521 = vst [vmem:[#allocation2 + $0x18] sm:$0xff] %v519
        %v522 = vld [vmem:[#allocation9] sm:$0x1]
        %v524 = vlaneseq
        %v525 = vshrl.u32 %v524, 7
        %v526 = vsub.s32 0, %v525
        %v527 = vrot.slane %v522, %v526
        %v529 = vadd.f32 %v527, 0.0
        %v530 = vld [vmem:[#allocation2 + $0xf] sm:$0xff]
        %v531 = vld [vmem:[#allocation2 + $0x17] sm:$0xff]
        %v532 = vpack.c.bf16 %v531, %v530
        %v533 = vld [vmem:[#allocation7] sm:$0xf]
        %v534 = vld [vmem:[#allocation7 + $0x4] sm:$0xf]
        %v535 = vld [vmem:[#allocation7 + $0x8] sm:$0xf]
        %v536 = vld [vmem:[#allocation7 + $0xc] sm:$0xf]
        %v537 = vld [vmem:[#allocation7 + $0x10] sm:$0xf]
        %v538 = vld [vmem:[#allocation7 + $0x14] sm:$0xf]
        %v539 = vld [vmem:[#allocation7 + $0x18] sm:$0xf]
        %v540 = vld [vmem:[#allocation7 + $0x1c] sm:$0xf]
        %v541 = vld [vmem:[#allocation7 + $0x20] sm:$0xf]
        %v542 = vld [vmem:[#allocation7 + $0x24] sm:$0xf]
        %v543 = vld [vmem:[#allocation7 + $0x28] sm:$0xf]
        %v544 = vld [vmem:[#allocation7 + $0x2c] sm:$0xf]
        %v545 = vld [vmem:[#allocation7 + $0x30] sm:$0xf]
        %v546 = vld [vmem:[#allocation7 + $0x34] sm:$0xf]
        %v547 = vld [vmem:[#allocation7 + $0x38] sm:$0xf]
        %v548 = vld [vmem:[#allocation7 + $0x3c] sm:$0xf]
        %v565 = vunpack.c.l.b16 %v533
        %v566 = vunpack.c.l.b16 %v534
        %v567 = vunpack.c.l.b16 %v535
        %v568 = vunpack.c.l.b16 %v536
        %v569 = vunpack.c.l.b16 %v537
        %v570 = vunpack.c.l.b16 %v538
        %v571 = vunpack.c.l.b16 %v539
        %v572 = vunpack.c.l.b16 %v540
        %v573 = vunpack.c.l.b16 %v541
        %v574 = vunpack.c.l.b16 %v542
        %v575 = vunpack.c.l.b16 %v543
        %v576 = vunpack.c.l.b16 %v544
        %v577 = vunpack.c.l.b16 %v545
        %v578 = vunpack.c.l.b16 %v546
        %v579 = vunpack.c.l.b16 %v547
        %v580 = vunpack.c.l.b16 %v548
        %v581 = vpack.c.b16 %v566, %v565
        %v582 = vpack.c.b16 %v568, %v567
        %v583 = vpack.c.b16 %v570, %v569
        %v584 = vpack.c.b16 %v572, %v571
        %v585 = vpack.c.b16 %v574, %v573
        %v586 = vpack.c.b16 %v576, %v575
        %v587 = vpack.c.b16 %v578, %v577
        %v588 = vpack.c.b16 %v580, %v579
        %597 = vmatprep.subr.bf16.mxu0 0
        %598 = vmatpush1.bf16.msra.mxu0 %v588
        %599 = vmatprep.subr.bf16.mxu0 0
        %600 = vmatpush1.bf16.msra.mxu0 %v587
        %601 = vmatprep.subr.bf16.mxu0 0
        %602 = vmatpush1.bf16.msra.mxu0 %v586
        %603 = vmatprep.subr.bf16.mxu0 0
        %604 = vmatpush1.bf16.msra.mxu0 %v585
        %605 = vmatprep.subr.bf16.mxu0 0
        %606 = vmatpush1.bf16.msra.mxu0 %v584
        %607 = vmatprep.subr.bf16.mxu0 0
        %608 = vmatpush1.bf16.msra.mxu0 %v583
        %609 = vmatprep.subr.bf16.mxu0 0
        %610 = vmatpush1.bf16.msra.mxu0 %v582
        %611 = vmatprep.subr.bf16.mxu0 0
        %612 = vmatpush1.bf16.msra.mxu0 %v581
        %613 = vmatprep.subr.bf16.mxu0 0
        %614 = vmatpush2.bf16.msra.mxu0 0
        %615 = vmatprep.subr.bf16.mxu0 0
        %616 = vmatpush2.bf16.msra.mxu0 0
        %617 = vmatprep.subr.bf16.mxu0 0
        %618 = vmatpush2.bf16.msra.mxu0 0
        %619 = vmatprep.subr.bf16.mxu0 0
        %620 = vmatpush2.bf16.msra.mxu0 0
        %621 = vmatprep.subr.bf16.mxu0 0
        %622 = vmatpush2.bf16.msra.mxu0 0
        %623 = vmatprep.subr.bf16.mxu0 0
        %624 = vmatpush2.bf16.msra.mxu0 0
        %625 = vmatprep.subr.bf16.mxu0 0
        %626 = vmatpush2.bf16.msra.mxu0 0
        %627 = vmatprep.subr.bf16.mxu0 0
        %628 = vmatpush2.bf16.msra.mxu0 0
        %629 = vmatprep.mubr.bf16.mxu0 0
        %630 = vmatmul.mubr.bf16.gmra.mxu0 %v532
        %v631 = vpop.f32.mrf.mxu0
        %v632 = vadd.f32 0.0, %v631
        %v633 = vpop.f32.mrf.mxu0
        %v634 = vpop.f32.mrf.mxu0
        %v635 = vadd.f32 0.0, %v634
        %v636 = vpop.f32.mrf.mxu0
        %637 = vdwg.mxu0
        %v638 = vadd.f32 %v529, %v632
        %v639 = vadd.f32 %v529, %v635
        %v640 = vld [vmem:[#allocation2 + $0x10] sm:$0xff]
        %v641 = vld [vmem:[#allocation2 + $0x18] sm:$0xff]
        %v642 = vpack.c.bf16 %v641, %v640
        %s643 = scalar_lea.vmem [#allocation7], 64
        %v644 = vld [vmem:[%s643] sm:$0xf]
        %v645 = vld [vmem:[%s643 + $0x4] sm:$0xf]
        %v646 = vld [vmem:[%s643 + $0x8] sm:$0xf]
        %v647 = vld [vmem:[%s643 + $0xc] sm:$0xf]
        %v648 = vld [vmem:[%s643 + $0x10] sm:$0xf]
        %v649 = vld [vmem:[%s643 + $0x14] sm:$0xf]
        %v650 = vld [vmem:[%s643 + $0x18] sm:$0xf]
        %v651 = vld [vmem:[%s643 + $0x1c] sm:$0xf]
        %v652 = vld [vmem:[%s643 + $0x20] sm:$0xf]
        %v653 = vld [vmem:[%s643 + $0x24] sm:$0xf]
        %v654 = vld [vmem:[%s643 + $0x28] sm:$0xf]
        %v655 = vld [vmem:[%s643 + $0x2c] sm:$0xf]
        %v656 = vld [vmem:[%s643 + $0x30] sm:$0xf]
        %v657 = vld [vmem:[%s643 + $0x34] sm:$0xf]
        %v658 = vld [vmem:[%s643 + $0x38] sm:$0xf]
        %v659 = vld [vmem:[%s643 + $0x3c] sm:$0xf]
        %v676 = vunpack.c.l.b16 %v644
        %v677 = vunpack.c.l.b16 %v645
        %v678 = vunpack.c.l.b16 %v646
        %v679 = vunpack.c.l.b16 %v647
        %v680 = vunpack.c.l.b16 %v648
        %v681 = vunpack.c.l.b16 %v649
        %v682 = vunpack.c.l.b16 %v650
        %v683 = vunpack.c.l.b16 %v651
        %v684 = vunpack.c.l.b16 %v652
        %v685 = vunpack.c.l.b16 %v653
        %v686 = vunpack.c.l.b16 %v654
        %v687 = vunpack.c.l.b16 %v655
        %v688 = vunpack.c.l.b16 %v656
        %v689 = vunpack.c.l.b16 %v657
        %v690 = vunpack.c.l.b16 %v658
        %v691 = vunpack.c.l.b16 %v659
        %v692 = vpack.c.b16 %v677, %v676
        %v693 = vpack.c.b16 %v679, %v678
        %v694 = vpack.c.b16 %v681, %v680
        %v695 = vpack.c.b16 %v683, %v682
        %v696 = vpack.c.b16 %v685, %v684
        %v697 = vpack.c.b16 %v687, %v686
        %v698 = vpack.c.b16 %v689, %v688
        %v699 = vpack.c.b16 %v691, %v690
        %708 = vmatprep.subr.bf16.mxu0 0
        %709 = vmatpush1.bf16.msra.mxu0 %v699
        %710 = vmatprep.subr.bf16.mxu0 0
        %711 = vmatpush1.bf16.msra.mxu0 %v698
        %712 = vmatprep.subr.bf16.mxu0 0
        %713 = vmatpush1.bf16.msra.mxu0 %v697
        %714 = vmatprep.subr.bf16.mxu0 0
        %715 = vmatpush1.bf16.msra.mxu0 %v696
        %716 = vmatprep.subr.bf16.mxu0 0
        %717 = vmatpush1.bf16.msra.mxu0 %v695
        %718 = vmatprep.subr.bf16.mxu0 0
        %719 = vmatpush1.bf16.msra.mxu0 %v694
        %720 = vmatprep.subr.bf16.mxu0 0
        %721 = vmatpush1.bf16.msra.mxu0 %v693
        %722 = vmatprep.subr.bf16.mxu0 0
        %723 = vmatpush1.bf16.msra.mxu0 %v692
        %724 = vmatprep.subr.bf16.mxu0 0
        %725 = vmatpush2.bf16.msra.mxu0 0
        %726 = vmatprep.subr.bf16.mxu0 0
        %727 = vmatpush2.bf16.msra.mxu0 0
        %728 = vmatprep.subr.bf16.mxu0 0
        %729 = vmatpush2.bf16.msra.mxu0 0
        %730 = vmatprep.subr.bf16.mxu0 0
        %731 = vmatpush2.bf16.msra.mxu0 0
        %732 = vmatprep.subr.bf16.mxu0 0
        %733 = vmatpush2.bf16.msra.mxu0 0
        %734 = vmatprep.subr.bf16.mxu0 0
        %735 = vmatpush2.bf16.msra.mxu0 0
        %736 = vmatprep.subr.bf16.mxu0 0
        %737 = vmatpush2.bf16.msra.mxu0 0
        %738 = vmatprep.subr.bf16.mxu0 0
        %739 = vmatpush2.bf16.msra.mxu0 0
        %740 = vmatprep.mubr.bf16.mxu0 0
        %741 = vmatmul.mubr.bf16.gmra.mxu0 %v642
        %v742 = vpop.f32.mrf.mxu0
        %v743 = vadd.f32 0.0, %v742
        %v744 = vpop.f32.mrf.mxu0
        %v745 = vpop.f32.mrf.mxu0
        %v746 = vadd.f32 0.0, %v745
        %v747 = vpop.f32.mrf.mxu0
        %748 = vdwg.mxu0
        %v749 = vadd.f32 %v638, %v743
        %v750 = vadd.f32 %v639, %v746
        %v751 = vld [vmem:[#allocation2 + $0x11] sm:$0xff]
        %v752 = vld [vmem:[#allocation2 + $0x19] sm:$0xff]
        %v753 = vpack.c.bf16 %v752, %v751
        %s754 = scalar_lea.vmem [#allocation7], 128
        %v755 = vld [vmem:[%s754] sm:$0xf]
        %v756 = vld [vmem:[%s754 + $0x4] sm:$0xf]
        %v757 = vld [vmem:[%s754 + $0x8] sm:$0xf]
        %v758 = vld [vmem:[%s754 + $0xc] sm:$0xf]
        %v759 = vld [vmem:[%s754 + $0x10] sm:$0xf]
        %v760 = vld [vmem:[%s754 + $0x14] sm:$0xf]
        %v761 = vld [vmem:[%s754 + $0x18] sm:$0xf]
        %v762 = vld [vmem:[%s754 + $0x1c] sm:$0xf]
        %v763 = vld [vmem:[%s754 + $0x20] sm:$0xf]
        %v764 = vld [vmem:[%s754 + $0x24] sm:$0xf]
        %v765 = vld [vmem:[%s754 + $0x28] sm:$0xf]
        %v766 = vld [vmem:[%s754 + $0x2c] sm:$0xf]
        %v767 = vld [vmem:[%s754 + $0x30] sm:$0xf]
        %v768 = vld [vmem:[%s754 + $0x34] sm:$0xf]
        %v769 = vld [vmem:[%s754 + $0x38] sm:$0xf]
        %v770 = vld [vmem:[%s754 + $0x3c] sm:$0xf]
        %v787 = vunpack.c.l.b16 %v755
        %v788 = vunpack.c.l.b16 %v756
        %v789 = vunpack.c.l.b16 %v757
        %v790 = vunpack.c.l.b16 %v758
        %v791 = vunpack.c.l.b16 %v759
        %v792 = vunpack.c.l.b16 %v760
        %v793 = vunpack.c.l.b16 %v761
        %v794 = vunpack.c.l.b16 %v762
        %v795 = vunpack.c.l.b16 %v763
        %v796 = vunpack.c.l.b16 %v764
        %v797 = vunpack.c.l.b16 %v765
        %v798 = vunpack.c.l.b16 %v766
        %v799 = vunpack.c.l.b16 %v767
        %v800 = vunpack.c.l.b16 %v768
        %v801 = vunpack.c.l.b16 %v769
        %v802 = vunpack.c.l.b16 %v770
        %v803 = vpack.c.b16 %v788, %v787
        %v804 = vpack.c.b16 %v790, %v789
        %v805 = vpack.c.b16 %v792, %v791
        %v806 = vpack.c.b16 %v794, %v793
        %v807 = vpack.c.b16 %v796, %v795
        %v808 = vpack.c.b16 %v798, %v797
        %v809 = vpack.c.b16 %v800, %v799
        %v810 = vpack.c.b16 %v802, %v801
        %819 = vmatprep.subr.bf16.mxu0 0
        %820 = vmatpush1.bf16.msra.mxu0 %v810
        %821 = vmatprep.subr.bf16.mxu0 0
        %822 = vmatpush1.bf16.msra.mxu0 %v809
        %823 = vmatprep.subr.bf16.mxu0 0
        %824 = vmatpush1.bf16.msra.mxu0 %v808
        %825 = vmatprep.subr.bf16.mxu0 0
        %826 = vmatpush1.bf16.msra.mxu0 %v807
        %827 = vmatprep.subr.bf16.mxu0 0
        %828 = vmatpush1.bf16.msra.mxu0 %v806
        %829 = vmatprep.subr.bf16.mxu0 0
        %830 = vmatpush1.bf16.msra.mxu0 %v805
        %831 = vmatprep.subr.bf16.mxu0 0
        %832 = vmatpush1.bf16.msra.mxu0 %v804
        %833 = vmatprep.subr.bf16.mxu0 0
        %834 = vmatpush1.bf16.msra.mxu0 %v803
        %835 = vmatprep.subr.bf16.mxu0 0
        %836 = vmatpush2.bf16.msra.mxu0 0
        %837 = vmatprep.subr.bf16.mxu0 0
        %838 = vmatpush2.bf16.msra.mxu0 0
        %839 = vmatprep.subr.bf16.mxu0 0
        %840 = vmatpush2.bf16.msra.mxu0 0
        %841 = vmatprep.subr.bf16.mxu0 0
        %842 = vmatpush2.bf16.msra.mxu0 0
        %843 = vmatprep.subr.bf16.mxu0 0
        %844 = vmatpush2.bf16.msra.mxu0 0
        %845 = vmatprep.subr.bf16.mxu0 0
        %846 = vmatpush2.bf16.msra.mxu0 0
        %847 = vmatprep.subr.bf16.mxu0 0
        %848 = vmatpush2.bf16.msra.mxu0 0
        %849 = vmatprep.subr.bf16.mxu0 0
        %850 = vmatpush2.bf16.msra.mxu0 0
        %851 = vmatprep.mubr.bf16.mxu0 0
        %852 = vmatmul.mubr.bf16.gmra.mxu0 %v753
        %v853 = vpop.f32.mrf.mxu0
        %v854 = vadd.f32 0.0, %v853
        %v855 = vpop.f32.mrf.mxu0
        %v856 = vpop.f32.mrf.mxu0
        %v857 = vadd.f32 0.0, %v856
        %v858 = vpop.f32.mrf.mxu0
        %859 = vdwg.mxu0
        %v860 = vadd.f32 %v749, %v854
        %v861 = vadd.f32 %v750, %v857
        %v862 = vmax.f32 %v860, 0.0
        %v863 = vmax.f32 %v861, 0.0
        %864 = vst [vmem:[#allocation3 + $0x10] sm:$0xff] %v862
        %865 = vst [vmem:[#allocation3 + $0x18] sm:$0xff] %v863
        %v866 = vld [vmem:[#allocation12] sm:$0x1]
        %v868 = vlaneseq
        %v869 = vshrl.u32 %v868, 7
        %v870 = vsub.s32 0, %v869
        %v871 = vrot.slane %v866, %v870
        %v873 = vadd.f32 %v871, 0.0
        %s874 = scalar_lea.vmem [#allocation3], 15
        %v875 = vld [vmem:[%s874] ss:$2 sm:$0xff]
        %v876 = vpack.c.bf16 %v875, %v875
        %v877 = vld [vmem:[#allocation10] sm:$0xf]
        %v878 = vld [vmem:[#allocation10 + $0x4] sm:$0xf]
        %v879 = vld [vmem:[#allocation10 + $0x8] sm:$0xf]
        %v880 = vld [vmem:[#allocation10 + $0xc] sm:$0xf]
        %v881 = vld [vmem:[#allocation10 + $0x10] sm:$0xf]
        %v882 = vld [vmem:[#allocation10 + $0x14] sm:$0xf]
        %v883 = vld [vmem:[#allocation10 + $0x18] sm:$0xf]
        %v884 = vld [vmem:[#allocation10 + $0x1c] sm:$0xf]
        %v885 = vld [vmem:[#allocation10 + $0x20] sm:$0xf]
        %v886 = vld [vmem:[#allocation10 + $0x24] sm:$0xf]
        %v887 = vld [vmem:[#allocation10 + $0x28] sm:$0xf]
        %v888 = vld [vmem:[#allocation10 + $0x2c] sm:$0xf]
        %v889 = vld [vmem:[#allocation10 + $0x30] sm:$0xf]
        %v890 = vld [vmem:[#allocation10 + $0x34] sm:$0xf]
        %v891 = vld [vmem:[#allocation10 + $0x38] sm:$0xf]
        %v892 = vld [vmem:[#allocation10 + $0x3c] sm:$0xf]
        %v909 = vunpack.c.l.b16 %v877
        %v910 = vunpack.c.l.b16 %v878
        %v911 = vunpack.c.l.b16 %v879
        %v912 = vunpack.c.l.b16 %v880
        %v913 = vunpack.c.l.b16 %v881
        %v914 = vunpack.c.l.b16 %v882
        %v915 = vunpack.c.l.b16 %v883
        %v916 = vunpack.c.l.b16 %v884
        %v917 = vunpack.c.l.b16 %v885
        %v918 = vunpack.c.l.b16 %v886
        %v919 = vunpack.c.l.b16 %v887
        %v920 = vunpack.c.l.b16 %v888
        %v921 = vunpack.c.l.b16 %v889
        %v922 = vunpack.c.l.b16 %v890
        %v923 = vunpack.c.l.b16 %v891
        %v924 = vunpack.c.l.b16 %v892
        %v925 = vpack.c.b16 %v910, %v909
        %v926 = vpack.c.b16 %v912, %v911
        %v927 = vpack.c.b16 %v914, %v913
        %v928 = vpack.c.b16 %v916, %v915
        %v929 = vpack.c.b16 %v918, %v917
        %v930 = vpack.c.b16 %v920, %v919
        %v931 = vpack.c.b16 %v922, %v921
        %v932 = vpack.c.b16 %v924, %v923
        %941 = vmatprep.subr.bf16.mxu0 0
        %942 = vmatpush1.bf16.msra.mxu0 %v932
        %943 = vmatprep.subr.bf16.mxu0 0
        %944 = vmatpush1.bf16.msra.mxu0 %v931
        %945 = vmatprep.subr.bf16.mxu0 0
        %946 = vmatpush1.bf16.msra.mxu0 %v930
        %947 = vmatprep.subr.bf16.mxu0 0
        %948 = vmatpush1.bf16.msra.mxu0 %v929
        %949 = vmatprep.subr.bf16.mxu0 0
        %950 = vmatpush1.bf16.msra.mxu0 %v928
        %951 = vmatprep.subr.bf16.mxu0 0
        %952 = vmatpush1.bf16.msra.mxu0 %v927
        %953 = vmatprep.subr.bf16.mxu0 0
        %954 = vmatpush1.bf16.msra.mxu0 %v926
        %955 = vmatprep.subr.bf16.mxu0 0
        %956 = vmatpush1.bf16.msra.mxu0 %v925
        %957 = vmatprep.subr.bf16.mxu0 0
        %958 = vmatpush2.bf16.msra.mxu0 0
        %959 = vmatprep.subr.bf16.mxu0 0
        %960 = vmatpush2.bf16.msra.mxu0 0
        %961 = vmatprep.subr.bf16.mxu0 0
        %962 = vmatpush2.bf16.msra.mxu0 0
        %963 = vmatprep.subr.bf16.mxu0 0
        %964 = vmatpush2.bf16.msra.mxu0 0
        %965 = vmatprep.subr.bf16.mxu0 0
        %966 = vmatpush2.bf16.msra.mxu0 0
        %967 = vmatprep.subr.bf16.mxu0 0
        %968 = vmatpush2.bf16.msra.mxu0 0
        %969 = vmatprep.subr.bf16.mxu0 0
        %970 = vmatpush2.bf16.msra.mxu0 0
        %971 = vmatprep.subr.bf16.mxu0 0
        %972 = vmatpush2.bf16.msra.mxu0 0
        %973 = vmatprep.mubr.bf16.mxu0 0
        %974 = vmatmul.mubr.bf16.gmra.mxu0 %v876
        %v975 = vpop.f32.mrf.mxu0
        %v976 = vadd.f32 0.0, %v975
        %v977 = vpop.f32.mrf.mxu0
        %v978 = vpop.f32.mrf.mxu0
        %v979 = vpop.f32.mrf.mxu0
        %980 = vdwg.mxu0
        %v981 = vadd.f32 %v873, %v976
        %s982 = scalar_lea.vmem [#allocation3], 16
        %v983 = vld [vmem:[%s982] ss:$2 sm:$0xff]
        %v984 = vpack.c.bf16 %v983, %v983
        %s985 = scalar_lea.vmem [#allocation10], 64
        %v986 = vld [vmem:[%s985] sm:$0xf]
        %v987 = vld [vmem:[%s985 + $0x4] sm:$0xf]
        %v988 = vld [vmem:[%s985 + $0x8] sm:$0xf]
        %v989 = vld [vmem:[%s985 + $0xc] sm:$0xf]
        %v990 = vld [vmem:[%s985 + $0x10] sm:$0xf]
        %v991 = vld [vmem:[%s985 + $0x14] sm:$0xf]
        %v992 = vld [vmem:[%s985 + $0x18] sm:$0xf]
        %v993 = vld [vmem:[%s985 + $0x1c] sm:$0xf]
        %v994 = vld [vmem:[%s985 + $0x20] sm:$0xf]
        %v995 = vld [vmem:[%s985 + $0x24] sm:$0xf]
        %v996 = vld [vmem:[%s985 + $0x28] sm:$0xf]
        %v997 = vld [vmem:[%s985 + $0x2c] sm:$0xf]
        %v998 = vld [vmem:[%s985 + $0x30] sm:$0xf]
        %v999 = vld [vmem:[%s985 + $0x34] sm:$0xf]
        %v1000 = vld [vmem:[%s985 + $0x38] sm:$0xf]
        %v1001 = vld [vmem:[%s985 + $0x3c] sm:$0xf]
        %v1018 = vunpack.c.l.b16 %v986
        %v1019 = vunpack.c.l.b16 %v987
        %v1020 = vunpack.c.l.b16 %v988
        %v1021 = vunpack.c.l.b16 %v989
        %v1022 = vunpack.c.l.b16 %v990
        %v1023 = vunpack.c.l.b16 %v991
        %v1024 = vunpack.c.l.b16 %v992
        %v1025 = vunpack.c.l.b16 %v993
        %v1026 = vunpack.c.l.b16 %v994
        %v1027 = vunpack.c.l.b16 %v995
        %v1028 = vunpack.c.l.b16 %v996
        %v1029 = vunpack.c.l.b16 %v997
        %v1030 = vunpack.c.l.b16 %v998
        %v1031 = vunpack.c.l.b16 %v999
        %v1032 = vunpack.c.l.b16 %v1000
        %v1033 = vunpack.c.l.b16 %v1001
        %v1034 = vpack.c.b16 %v1019, %v1018
        %v1035 = vpack.c.b16 %v1021, %v1020
        %v1036 = vpack.c.b16 %v1023, %v1022
        %v1037 = vpack.c.b16 %v1025, %v1024
        %v1038 = vpack.c.b16 %v1027, %v1026
        %v1039 = vpack.c.b16 %v1029, %v1028
        %v1040 = vpack.c.b16 %v1031, %v1030
        %v1041 = vpack.c.b16 %v1033, %v1032
        %1050 = vmatprep.subr.bf16.mxu0 0
        %1051 = vmatpush1.bf16.msra.mxu0 %v1041
        %1052 = vmatprep.subr.bf16.mxu0 0
        %1053 = vmatpush1.bf16.msra.mxu0 %v1040
        %1054 = vmatprep.subr.bf16.mxu0 0
        %1055 = vmatpush1.bf16.msra.mxu0 %v1039
        %1056 = vmatprep.subr.bf16.mxu0 0
        %1057 = vmatpush1.bf16.msra.mxu0 %v1038
        %1058 = vmatprep.subr.bf16.mxu0 0
        %1059 = vmatpush1.bf16.msra.mxu0 %v1037
        %1060 = vmatprep.subr.bf16.mxu0 0
        %1061 = vmatpush1.bf16.msra.mxu0 %v1036
        %1062 = vmatprep.subr.bf16.mxu0 0
        %1063 = vmatpush1.bf16.msra.mxu0 %v1035
        %1064 = vmatprep.subr.bf16.mxu0 0
        %1065 = vmatpush1.bf16.msra.mxu0 %v1034
        %1066 = vmatprep.subr.bf16.mxu0 0
        %1067 = vmatpush2.bf16.msra.mxu0 0
        %1068 = vmatprep.subr.bf16.mxu0 0
        %1069 = vmatpush2.bf16.msra.mxu0 0
        %1070 = vmatprep.subr.bf16.mxu0 0
        %1071 = vmatpush2.bf16.msra.mxu0 0
        %1072 = vmatprep.subr.bf16.mxu0 0
        %1073 = vmatpush2.bf16.msra.mxu0 0
        %1074 = vmatprep.subr.bf16.mxu0 0
        %1075 = vmatpush2.bf16.msra.mxu0 0
        %1076 = vmatprep.subr.bf16.mxu0 0
        %1077 = vmatpush2.bf16.msra.mxu0 0
        %1078 = vmatprep.subr.bf16.mxu0 0
        %1079 = vmatpush2.bf16.msra.mxu0 0
        %1080 = vmatprep.subr.bf16.mxu0 0
        %1081 = vmatpush2.bf16.msra.mxu0 0
        %1082 = vmatprep.mubr.bf16.mxu0 0
        %1083 = vmatmul.mubr.bf16.gmra.mxu0 %v984
        %v1084 = vpop.f32.mrf.mxu0
        %v1085 = vadd.f32 0.0, %v1084
        %v1086 = vpop.f32.mrf.mxu0
        %v1087 = vpop.f32.mrf.mxu0
        %v1088 = vpop.f32.mrf.mxu0
        %1089 = vdwg.mxu0
        %v1090 = vadd.f32 %v981, %v1085
        %s1091 = scalar_lea.vmem [#allocation3], 17
        %v1092 = vld [vmem:[%s1091] ss:$2 sm:$0xff]
        %v1093 = vpack.c.bf16 %v1092, %v1092
        %s1094 = scalar_lea.vmem [#allocation10], 128
        %v1095 = vld [vmem:[%s1094] sm:$0xf]
        %v1096 = vld [vmem:[%s1094 + $0x4] sm:$0xf]
        %v1097 = vld [vmem:[%s1094 + $0x8] sm:$0xf]
        %v1098 = vld [vmem:[%s1094 + $0xc] sm:$0xf]
        %v1099 = vld [vmem:[%s1094 + $0x10] sm:$0xf]
        %v1100 = vld [vmem:[%s1094 + $0x14] sm:$0xf]
        %v1101 = vld [vmem:[%s1094 + $0x18] sm:$0xf]
        %v1102 = vld [vmem:[%s1094 + $0x1c] sm:$0xf]
        %v1103 = vld [vmem:[%s1094 + $0x20] sm:$0xf]
        %v1104 = vld [vmem:[%s1094 + $0x24] sm:$0xf]
        %v1105 = vld [vmem:[%s1094 + $0x28] sm:$0xf]
        %v1106 = vld [vmem:[%s1094 + $0x2c] sm:$0xf]
        %v1107 = vld [vmem:[%s1094 + $0x30] sm:$0xf]
        %v1108 = vld [vmem:[%s1094 + $0x34] sm:$0xf]
        %v1109 = vld [vmem:[%s1094 + $0x38] sm:$0xf]
        %v1110 = vld [vmem:[%s1094 + $0x3c] sm:$0xf]
        %v1127 = vunpack.c.l.b16 %v1095
        %v1128 = vunpack.c.l.b16 %v1096
        %v1129 = vunpack.c.l.b16 %v1097
        %v1130 = vunpack.c.l.b16 %v1098
        %v1131 = vunpack.c.l.b16 %v1099
        %v1132 = vunpack.c.l.b16 %v1100
        %v1133 = vunpack.c.l.b16 %v1101
        %v1134 = vunpack.c.l.b16 %v1102
        %v1135 = vunpack.c.l.b16 %v1103
        %v1136 = vunpack.c.l.b16 %v1104
        %v1137 = vunpack.c.l.b16 %v1105
        %v1138 = vunpack.c.l.b16 %v1106
        %v1139 = vunpack.c.l.b16 %v1107
        %v1140 = vunpack.c.l.b16 %v1108
        %v1141 = vunpack.c.l.b16 %v1109
        %v1142 = vunpack.c.l.b16 %v1110
        %v1143 = vpack.c.b16 %v1128, %v1127
        %v1144 = vpack.c.b16 %v1130, %v1129
        %v1145 = vpack.c.b16 %v1132, %v1131
        %v1146 = vpack.c.b16 %v1134, %v1133
        %v1147 = vpack.c.b16 %v1136, %v1135
        %v1148 = vpack.c.b16 %v1138, %v1137
        %v1149 = vpack.c.b16 %v1140, %v1139
        %v1150 = vpack.c.b16 %v1142, %v1141
        %1159 = vmatprep.subr.bf16.mxu0 0
        %1160 = vmatpush1.bf16.msra.mxu0 %v1150
        %1161 = vmatprep.subr.bf16.mxu0 0
        %1162 = vmatpush1.bf16.msra.mxu0 %v1149
        %1163 = vmatprep.subr.bf16.mxu0 0
        %1164 = vmatpush1.bf16.msra.mxu0 %v1148
        %1165 = vmatprep.subr.bf16.mxu0 0
        %1166 = vmatpush1.bf16.msra.mxu0 %v1147
        %1167 = vmatprep.subr.bf16.mxu0 0
        %1168 = vmatpush1.bf16.msra.mxu0 %v1146
        %1169 = vmatprep.subr.bf16.mxu0 0
        %1170 = vmatpush1.bf16.msra.mxu0 %v1145
        %1171 = vmatprep.subr.bf16.mxu0 0
        %1172 = vmatpush1.bf16.msra.mxu0 %v1144
        %1173 = vmatprep.subr.bf16.mxu0 0
        %1174 = vmatpush1.bf16.msra.mxu0 %v1143
        %1175 = vmatprep.subr.bf16.mxu0 0
        %1176 = vmatpush2.bf16.msra.mxu0 0
        %1177 = vmatprep.subr.bf16.mxu0 0
        %1178 = vmatpush2.bf16.msra.mxu0 0
        %1179 = vmatprep.subr.bf16.mxu0 0
        %1180 = vmatpush2.bf16.msra.mxu0 0
        %1181 = vmatprep.subr.bf16.mxu0 0
        %1182 = vmatpush2.bf16.msra.mxu0 0
        %1183 = vmatprep.subr.bf16.mxu0 0
        %1184 = vmatpush2.bf16.msra.mxu0 0
        %1185 = vmatprep.subr.bf16.mxu0 0
        %1186 = vmatpush2.bf16.msra.mxu0 0
        %1187 = vmatprep.subr.bf16.mxu0 0
        %1188 = vmatpush2.bf16.msra.mxu0 0
        %1189 = vmatprep.subr.bf16.mxu0 0
        %1190 = vmatpush2.bf16.msra.mxu0 0
        %1191 = vmatprep.mubr.bf16.mxu0 0
        %1192 = vmatmul.mubr.bf16.gmra.mxu0 %v1093
        %v1193 = vpop.f32.mrf.mxu0
        %v1194 = vadd.f32 0.0, %v1193
        %v1195 = vpop.f32.mrf.mxu0
        %v1196 = vpop.f32.mrf.mxu0
        %v1197 = vpop.f32.mrf.mxu0
        %1198 = vdwg.mxu0
        %v1199 = vadd.f32 %v1090, %v1194
        %s1200 = scalar_lea.vmem [#allocation3], 18
        %v1201 = vld [vmem:[%s1200] ss:$2 sm:$0xff]
        %v1202 = vpack.c.bf16 %v1201, %v1201
        %s1203 = scalar_lea.vmem [#allocation10], 192
        %v1204 = vld [vmem:[%s1203] sm:$0xf]
        %v1205 = vld [vmem:[%s1203 + $0x4] sm:$0xf]
        %v1206 = vld [vmem:[%s1203 + $0x8] sm:$0xf]
        %v1207 = vld [vmem:[%s1203 + $0xc] sm:$0xf]
        %v1208 = vld [vmem:[%s1203 + $0x10] sm:$0xf]
        %v1209 = vld [vmem:[%s1203 + $0x14] sm:$0xf]
        %v1210 = vld [vmem:[%s1203 + $0x18] sm:$0xf]
        %v1211 = vld [vmem:[%s1203 + $0x1c] sm:$0xf]
        %v1212 = vld [vmem:[%s1203 + $0x20] sm:$0xf]
        %v1213 = vld [vmem:[%s1203 + $0x24] sm:$0xf]
        %v1214 = vld [vmem:[%s1203 + $0x28] sm:$0xf]
        %v1215 = vld [vmem:[%s1203 + $0x2c] sm:$0xf]
        %v1216 = vld [vmem:[%s1203 + $0x30] sm:$0xf]
        %v1217 = vld [vmem:[%s1203 + $0x34] sm:$0xf]
        %v1218 = vld [vmem:[%s1203 + $0x38] sm:$0xf]
        %v1219 = vld [vmem:[%s1203 + $0x3c] sm:$0xf]
        %v1236 = vunpack.c.l.b16 %v1204
        %v1237 = vunpack.c.l.b16 %v1205
        %v1238 = vunpack.c.l.b16 %v1206
        %v1239 = vunpack.c.l.b16 %v1207
        %v1240 = vunpack.c.l.b16 %v1208
        %v1241 = vunpack.c.l.b16 %v1209
        %v1242 = vunpack.c.l.b16 %v1210
        %v1243 = vunpack.c.l.b16 %v1211
        %v1244 = vunpack.c.l.b16 %v1212
        %v1245 = vunpack.c.l.b16 %v1213
        %v1246 = vunpack.c.l.b16 %v1214
        %v1247 = vunpack.c.l.b16 %v1215
        %v1248 = vunpack.c.l.b16 %v1216
        %v1249 = vunpack.c.l.b16 %v1217
        %v1250 = vunpack.c.l.b16 %v1218
        %v1251 = vunpack.c.l.b16 %v1219
        %v1252 = vpack.c.b16 %v1237, %v1236
        %v1253 = vpack.c.b16 %v1239, %v1238
        %v1254 = vpack.c.b16 %v1241, %v1240
        %v1255 = vpack.c.b16 %v1243, %v1242
        %v1256 = vpack.c.b16 %v1245, %v1244
        %v1257 = vpack.c.b16 %v1247, %v1246
        %v1258 = vpack.c.b16 %v1249, %v1248
        %v1259 = vpack.c.b16 %v1251, %v1250
        %1268 = vmatprep.subr.bf16.mxu0 0
        %1269 = vmatpush1.bf16.msra.mxu0 %v1259
        %1270 = vmatprep.subr.bf16.mxu0 0
        %1271 = vmatpush1.bf16.msra.mxu0 %v1258
        %1272 = vmatprep.subr.bf16.mxu0 0
        %1273 = vmatpush1.bf16.msra.mxu0 %v1257
        %1274 = vmatprep.subr.bf16.mxu0 0
        %1275 = vmatpush1.bf16.msra.mxu0 %v1256
        %1276 = vmatprep.subr.bf16.mxu0 0
        %1277 = vmatpush1.bf16.msra.mxu0 %v1255
        %1278 = vmatprep.subr.bf16.mxu0 0
        %1279 = vmatpush1.bf16.msra.mxu0 %v1254
        %1280 = vmatprep.subr.bf16.mxu0 0
        %1281 = vmatpush1.bf16.msra.mxu0 %v1253
        %1282 = vmatprep.subr.bf16.mxu0 0
        %1283 = vmatpush1.bf16.msra.mxu0 %v1252
        %1284 = vmatprep.subr.bf16.mxu0 0
        %1285 = vmatpush2.bf16.msra.mxu0 0
        %1286 = vmatprep.subr.bf16.mxu0 0
        %1287 = vmatpush2.bf16.msra.mxu0 0
        %1288 = vmatprep.subr.bf16.mxu0 0
        %1289 = vmatpush2.bf16.msra.mxu0 0
        %1290 = vmatprep.subr.bf16.mxu0 0
        %1291 = vmatpush2.bf16.msra.mxu0 0
        %1292 = vmatprep.subr.bf16.mxu0 0
        %1293 = vmatpush2.bf16.msra.mxu0 0
        %1294 = vmatprep.subr.bf16.mxu0 0
        %1295 = vmatpush2.bf16.msra.mxu0 0
        %1296 = vmatprep.subr.bf16.mxu0 0
        %1297 = vmatpush2.bf16.msra.mxu0 0
        %1298 = vmatprep.subr.bf16.mxu0 0
        %1299 = vmatpush2.bf16.msra.mxu0 0
        %1300 = vmatprep.mubr.bf16.mxu0 0
        %1301 = vmatmul.mubr.bf16.gmra.mxu0 %v1202
        %v1302 = vpop.f32.mrf.mxu0
        %v1303 = vadd.f32 0.0, %v1302
        %v1304 = vpop.f32.mrf.mxu0
        %v1305 = vpop.f32.mrf.mxu0
        %v1306 = vpop.f32.mrf.mxu0
        %1307 = vdwg.mxu0
        %v1308 = vadd.f32 %v1199, %v1303
        %1309 = vst [vmem:[#allocation2 + $0x10] sm:$0xff] %v1308
        %1310 = vst [vmem:[#allocation2 + $0x18] sm:$0xff] 0.0
        %v1311 = vld [vmem:[#allocation2 + $0x10] sm:$0xff]
        %v1312 = vmax.f32 %v1311, 0.0
        %1313 = vst [vmem:[#allocation3 + $0x10] sm:$0xff] %v1312
        %1314 = vst [vmem:[#allocation3 + $0x18] sm:$0xff] 0.0
        %v1315 = vld [vmem:[%s6] sm:$0x1]
        %v1317 = vlaneseq
        %v1318 = vshrl.u32 %v1317, 7
        %v1319 = vsub.s32 0, %v1318
        %v1320 = vrot.slane %v1315, %v1319
        %v1322 = vadd.f32 %v1320, 0.0
        %v1323 = vld [vmem:[#allocation3 + $0x7] sm:$0xff]
        %v1324 = vpack.c.bf16 %v1323, %v1323
        %v1325 = vld [vmem:[#allocation13] sm:$0xf]
        %v1326 = vld [vmem:[#allocation13 + $0x4] sm:$0xf]
        %v1327 = vld [vmem:[#allocation13 + $0x8] sm:$0xf]
        %v1328 = vld [vmem:[#allocation13 + $0xc] sm:$0xf]
        %v1329 = vld [vmem:[#allocation13 + $0x10] sm:$0xf]
        %v1330 = vld [vmem:[#allocation13 + $0x14] sm:$0xf]
        %v1331 = vld [vmem:[#allocation13 + $0x18] sm:$0xf]
        %v1332 = vld [vmem:[#allocation13 + $0x1c] sm:$0xf]
        %v1333 = vld [vmem:[#allocation13 + $0x20] sm:$0xf]
        %v1334 = vld [vmem:[#allocation13 + $0x24] sm:$0xf]
        %v1335 = vld [vmem:[#allocation13 + $0x28] sm:$0xf]
        %v1336 = vld [vmem:[#allocation13 + $0x2c] sm:$0xf]
        %v1337 = vld [vmem:[#allocation13 + $0x30] sm:$0xf]
        %v1338 = vld [vmem:[#allocation13 + $0x34] sm:$0xf]
        %v1339 = vld [vmem:[#allocation13 + $0x38] sm:$0xf]
        %v1340 = vld [vmem:[#allocation13 + $0x3c] sm:$0xf]
        %v1357 = vunpack.c.l.b16 %v1325
        %v1358 = vunpack.c.l.b16 %v1326
        %v1359 = vunpack.c.l.b16 %v1327
        %v1360 = vunpack.c.l.b16 %v1328
        %v1361 = vunpack.c.l.b16 %v1329
        %v1362 = vunpack.c.l.b16 %v1330
        %v1363 = vunpack.c.l.b16 %v1331
        %v1364 = vunpack.c.l.b16 %v1332
        %v1365 = vunpack.c.l.b16 %v1333
        %v1366 = vunpack.c.l.b16 %v1334
        %v1367 = vunpack.c.l.b16 %v1335
        %v1368 = vunpack.c.l.b16 %v1336
        %v1369 = vunpack.c.l.b16 %v1337
        %v1370 = vunpack.c.l.b16 %v1338
        %v1371 = vunpack.c.l.b16 %v1339
        %v1372 = vunpack.c.l.b16 %v1340
        %v1373 = vpack.c.b16 %v1358, %v1357
        %v1374 = vpack.c.b16 %v1360, %v1359
        %v1375 = vpack.c.b16 %v1362, %v1361
        %v1376 = vpack.c.b16 %v1364, %v1363
        %v1377 = vpack.c.b16 %v1366, %v1365
        %v1378 = vpack.c.b16 %v1368, %v1367
        %v1379 = vpack.c.b16 %v1370, %v1369
        %v1380 = vpack.c.b16 %v1372, %v1371
        %1389 = vmatprep.subr.bf16.mxu0 0
        %1390 = vmatpush1.bf16.msra.mxu0 %v1380
        %1391 = vmatprep.subr.bf16.mxu0 0
        %1392 = vmatpush1.bf16.msra.mxu0 %v1379
        %1393 = vmatprep.subr.bf16.mxu0 0
        %1394 = vmatpush1.bf16.msra.mxu0 %v1378
        %1395 = vmatprep.subr.bf16.mxu0 0
        %1396 = vmatpush1.bf16.msra.mxu0 %v1377
        %1397 = vmatprep.subr.bf16.mxu0 0
        %1398 = vmatpush1.bf16.msra.mxu0 %v1376
        %1399 = vmatprep.subr.bf16.mxu0 0
        %1400 = vmatpush1.bf16.msra.mxu0 %v1375
        %1401 = vmatprep.subr.bf16.mxu0 0
        %1402 = vmatpush1.bf16.msra.mxu0 %v1374
        %1403 = vmatprep.subr.bf16.mxu0 0
        %1404 = vmatpush1.bf16.msra.mxu0 %v1373
        %1405 = vmatprep.subr.bf16.mxu0 0
        %1406 = vmatpush2.bf16.msra.mxu0 0
        %1407 = vmatprep.subr.bf16.mxu0 0
        %1408 = vmatpush2.bf16.msra.mxu0 0
        %1409 = vmatprep.subr.bf16.mxu0 0
        %1410 = vmatpush2.bf16.msra.mxu0 0
        %1411 = vmatprep.subr.bf16.mxu0 0
        %1412 = vmatpush2.bf16.msra.mxu0 0
        %1413 = vmatprep.subr.bf16.mxu0 0
        %1414 = vmatpush2.bf16.msra.mxu0 0
        %1415 = vmatprep.subr.bf16.mxu0 0
        %1416 = vmatpush2.bf16.msra.mxu0 0
        %1417 = vmatprep.subr.bf16.mxu0 0
        %1418 = vmatpush2.bf16.msra.mxu0 0
        %1419 = vmatprep.subr.bf16.mxu0 0
        %1420 = vmatpush2.bf16.msra.mxu0 0
        %1421 = vmatprep.mubr.bf16.mxu0 0
        %1422 = vmatmul.mubr.bf16.gmra.mxu0 %v1324
        %v1423 = vpop.f32.mrf.mxu0
        %v1424 = vadd.f32 0.0, %v1423
        %v1425 = vpop.f32.mrf.mxu0
        %v1426 = vpop.f32.mrf.mxu0
        %v1427 = vpop.f32.mrf.mxu0
        %1428 = vdwg.mxu0
        %v1429 = vadd.f32 %v1322, %v1424
        %v1430 = vld [vmem:[#allocation3 + $0x10] sm:$0xff]
        %v1431 = vpack.c.bf16 %v1430, %v1430
        %s1432 = scalar_lea.vmem [#allocation13], 64
        %v1433 = vld [vmem:[%s1432] sm:$0xf]
        %v1434 = vld [vmem:[%s1432 + $0x4] sm:$0xf]
        %v1435 = vld [vmem:[%s1432 + $0x8] sm:$0xf]
        %v1436 = vld [vmem:[%s1432 + $0xc] sm:$0xf]
        %v1437 = vld [vmem:[%s1432 + $0x10] sm:$0xf]
        %v1438 = vld [vmem:[%s1432 + $0x14] sm:$0xf]
        %v1439 = vld [vmem:[%s1432 + $0x18] sm:$0xf]
        %v1440 = vld [vmem:[%s1432 + $0x1c] sm:$0xf]
        %v1441 = vld [vmem:[%s1432 + $0x20] sm:$0xf]
        %v1442 = vld [vmem:[%s1432 + $0x24] sm:$0xf]
        %v1443 = vld [vmem:[%s1432 + $0x28] sm:$0xf]
        %v1444 = vld [vmem:[%s1432 + $0x2c] sm:$0xf]
        %v1445 = vld [vmem:[%s1432 + $0x30] sm:$0xf]
        %v1446 = vld [vmem:[%s1432 + $0x34] sm:$0xf]
        %v1447 = vld [vmem:[%s1432 + $0x38] sm:$0xf]
        %v1448 = vld [vmem:[%s1432 + $0x3c] sm:$0xf]
        %v1465 = vunpack.c.l.b16 %v1433
        %v1466 = vunpack.c.l.b16 %v1434
        %v1467 = vunpack.c.l.b16 %v1435
        %v1468 = vunpack.c.l.b16 %v1436
        %v1469 = vunpack.c.l.b16 %v1437
        %v1470 = vunpack.c.l.b16 %v1438
        %v1471 = vunpack.c.l.b16 %v1439
        %v1472 = vunpack.c.l.b16 %v1440
        %v1473 = vunpack.c.l.b16 %v1441
        %v1474 = vunpack.c.l.b16 %v1442
        %v1475 = vunpack.c.l.b16 %v1443
        %v1476 = vunpack.c.l.b16 %v1444
        %v1477 = vunpack.c.l.b16 %v1445
        %v1478 = vunpack.c.l.b16 %v1446
        %v1479 = vunpack.c.l.b16 %v1447
        %v1480 = vunpack.c.l.b16 %v1448
        %v1481 = vpack.c.b16 %v1466, %v1465
        %v1482 = vpack.c.b16 %v1468, %v1467
        %v1483 = vpack.c.b16 %v1470, %v1469
        %v1484 = vpack.c.b16 %v1472, %v1471
        %v1485 = vpack.c.b16 %v1474, %v1473
        %v1486 = vpack.c.b16 %v1476, %v1475
        %v1487 = vpack.c.b16 %v1478, %v1477
        %v1488 = vpack.c.b16 %v1480, %v1479
        %1497 = vmatprep.subr.bf16.mxu0 0
        %1498 = vmatpush1.bf16.msra.mxu0 %v1488
        %1499 = vmatprep.subr.bf16.mxu0 0
        %1500 = vmatpush1.bf16.msra.mxu0 %v1487
        %1501 = vmatprep.subr.bf16.mxu0 0
        %1502 = vmatpush1.bf16.msra.mxu0 %v1486
        %1503 = vmatprep.subr.bf16.mxu0 0
        %1504 = vmatpush1.bf16.msra.mxu0 %v1485
        %1505 = vmatprep.subr.bf16.mxu0 0
        %1506 = vmatpush1.bf16.msra.mxu0 %v1484
        %1507 = vmatprep.subr.bf16.mxu0 0
        %1508 = vmatpush1.bf16.msra.mxu0 %v1483
        %1509 = vmatprep.subr.bf16.mxu0 0
        %1510 = vmatpush1.bf16.msra.mxu0 %v1482
        %1511 = vmatprep.subr.bf16.mxu0 0
        %1512 = vmatpush1.bf16.msra.mxu0 %v1481
        %1513 = vmatprep.subr.bf16.mxu0 0
        %1514 = vmatpush2.bf16.msra.mxu0 0
        %1515 = vmatprep.subr.bf16.mxu0 0
        %1516 = vmatpush2.bf16.msra.mxu0 0
        %1517 = vmatprep.subr.bf16.mxu0 0
        %1518 = vmatpush2.bf16.msra.mxu0 0
        %1519 = vmatprep.subr.bf16.mxu0 0
        %1520 = vmatpush2.bf16.msra.mxu0 0
        %1521 = vmatprep.subr.bf16.mxu0 0
        %1522 = vmatpush2.bf16.msra.mxu0 0
        %1523 = vmatprep.subr.bf16.mxu0 0
        %1524 = vmatpush2.bf16.msra.mxu0 0
        %1525 = vmatprep.subr.bf16.mxu0 0
        %1526 = vmatpush2.bf16.msra.mxu0 0
        %1527 = vmatprep.subr.bf16.mxu0 0
        %1528 = vmatpush2.bf16.msra.mxu0 0
        %1529 = vmatprep.mubr.bf16.mxu0 0
        %1530 = vmatmul.mubr.bf16.gmra.mxu0 %v1431
        %v1531 = vpop.f32.mrf.mxu0
        %v1532 = vadd.f32 0.0, %v1531
        %v1533 = vpop.f32.mrf.mxu0
        %v1534 = vpop.f32.mrf.mxu0
        %v1535 = vpop.f32.mrf.mxu0
        %1536 = vdwg.mxu0
        %v1537 = vadd.f32 %v1429, %v1532
        %v1538 = vld [vmem:[#allocation3 + $0x19] sm:$0xff]
        %v1539 = vpack.c.bf16 %v1538, %v1538
        %s1540 = scalar_lea.vmem [#allocation13], 128
        %v1541 = vld [vmem:[%s1540] sm:$0xf]
        %v1542 = vld [vmem:[%s1540 + $0x4] sm:$0xf]
        %v1543 = vld [vmem:[%s1540 + $0x8] sm:$0xf]
        %v1544 = vld [vmem:[%s1540 + $0xc] sm:$0xf]
        %v1545 = vld [vmem:[%s1540 + $0x10] sm:$0xf]
        %v1546 = vld [vmem:[%s1540 + $0x14] sm:$0xf]
        %v1547 = vld [vmem:[%s1540 + $0x18] sm:$0xf]
        %v1548 = vld [vmem:[%s1540 + $0x1c] sm:$0xf]
        %v1549 = vld [vmem:[%s1540 + $0x20] sm:$0xf]
        %v1550 = vld [vmem:[%s1540 + $0x24] sm:$0xf]
        %v1551 = vld [vmem:[%s1540 + $0x28] sm:$0xf]
        %v1552 = vld [vmem:[%s1540 + $0x2c] sm:$0xf]
        %v1553 = vld [vmem:[%s1540 + $0x30] sm:$0xf]
        %v1554 = vld [vmem:[%s1540 + $0x34] sm:$0xf]
        %v1555 = vld [vmem:[%s1540 + $0x38] sm:$0xf]
        %v1556 = vld [vmem:[%s1540 + $0x3c] sm:$0xf]
        %v1573 = vunpack.c.l.b16 %v1541
        %v1574 = vunpack.c.l.b16 %v1542
        %v1575 = vunpack.c.l.b16 %v1543
        %v1576 = vunpack.c.l.b16 %v1544
        %v1577 = vunpack.c.l.b16 %v1545
        %v1578 = vunpack.c.l.b16 %v1546
        %v1579 = vunpack.c.l.b16 %v1547
        %v1580 = vunpack.c.l.b16 %v1548
        %v1581 = vunpack.c.l.b16 %v1549
        %v1582 = vunpack.c.l.b16 %v1550
        %v1583 = vunpack.c.l.b16 %v1551
        %v1584 = vunpack.c.l.b16 %v1552
        %v1585 = vunpack.c.l.b16 %v1553
        %v1586 = vunpack.c.l.b16 %v1554
        %v1587 = vunpack.c.l.b16 %v1555
        %v1588 = vunpack.c.l.b16 %v1556
        %v1589 = vpack.c.b16 %v1574, %v1573
        %v1590 = vpack.c.b16 %v1576, %v1575
        %v1591 = vpack.c.b16 %v1578, %v1577
        %v1592 = vpack.c.b16 %v1580, %v1579
        %v1593 = vpack.c.b16 %v1582, %v1581
        %v1594 = vpack.c.b16 %v1584, %v1583
        %v1595 = vpack.c.b16 %v1586, %v1585
        %v1596 = vpack.c.b16 %v1588, %v1587
        %1605 = vmatprep.subr.bf16.mxu0 0
        %1606 = vmatpush1.bf16.msra.mxu0 %v1596
        %1607 = vmatprep.subr.bf16.mxu0 0
        %1608 = vmatpush1.bf16.msra.mxu0 %v1595
        %1609 = vmatprep.subr.bf16.mxu0 0
        %1610 = vmatpush1.bf16.msra.mxu0 %v1594
        %1611 = vmatprep.subr.bf16.mxu0 0
        %1612 = vmatpush1.bf16.msra.mxu0 %v1593
        %1613 = vmatprep.subr.bf16.mxu0 0
        %1614 = vmatpush1.bf16.msra.mxu0 %v1592
        %1615 = vmatprep.subr.bf16.mxu0 0
        %1616 = vmatpush1.bf16.msra.mxu0 %v1591
        %1617 = vmatprep.subr.bf16.mxu0 0
        %1618 = vmatpush1.bf16.msra.mxu0 %v1590
        %1619 = vmatprep.subr.bf16.mxu0 0
        %1620 = vmatpush1.bf16.msra.mxu0 %v1589
        %1621 = vmatprep.subr.bf16.mxu0 0
        %1622 = vmatpush2.bf16.msra.mxu0 0
        %1623 = vmatprep.subr.bf16.mxu0 0
        %1624 = vmatpush2.bf16.msra.mxu0 0
        %1625 = vmatprep.subr.bf16.mxu0 0
        %1626 = vmatpush2.bf16.msra.mxu0 0
        %1627 = vmatprep.subr.bf16.mxu0 0
        %1628 = vmatpush2.bf16.msra.mxu0 0
        %1629 = vmatprep.subr.bf16.mxu0 0
        %1630 = vmatpush2.bf16.msra.mxu0 0
        %1631 = vmatprep.subr.bf16.mxu0 0
        %1632 = vmatpush2.bf16.msra.mxu0 0
        %1633 = vmatprep.subr.bf16.mxu0 0
        %1634 = vmatpush2.bf16.msra.mxu0 0
        %1635 = vmatprep.subr.bf16.mxu0 0
        %1636 = vmatpush2.bf16.msra.mxu0 0
        %1637 = vmatprep.mubr.bf16.mxu0 0
        %1638 = vmatmul.mubr.bf16.gmra.mxu0 %v1539
        %v1639 = vpop.f32.mrf.mxu0
        %v1640 = vadd.f32 0.0, %v1639
        %v1641 = vpop.f32.mrf.mxu0
        %v1642 = vpop.f32.mrf.mxu0
        %v1643 = vpop.f32.mrf.mxu0
        %1644 = vdwg.mxu0
        %v1645 = vadd.f32 %v1537, %v1640
        %v1646 = vmax.f32 %v1645, 0.0
        %v1647 = vpack.c.bf16 %v1646, %v1646
        %v1648 = vld [vmem:[#allocation15] sm:$0xf]
        %v1649 = vld [vmem:[#allocation15 + $0x4] sm:$0xf]
        %v1650 = vld [vmem:[#allocation15 + $0x8] sm:$0xf]
        %v1651 = vld [vmem:[#allocation15 + $0xc] sm:$0xf]
        %v1652 = vld [vmem:[#allocation15 + $0x10] sm:$0xf]
        %v1653 = vld [vmem:[#allocation15 + $0x14] sm:$0xf]
        %v1654 = vld [vmem:[#allocation15 + $0x18] sm:$0xf]
        %v1655 = vld [vmem:[#allocation15 + $0x1c] sm:$0xf]
        %v1656 = vld [vmem:[#allocation15 + $0x20] sm:$0xf]
        %v1657 = vld [vmem:[#allocation15 + $0x24] sm:$0xf]
        %v1658 = vld [vmem:[#allocation15 + $0x28] sm:$0xf]
        %v1659 = vld [vmem:[#allocation15 + $0x2c] sm:$0xf]
        %v1660 = vld [vmem:[#allocation15 + $0x30] sm:$0xf]
        %v1661 = vld [vmem:[#allocation15 + $0x34] sm:$0xf]
        %v1662 = vld [vmem:[#allocation15 + $0x38] sm:$0xf]
        %v1663 = vld [vmem:[#allocation15 + $0x3c] sm:$0xf]
        %v1664 = vld [vmem:[%s8] sm:$0x1]
        %v1666 = vlaneseq
        %v1667 = vshrl.u32 %v1666, 7
        %v1668 = vsub.s32 0, %v1667
        %v1669 = vrot.slane %v1664, %v1668
        %v1687 = vunpack.c.l.b16 %v1648
        %v1688 = vunpack.c.l.b16 %v1649
        %v1689 = vunpack.c.l.b16 %v1650
        %v1690 = vunpack.c.l.b16 %v1651
        %v1691 = vunpack.c.l.b16 %v1652
        %v1692 = vunpack.c.l.b16 %v1653
        %v1693 = vunpack.c.l.b16 %v1654
        %v1694 = vunpack.c.l.b16 %v1655
        %v1695 = vunpack.c.l.b16 %v1656
        %v1696 = vunpack.c.l.b16 %v1657
        %v1697 = vunpack.c.l.b16 %v1658
        %v1698 = vunpack.c.l.b16 %v1659
        %v1699 = vunpack.c.l.b16 %v1660
        %v1700 = vunpack.c.l.b16 %v1661
        %v1701 = vunpack.c.l.b16 %v1662
        %v1702 = vunpack.c.l.b16 %v1663
        %v1703 = vpack.c.b16 %v1688, %v1687
        %v1704 = vpack.c.b16 %v1690, %v1689
        %v1705 = vpack.c.b16 %v1692, %v1691
        %v1706 = vpack.c.b16 %v1694, %v1693
        %v1707 = vpack.c.b16 %v1696, %v1695
        %v1708 = vpack.c.b16 %v1698, %v1697
        %v1709 = vpack.c.b16 %v1700, %v1699
        %v1710 = vpack.c.b16 %v1702, %v1701
        %1719 = vmatprep.subr.bf16.mxu0 0
        %1720 = vmatpush1.bf16.msra.mxu0 %v1710
        %1721 = vmatprep.subr.bf16.mxu0 0
        %1722 = vmatpush1.bf16.msra.mxu0 %v1709
        %1723 = vmatprep.subr.bf16.mxu0 0
        %1724 = vmatpush1.bf16.msra.mxu0 %v1708
        %1725 = vmatprep.subr.bf16.mxu0 0
        %1726 = vmatpush1.bf16.msra.mxu0 %v1707
        %1727 = vmatprep.subr.bf16.mxu0 0
        %1728 = vmatpush1.bf16.msra.mxu0 %v1706
        %1729 = vmatprep.subr.bf16.mxu0 0
        %1730 = vmatpush1.bf16.msra.mxu0 %v1705
        %1731 = vmatprep.subr.bf16.mxu0 0
        %1732 = vmatpush1.bf16.msra.mxu0 %v1704
        %1733 = vmatprep.subr.bf16.mxu0 0
        %1734 = vmatpush1.bf16.msra.mxu0 %v1703
        %1735 = vmatprep.subr.bf16.mxu0 0
        %1736 = vmatpush2.bf16.msra.mxu0 0
        %1737 = vmatprep.subr.bf16.mxu0 0
        %1738 = vmatpush2.bf16.msra.mxu0 0
        %1739 = vmatprep.subr.bf16.mxu0 0
        %1740 = vmatpush2.bf16.msra.mxu0 0
        %1741 = vmatprep.subr.bf16.mxu0 0
        %1742 = vmatpush2.bf16.msra.mxu0 0
        %1743 = vmatprep.subr.bf16.mxu0 0
        %1744 = vmatpush2.bf16.msra.mxu0 0
        %1745 = vmatprep.subr.bf16.mxu0 0
        %1746 = vmatpush2.bf16.msra.mxu0 0
        %1747 = vmatprep.subr.bf16.mxu0 0
        %1748 = vmatpush2.bf16.msra.mxu0 0
        %1749 = vmatprep.subr.bf16.mxu0 0
        %1750 = vmatpush2.bf16.msra.mxu0 0
        %1751 = vmatprep.mubr.bf16.mxu0 0
        %1752 = vmatmul.mubr.bf16.gmra.mxu0 %v1647
        %v1753 = vpop.f32.mrf.mxu0
        %v1754 = vadd.f32 %v1669, %v1753
        %v1755 = vpop.f32.mrf.mxu0
        %v1756 = vpop.f32.mrf.mxu0
        %v1757 = vpop.f32.mrf.mxu0
        %1758 = vdwg.mxu0
        %v1759 = vld [vmem:[#allocation2 + $0x10] sm:$0xff]
        %v1760 = vadd.f32 %v1754, %v1759
        %1761 = vst [vmem:[#allocation3 + $0x10] sm:$0xff] %v1760
        %v1762 = vld [vmem:[#allocation3 + $0x10] sm:$0xff]
        %v1763 = vmax.f32 %v1762, 0.0
        %1764 = vst [vmem:[#allocation2 + $0x10] sm:$0xff] %v1763
        %s1765 = scalar_lea.vmem %s6, 1
        %v1766 = vld [vmem:[%s1765] sm:$0x1]
        %v1768 = vlaneseq
        %v1769 = vshrl.u32 %v1768, 7
        %v1770 = vsub.s32 0, %v1769
        %v1771 = vrot.slane %v1766, %v1770
        %v1773 = vadd.f32 %v1771, 0.0
        %v1774 = vld [vmem:[#allocation2 + $0xd] sm:$0xff]
        %v1775 = vpack.c.bf16 %v1774, %v1774
        %s1776 = scalar_lea.vmem [#allocation13], 192
        %v1777 = vld [vmem:[%s1776] sm:$0xf]
        %v1778 = vld [vmem:[%s1776 + $0x4] sm:$0xf]
        %v1779 = vld [vmem:[%s1776 + $0x8] sm:$0xf]
        %v1780 = vld [vmem:[%s1776 + $0xc] sm:$0xf]
        %v1781 = vld [vmem:[%s1776 + $0x10] sm:$0xf]
        %v1782 = vld [vmem:[%s1776 + $0x14] sm:$0xf]
        %v1783 = vld [vmem:[%s1776 + $0x18] sm:$0xf]
        %v1784 = vld [vmem:[%s1776 + $0x1c] sm:$0xf]
        %v1785 = vld [vmem:[%s1776 + $0x20] sm:$0xf]
        %v1786 = vld [vmem:[%s1776 + $0x24] sm:$0xf]
        %v1787 = vld [vmem:[%s1776 + $0x28] sm:$0xf]
        %v1788 = vld [vmem:[%s1776 + $0x2c] sm:$0xf]
        %v1789 = vld [vmem:[%s1776 + $0x30] sm:$0xf]
        %v1790 = vld [vmem:[%s1776 + $0x34] sm:$0xf]
        %v1791 = vld [vmem:[%s1776 + $0x38] sm:$0xf]
        %v1792 = vld [vmem:[%s1776 + $0x3c] sm:$0xf]
        %v1809 = vunpack.c.l.b16 %v1777
        %v1810 = vunpack.c.l.b16 %v1778
        %v1811 = vunpack.c.l.b16 %v1779
        %v1812 = vunpack.c.l.b16 %v1780
        %v1813 = vunpack.c.l.b16 %v1781
        %v1814 = vunpack.c.l.b16 %v1782
        %v1815 = vunpack.c.l.b16 %v1783
        %v1816 = vunpack.c.l.b16 %v1784
        %v1817 = vunpack.c.l.b16 %v1785
        %v1818 = vunpack.c.l.b16 %v1786
        %v1819 = vunpack.c.l.b16 %v1787
        %v1820 = vunpack.c.l.b16 %v1788
        %v1821 = vunpack.c.l.b16 %v1789
        %v1822 = vunpack.c.l.b16 %v1790
        %v1823 = vunpack.c.l.b16 %v1791
        %v1824 = vunpack.c.l.b16 %v1792
        %v1825 = vpack.c.b16 %v1810, %v1809
        %v1826 = vpack.c.b16 %v1812, %v1811
        %v1827 = vpack.c.b16 %v1814, %v1813
        %v1828 = vpack.c.b16 %v1816, %v1815
        %v1829 = vpack.c.b16 %v1818, %v1817
        %v1830 = vpack.c.b16 %v1820, %v1819
        %v1831 = vpack.c.b16 %v1822, %v1821
        %v1832 = vpack.c.b16 %v1824, %v1823
        %1841 = vmatprep.subr.bf16.mxu0 0
        %1842 = vmatpush1.bf16.msra.mxu0 %v1832
        %1843 = vmatprep.subr.bf16.mxu0 0
        %1844 = vmatpush1.bf16.msra.mxu0 %v1831
        %1845 = vmatprep.subr.bf16.mxu0 0
        %1846 = vmatpush1.bf16.msra.mxu0 %v1830
        %1847 = vmatprep.subr.bf16.mxu0 0
        %1848 = vmatpush1.bf16.msra.mxu0 %v1829
        %1849 = vmatprep.subr.bf16.mxu0 0
        %1850 = vmatpush1.bf16.msra.mxu0 %v1828
        %1851 = vmatprep.subr.bf16.mxu0 0
        %1852 = vmatpush1.bf16.msra.mxu0 %v1827
        %1853 = vmatprep.subr.bf16.mxu0 0
        %1854 = vmatpush1.bf16.msra.mxu0 %v1826
        %1855 = vmatprep.subr.bf16.mxu0 0
        %1856 = vmatpush1.bf16.msra.mxu0 %v1825
        %1857 = vmatprep.subr.bf16.mxu0 0
        %1858 = vmatpush2.bf16.msra.mxu0 0
        %1859 = vmatprep.subr.bf16.mxu0 0
        %1860 = vmatpush2.bf16.msra.mxu0 0
        %1861 = vmatprep.subr.bf16.mxu0 0
        %1862 = vmatpush2.bf16.msra.mxu0 0
        %1863 = vmatprep.subr.bf16.mxu0 0
        %1864 = vmatpush2.bf16.msra.mxu0 0
        %1865 = vmatprep.subr.bf16.mxu0 0
        %1866 = vmatpush2.bf16.msra.mxu0 0
        %1867 = vmatprep.subr.bf16.mxu0 0
        %1868 = vmatpush2.bf16.msra.mxu0 0
        %1869 = vmatprep.subr.bf16.mxu0 0
        %1870 = vmatpush2.bf16.msra.mxu0 0
        %1871 = vmatprep.subr.bf16.mxu0 0
        %1872 = vmatpush2.bf16.msra.mxu0 0
        %1873 = vmatprep.mubr.bf16.mxu0 0
        %1874 = vmatmul.mubr.bf16.gmra.mxu0 %v1775
        %v1875 = vpop.f32.mrf.mxu0
        %v1876 = vadd.f32 0.0, %v1875
        %v1877 = vpop.f32.mrf.mxu0
        %v1878 = vpop.f32.mrf.mxu0
        %v1879 = vpop.f32.mrf.mxu0
        %1880 = vdwg.mxu0
        %v1881 = vadd.f32 %v1773, %v1876
        %v1882 = vld [vmem:[#allocation2 + $0x10] sm:$0xff]
        %v1883 = vpack.c.bf16 %v1882, %v1882
        %s1884 = scalar_lea.vmem [#allocation13], 256
        %v1885 = vld [vmem:[%s1884] sm:$0xf]
        %v1886 = vld [vmem:[%s1884 + $0x4] sm:$0xf]
        %v1887 = vld [vmem:[%s1884 + $0x8] sm:$0xf]
        %v1888 = vld [vmem:[%s1884 + $0xc] sm:$0xf]
        %v1889 = vld [vmem:[%s1884 + $0x10] sm:$0xf]
        %v1890 = vld [vmem:[%s1884 + $0x14] sm:$0xf]
        %v1891 = vld [vmem:[%s1884 + $0x18] sm:$0xf]
        %v1892 = vld [vmem:[%s1884 + $0x1c] sm:$0xf]
        %v1893 = vld [vmem:[%s1884 + $0x20] sm:$0xf]
        %v1894 = vld [vmem:[%s1884 + $0x24] sm:$0xf]
        %v1895 = vld [vmem:[%s1884 + $0x28] sm:$0xf]
        %v1896 = vld [vmem:[%s1884 + $0x2c] sm:$0xf]
        %v1897 = vld [vmem:[%s1884 + $0x30] sm:$0xf]
        %v1898 = vld [vmem:[%s1884 + $0x34] sm:$0xf]
        %v1899 = vld [vmem:[%s1884 + $0x38] sm:$0xf]
        %v1900 = vld [vmem:[%s1884 + $0x3c] sm:$0xf]
        %v1917 = vunpack.c.l.b16 %v1885
        %v1918 = vunpack.c.l.b16 %v1886
        %v1919 = vunpack.c.l.b16 %v1887
        %v1920 = vunpack.c.l.b16 %v1888
        %v1921 = vunpack.c.l.b16 %v1889
        %v1922 = vunpack.c.l.b16 %v1890
        %v1923 = vunpack.c.l.b16 %v1891
        %v1924 = vunpack.c.l.b16 %v1892
        %v1925 = vunpack.c.l.b16 %v1893
        %v1926 = vunpack.c.l.b16 %v1894
        %v1927 = vunpack.c.l.b16 %v1895
        %v1928 = vunpack.c.l.b16 %v1896
        %v1929 = vunpack.c.l.b16 %v1897
        %v1930 = vunpack.c.l.b16 %v1898
        %v1931 = vunpack.c.l.b16 %v1899
        %v1932 = vunpack.c.l.b16 %v1900
        %v1933 = vpack.c.b16 %v1918, %v1917
        %v1934 = vpack.c.b16 %v1920, %v1919
        %v1935 = vpack.c.b16 %v1922, %v1921
        %v1936 = vpack.c.b16 %v1924, %v1923
        %v1937 = vpack.c.b16 %v1926, %v1925
        %v1938 = vpack.c.b16 %v1928, %v1927
        %v1939 = vpack.c.b16 %v1930, %v1929
        %v1940 = vpack.c.b16 %v1932, %v1931
        %1949 = vmatprep.subr.bf16.mxu0 0
        %1950 = vmatpush1.bf16.msra.mxu0 %v1940
        %1951 = vmatprep.subr.bf16.mxu0 0
        %1952 = vmatpush1.bf16.msra.mxu0 %v1939
        %1953 = vmatprep.subr.bf16.mxu0 0
        %1954 = vmatpush1.bf16.msra.mxu0 %v1938
        %1955 = vmatprep.subr.bf16.mxu0 0
        %1956 = vmatpush1.bf16.msra.mxu0 %v1937
        %1957 = vmatprep.subr.bf16.mxu0 0
        %1958 = vmatpush1.bf16.msra.mxu0 %v1936
        %1959 = vmatprep.subr.bf16.mxu0 0
        %1960 = vmatpush1.bf16.msra.mxu0 %v1935
        %1961 = vmatprep.subr.bf16.mxu0 0
        %1962 = vmatpush1.bf16.msra.mxu0 %v1934
        %1963 = vmatprep.subr.bf16.mxu0 0
        %1964 = vmatpush1.bf16.msra.mxu0 %v1933
        %1965 = vmatprep.subr.bf16.mxu0 0
        %1966 = vmatpush2.bf16.msra.mxu0 0
        %1967 = vmatprep.subr.bf16.mxu0 0
        %1968 = vmatpush2.bf16.msra.mxu0 0
        %1969 = vmatprep.subr.bf16.mxu0 0
        %1970 = vmatpush2.bf16.msra.mxu0 0
        %1971 = vmatprep.subr.bf16.mxu0 0
        %1972 = vmatpush2.bf16.msra.mxu0 0
        %1973 = vmatprep.subr.bf16.mxu0 0
        %1974 = vmatpush2.bf16.msra.mxu0 0
        %1975 = vmatprep.subr.bf16.mxu0 0
        %1976 = vmatpush2.bf16.msra.mxu0 0
        %1977 = vmatprep.subr.bf16.mxu0 0
        %1978 = vmatpush2.bf16.msra.mxu0 0
        %1979 = vmatprep.subr.bf16.mxu0 0
        %1980 = vmatpush2.bf16.msra.mxu0 0
        %1981 = vmatprep.mubr.bf16.mxu0 0
        %1982 = vmatmul.mubr.bf16.gmra.mxu0 %v1883
        %v1983 = vpop.f32.mrf.mxu0
        %v1984 = vadd.f32 0.0, %v1983
        %v1985 = vpop.f32.mrf.mxu0
        %v1986 = vpop.f32.mrf.mxu0
        %v1987 = vpop.f32.mrf.mxu0
        %1988 = vdwg.mxu0
        %v1989 = vadd.f32 %v1881, %v1984
        %v1990 = vld [vmem:[#allocation2 + $0x13] sm:$0xff]
        %v1991 = vpack.c.bf16 %v1990, %v1990
        %s1992 = scalar_lea.vmem [#allocation13], 320
        %v1993 = vld [vmem:[%s1992] sm:$0xf]
        %v1994 = vld [vmem:[%s1992 + $0x4] sm:$0xf]
        %v1995 = vld [vmem:[%s1992 + $0x8] sm:$0xf]
        %v1996 = vld [vmem:[%s1992 + $0xc] sm:$0xf]
        %v1997 = vld [vmem:[%s1992 + $0x10] sm:$0xf]
        %v1998 = vld [vmem:[%s1992 + $0x14] sm:$0xf]
        %v1999 = vld [vmem:[%s1992 + $0x18] sm:$0xf]
        %v2000 = vld [vmem:[%s1992 + $0x1c] sm:$0xf]
        %v2001 = vld [vmem:[%s1992 + $0x20] sm:$0xf]
        %v2002 = vld [vmem:[%s1992 + $0x24] sm:$0xf]
        %v2003 = vld [vmem:[%s1992 + $0x28] sm:$0xf]
        %v2004 = vld [vmem:[%s1992 + $0x2c] sm:$0xf]
        %v2005 = vld [vmem:[%s1992 + $0x30] sm:$0xf]
        %v2006 = vld [vmem:[%s1992 + $0x34] sm:$0xf]
        %v2007 = vld [vmem:[%s1992 + $0x38] sm:$0xf]
        %v2008 = vld [vmem:[%s1992 + $0x3c] sm:$0xf]
        %v2025 = vunpack.c.l.b16 %v1993
        %v2026 = vunpack.c.l.b16 %v1994
        %v2027 = vunpack.c.l.b16 %v1995
        %v2028 = vunpack.c.l.b16 %v1996
        %v2029 = vunpack.c.l.b16 %v1997
        %v2030 = vunpack.c.l.b16 %v1998
        %v2031 = vunpack.c.l.b16 %v1999
        %v2032 = vunpack.c.l.b16 %v2000
        %v2033 = vunpack.c.l.b16 %v2001
        %v2034 = vunpack.c.l.b16 %v2002
        %v2035 = vunpack.c.l.b16 %v2003
        %v2036 = vunpack.c.l.b16 %v2004
        %v2037 = vunpack.c.l.b16 %v2005
        %v2038 = vunpack.c.l.b16 %v2006
        %v2039 = vunpack.c.l.b16 %v2007
        %v2040 = vunpack.c.l.b16 %v2008
        %v2041 = vpack.c.b16 %v2026, %v2025
        %v2042 = vpack.c.b16 %v2028, %v2027
        %v2043 = vpack.c.b16 %v2030, %v2029
        %v2044 = vpack.c.b16 %v2032, %v2031
        %v2045 = vpack.c.b16 %v2034, %v2033
        %v2046 = vpack.c.b16 %v2036, %v2035
        %v2047 = vpack.c.b16 %v2038, %v2037
        %v2048 = vpack.c.b16 %v2040, %v2039
        %2057 = vmatprep.subr.bf16.mxu0 0
        %2058 = vmatpush1.bf16.msra.mxu0 %v2048
        %2059 = vmatprep.subr.bf16.mxu0 0
        %2060 = vmatpush1.bf16.msra.mxu0 %v2047
        %2061 = vmatprep.subr.bf16.mxu0 0
        %2062 = vmatpush1.bf16.msra.mxu0 %v2046
        %2063 = vmatprep.subr.bf16.mxu0 0
        %2064 = vmatpush1.bf16.msra.mxu0 %v2045
        %2065 = vmatprep.subr.bf16.mxu0 0
        %2066 = vmatpush1.bf16.msra.mxu0 %v2044
        %2067 = vmatprep.subr.bf16.mxu0 0
        %2068 = vmatpush1.bf16.msra.mxu0 %v2043
        %2069 = vmatprep.subr.bf16.mxu0 0
        %2070 = vmatpush1.bf16.msra.mxu0 %v2042
        %2071 = vmatprep.subr.bf16.mxu0 0
        %2072 = vmatpush1.bf16.msra.mxu0 %v2041
        %2073 = vmatprep.subr.bf16.mxu0 0
        %2074 = vmatpush2.bf16.msra.mxu0 0
        %2075 = vmatprep.subr.bf16.mxu0 0
        %2076 = vmatpush2.bf16.msra.mxu0 0
        %2077 = vmatprep.subr.bf16.mxu0 0
        %2078 = vmatpush2.bf16.msra.mxu0 0
        %2079 = vmatprep.subr.bf16.mxu0 0
        %2080 = vmatpush2.bf16.msra.mxu0 0
        %2081 = vmatprep.subr.bf16.mxu0 0
        %2082 = vmatpush2.bf16.msra.mxu0 0
        %2083 = vmatprep.subr.bf16.mxu0 0
        %2084 = vmatpush2.bf16.msra.mxu0 0
        %2085 = vmatprep.subr.bf16.mxu0 0
        %2086 = vmatpush2.bf16.msra.mxu0 0
        %2087 = vmatprep.subr.bf16.mxu0 0
        %2088 = vmatpush2.bf16.msra.mxu0 0
        %2089 = vmatprep.mubr.bf16.mxu0 0
        %2090 = vmatmul.mubr.bf16.gmra.mxu0 %v1991
        %v2091 = vpop.f32.mrf.mxu0
        %v2092 = vadd.f32 0.0, %v2091
        %v2093 = vpop.f32.mrf.mxu0
        %v2094 = vpop.f32.mrf.mxu0
        %v2095 = vpop.f32.mrf.mxu0
        %2096 = vdwg.mxu0
        %v2097 = vadd.f32 %v1989, %v2092
        %v2098 = vmax.f32 %v2097, 0.0
        %v2099 = vpack.c.bf16 %v2098, %v2098
        %s2100 = scalar_lea.vmem [#allocation15], 64
        %v2101 = vld [vmem:[%s2100] sm:$0xf]
        %v2102 = vld [vmem:[%s2100 + $0x4] sm:$0xf]
        %v2103 = vld [vmem:[%s2100 + $0x8] sm:$0xf]
        %v2104 = vld [vmem:[%s2100 + $0xc] sm:$0xf]
        %v2105 = vld [vmem:[%s2100 + $0x10] sm:$0xf]
        %v2106 = vld [vmem:[%s2100 + $0x14] sm:$0xf]
        %v2107 = vld [vmem:[%s2100 + $0x18] sm:$0xf]
        %v2108 = vld [vmem:[%s2100 + $0x1c] sm:$0xf]
        %v2109 = vld [vmem:[%s2100 + $0x20] sm:$0xf]
        %v2110 = vld [vmem:[%s2100 + $0x24] sm:$0xf]
        %v2111 = vld [vmem:[%s2100 + $0x28] sm:$0xf]
        %v2112 = vld [vmem:[%s2100 + $0x2c] sm:$0xf]
        %v2113 = vld [vmem:[%s2100 + $0x30] sm:$0xf]
        %v2114 = vld [vmem:[%s2100 + $0x34] sm:$0xf]
        %v2115 = vld [vmem:[%s2100 + $0x38] sm:$0xf]
        %v2116 = vld [vmem:[%s2100 + $0x3c] sm:$0xf]
        %s2117 = scalar_lea.vmem %s8, 1
        %v2118 = vld [vmem:[%s2117] sm:$0x1]
        %v2120 = vlaneseq
        %v2121 = vshrl.u32 %v2120, 7
        %v2122 = vsub.s32 0, %v2121
        %v2123 = vrot.slane %v2118, %v2122
        %v2141 = vunpack.c.l.b16 %v2101
        %v2142 = vunpack.c.l.b16 %v2102
        %v2143 = vunpack.c.l.b16 %v2103
        %v2144 = vunpack.c.l.b16 %v2104
        %v2145 = vunpack.c.l.b16 %v2105
        %v2146 = vunpack.c.l.b16 %v2106
        %v2147 = vunpack.c.l.b16 %v2107
        %v2148 = vunpack.c.l.b16 %v2108
        %v2149 = vunpack.c.l.b16 %v2109
        %v2150 = vunpack.c.l.b16 %v2110
        %v2151 = vunpack.c.l.b16 %v2111
        %v2152 = vunpack.c.l.b16 %v2112
        %v2153 = vunpack.c.l.b16 %v2113
        %v2154 = vunpack.c.l.b16 %v2114
        %v2155 = vunpack.c.l.b16 %v2115
        %v2156 = vunpack.c.l.b16 %v2116
        %v2157 = vpack.c.b16 %v2142, %v2141
        %v2158 = vpack.c.b16 %v2144, %v2143
        %v2159 = vpack.c.b16 %v2146, %v2145
        %v2160 = vpack.c.b16 %v2148, %v2147
        %v2161 = vpack.c.b16 %v2150, %v2149
        %v2162 = vpack.c.b16 %v2152, %v2151
        %v2163 = vpack.c.b16 %v2154, %v2153
        %v2164 = vpack.c.b16 %v2156, %v2155
        %2173 = vmatprep.subr.bf16.mxu0 0
        %2174 = vmatpush1.bf16.msra.mxu0 %v2164
        %2175 = vmatprep.subr.bf16.mxu0 0
        %2176 = vmatpush1.bf16.msra.mxu0 %v2163
        %2177 = vmatprep.subr.bf16.mxu0 0
        %2178 = vmatpush1.bf16.msra.mxu0 %v2162
        %2179 = vmatprep.subr.bf16.mxu0 0
        %2180 = vmatpush1.bf16.msra.mxu0 %v2161
        %2181 = vmatprep.subr.bf16.mxu0 0
        %2182 = vmatpush1.bf16.msra.mxu0 %v2160
        %2183 = vmatprep.subr.bf16.mxu0 0
        %2184 = vmatpush1.bf16.msra.mxu0 %v2159
        %2185 = vmatprep.subr.bf16.mxu0 0
        %2186 = vmatpush1.bf16.msra.mxu0 %v2158
        %2187 = vmatprep.subr.bf16.mxu0 0
        %2188 = vmatpush1.bf16.msra.mxu0 %v2157
        %2189 = vmatprep.subr.bf16.mxu0 0
        %2190 = vmatpush2.bf16.msra.mxu0 0
        %2191 = vmatprep.subr.bf16.mxu0 0
        %2192 = vmatpush2.bf16.msra.mxu0 0
        %2193 = vmatprep.subr.bf16.mxu0 0
        %2194 = vmatpush2.bf16.msra.mxu0 0
        %2195 = vmatprep.subr.bf16.mxu0 0
        %2196 = vmatpush2.bf16.msra.mxu0 0
        %2197 = vmatprep.subr.bf16.mxu0 0
        %2198 = vmatpush2.bf16.msra.mxu0 0
        %2199 = vmatprep.subr.bf16.mxu0 0
        %2200 = vmatpush2.bf16.msra.mxu0 0
        %2201 = vmatprep.subr.bf16.mxu0 0
        %2202 = vmatpush2.bf16.msra.mxu0 0
        %2203 = vmatprep.subr.bf16.mxu0 0
        %2204 = vmatpush2.bf16.msra.mxu0 0
        %2205 = vmatprep.mubr.bf16.mxu0 0
        %2206 = vmatmul.mubr.bf16.gmra.mxu0 %v2099
        %v2207 = vpop.f32.mrf.mxu0
        %v2208 = vadd.f32 %v2123, %v2207
        %v2209 = vpop.f32.mrf.mxu0
        %v2210 = vpop.f32.mrf.mxu0
        %v2211 = vpop.f32.mrf.mxu0
        %2212 = vdwg.mxu0
        %v2213 = vld [vmem:[#allocation3 + $0x10] sm:$0xff]
        %v2214 = vadd.f32 %v2208, %v2213
        %2215 = vst [vmem:[#allocation2 + $0x10] sm:$0xff] %v2214
        %v2216 = vld [vmem:[#allocation2 + $0x10] sm:$0xff]
        %v2217 = vmax.f32 %v2216, 0.0
        %2218 = vst [vmem:[#allocation3 + $0x10] sm:$0xff] %v2217
        %s2219 = scalar_lea.vmem %s6, 2
        %v2220 = vld [vmem:[%s2219] sm:$0x1]
        %v2222 = vlaneseq
        %v2223 = vshrl.u32 %v2222, 7
        %v2224 = vsub.s32 0, %v2223
        %v2225 = vrot.slane %v2220, %v2224
        %v2227 = vadd.f32 %v2225, 0.0
        %v2228 = vld [vmem:[#allocation3 + $0xf] sm:$0xff]
        %v2229 = vpack.c.bf16 %v2228, %v2228
        %s2230 = scalar_lea.vmem [#allocation13], 384
        %v2231 = vld [vmem:[%s2230] sm:$0xf]
        %v2232 = vld [vmem:[%s2230 + $0x4] sm:$0xf]
        %v2233 = vld [vmem:[%s2230 + $0x8] sm:$0xf]
        %v2234 = vld [vmem:[%s2230 + $0xc] sm:$0xf]
        %v2235 = vld [vmem:[%s2230 + $0x10] sm:$0xf]
        %v2236 = vld [vmem:[%s2230 + $0x14] sm:$0xf]
        %v2237 = vld [vmem:[%s2230 + $0x18] sm:$0xf]
        %v2238 = vld [vmem:[%s2230 + $0x1c] sm:$0xf]
        %v2239 = vld [vmem:[%s2230 + $0x20] sm:$0xf]
        %v2240 = vld [vmem:[%s2230 + $0x24] sm:$0xf]
        %v2241 = vld [vmem:[%s2230 + $0x28] sm:$0xf]
        %v2242 = vld [vmem:[%s2230 + $0x2c] sm:$0xf]
        %v2243 = vld [vmem:[%s2230 + $0x30] sm:$0xf]
        %v2244 = vld [vmem:[%s2230 + $0x34] sm:$0xf]
        %v2245 = vld [vmem:[%s2230 + $0x38] sm:$0xf]
        %v2246 = vld [vmem:[%s2230 + $0x3c] sm:$0xf]
        %v2263 = vunpack.c.l.b16 %v2231
        %v2264 = vunpack.c.l.b16 %v2232
        %v2265 = vunpack.c.l.b16 %v2233
        %v2266 = vunpack.c.l.b16 %v2234
        %v2267 = vunpack.c.l.b16 %v2235
        %v2268 = vunpack.c.l.b16 %v2236
        %v2269 = vunpack.c.l.b16 %v2237
        %v2270 = vunpack.c.l.b16 %v2238
        %v2271 = vunpack.c.l.b16 %v2239
        %v2272 = vunpack.c.l.b16 %v2240
        %v2273 = vunpack.c.l.b16 %v2241
        %v2274 = vunpack.c.l.b16 %v2242
        %v2275 = vunpack.c.l.b16 %v2243
        %v2276 = vunpack.c.l.b16 %v2244
        %v2277 = vunpack.c.l.b16 %v2245
        %v2278 = vunpack.c.l.b16 %v2246
        %v2279 = vpack.c.b16 %v2264, %v2263
        %v2280 = vpack.c.b16 %v2266, %v2265
        %v2281 = vpack.c.b16 %v2268, %v2267
        %v2282 = vpack.c.b16 %v2270, %v2269
        %v2283 = vpack.c.b16 %v2272, %v2271
        %v2284 = vpack.c.b16 %v2274, %v2273
        %v2285 = vpack.c.b16 %v2276, %v2275
        %v2286 = vpack.c.b16 %v2278, %v2277
        %2295 = vmatprep.subr.bf16.mxu0 0
        %2296 = vmatpush1.bf16.msra.mxu0 %v2286
        %2297 = vmatprep.subr.bf16.mxu0 0
        %2298 = vmatpush1.bf16.msra.mxu0 %v2285
        %2299 = vmatprep.subr.bf16.mxu0 0
        %2300 = vmatpush1.bf16.msra.mxu0 %v2284
        %2301 = vmatprep.subr.bf16.mxu0 0
        %2302 = vmatpush1.bf16.msra.mxu0 %v2283
        %2303 = vmatprep.subr.bf16.mxu0 0
        %2304 = vmatpush1.bf16.msra.mxu0 %v2282
        %2305 = vmatprep.subr.bf16.mxu0 0
        %2306 = vmatpush1.bf16.msra.mxu0 %v2281
        %2307 = vmatprep.subr.bf16.mxu0 0
        %2308 = vmatpush1.bf16.msra.mxu0 %v2280
        %2309 = vmatprep.subr.bf16.mxu0 0
        %2310 = vmatpush1.bf16.msra.mxu0 %v2279
        %2311 = vmatprep.subr.bf16.mxu0 0
        %2312 = vmatpush2.bf16.msra.mxu0 0
        %2313 = vmatprep.subr.bf16.mxu0 0
        %2314 = vmatpush2.bf16.msra.mxu0 0
        %2315 = vmatprep.subr.bf16.mxu0 0
        %2316 = vmatpush2.bf16.msra.mxu0 0
        %2317 = vmatprep.subr.bf16.mxu0 0
        %2318 = vmatpush2.bf16.msra.mxu0 0
        %2319 = vmatprep.subr.bf16.mxu0 0
        %2320 = vmatpush2.bf16.msra.mxu0 0
        %2321 = vmatprep.subr.bf16.mxu0 0
        %2322 = vmatpush2.bf16.msra.mxu0 0
        %2323 = vmatprep.subr.bf16.mxu0 0
        %2324 = vmatpush2.bf16.msra.mxu0 0
        %2325 = vmatprep.subr.bf16.mxu0 0
        %2326 = vmatpush2.bf16.msra.mxu0 0
        %2327 = vmatprep.mubr.bf16.mxu0 0
        %2328 = vmatmul.mubr.bf16.gmra.mxu0 %v2229
        %v2329 = vpop.f32.mrf.mxu0
        %v2330 = vadd.f32 0.0, %v2329
        %v2331 = vpop.f32.mrf.mxu0
        %v2332 = vpop.f32.mrf.mxu0
        %v2333 = vpop.f32.mrf.mxu0
        %2334 = vdwg.mxu0
        %v2335 = vadd.f32 %v2227, %v2330
        %v2336 = vld [vmem:[#allocation3 + $0x10] sm:$0xff]
        %v2337 = vpack.c.bf16 %v2336, %v2336
        %s2338 = scalar_lea.vmem [#allocation13], 448
        %v2339 = vld [vmem:[%s2338] sm:$0xf]
        %v2340 = vld [vmem:[%s2338 + $0x4] sm:$0xf]
        %v2341 = vld [vmem:[%s2338 + $0x8] sm:$0xf]
        %v2342 = vld [vmem:[%s2338 + $0xc] sm:$0xf]
        %v2343 = vld [vmem:[%s2338 + $0x10] sm:$0xf]
        %v2344 = vld [vmem:[%s2338 + $0x14] sm:$0xf]
        %v2345 = vld [vmem:[%s2338 + $0x18] sm:$0xf]
        %v2346 = vld [vmem:[%s2338 + $0x1c] sm:$0xf]
        %v2347 = vld [vmem:[%s2338 + $0x20] sm:$0xf]
        %v2348 = vld [vmem:[%s2338 + $0x24] sm:$0xf]
        %v2349 = vld [vmem:[%s2338 + $0x28] sm:$0xf]
        %v2350 = vld [vmem:[%s2338 + $0x2c] sm:$0xf]
        %v2351 = vld [vmem:[%s2338 + $0x30] sm:$0xf]
        %v2352 = vld [vmem:[%s2338 + $0x34] sm:$0xf]
        %v2353 = vld [vmem:[%s2338 + $0x38] sm:$0xf]
        %v2354 = vld [vmem:[%s2338 + $0x3c] sm:$0xf]
        %v2371 = vunpack.c.l.b16 %v2339
        %v2372 = vunpack.c.l.b16 %v2340
        %v2373 = vunpack.c.l.b16 %v2341
        %v2374 = vunpack.c.l.b16 %v2342
        %v2375 = vunpack.c.l.b16 %v2343
        %v2376 = vunpack.c.l.b16 %v2344
        %v2377 = vunpack.c.l.b16 %v2345
        %v2378 = vunpack.c.l.b16 %v2346
        %v2379 = vunpack.c.l.b16 %v2347
        %v2380 = vunpack.c.l.b16 %v2348
        %v2381 = vunpack.c.l.b16 %v2349
        %v2382 = vunpack.c.l.b16 %v2350
        %v2383 = vunpack.c.l.b16 %v2351
        %v2384 = vunpack.c.l.b16 %v2352
        %v2385 = vunpack.c.l.b16 %v2353
        %v2386 = vunpack.c.l.b16 %v2354
        %v2387 = vpack.c.b16 %v2372, %v2371
        %v2388 = vpack.c.b16 %v2374, %v2373
        %v2389 = vpack.c.b16 %v2376, %v2375
        %v2390 = vpack.c.b16 %v2378, %v2377
        %v2391 = vpack.c.b16 %v2380, %v2379
        %v2392 = vpack.c.b16 %v2382, %v2381
        %v2393 = vpack.c.b16 %v2384, %v2383
        %v2394 = vpack.c.b16 %v2386, %v2385
        %2403 = vmatprep.subr.bf16.mxu0 0
        %2404 = vmatpush1.bf16.msra.mxu0 %v2394
        %2405 = vmatprep.subr.bf16.mxu0 0
        %2406 = vmatpush1.bf16.msra.mxu0 %v2393
        %2407 = vmatprep.subr.bf16.mxu0 0
        %2408 = vmatpush1.bf16.msra.mxu0 %v2392
        %2409 = vmatprep.subr.bf16.mxu0 0
        %2410 = vmatpush1.bf16.msra.mxu0 %v2391
        %2411 = vmatprep.subr.bf16.mxu0 0
        %2412 = vmatpush1.bf16.msra.mxu0 %v2390
        %2413 = vmatprep.subr.bf16.mxu0 0
        %2414 = vmatpush1.bf16.msra.mxu0 %v2389
        %2415 = vmatprep.subr.bf16.mxu0 0
        %2416 = vmatpush1.bf16.msra.mxu0 %v2388
        %2417 = vmatprep.subr.bf16.mxu0 0
        %2418 = vmatpush1.bf16.msra.mxu0 %v2387
        %2419 = vmatprep.subr.bf16.mxu0 0
        %2420 = vmatpush2.bf16.msra.mxu0 0
        %2421 = vmatprep.subr.bf16.mxu0 0
        %2422 = vmatpush2.bf16.msra.mxu0 0
        %2423 = vmatprep.subr.bf16.mxu0 0
        %2424 = vmatpush2.bf16.msra.mxu0 0
        %2425 = vmatprep.subr.bf16.mxu0 0
        %2426 = vmatpush2.bf16.msra.mxu0 0
        %2427 = vmatprep.subr.bf16.mxu0 0
        %2428 = vmatpush2.bf16.msra.mxu0 0
        %2429 = vmatprep.subr.bf16.mxu0 0
        %2430 = vmatpush2.bf16.msra.mxu0 0
        %2431 = vmatprep.subr.bf16.mxu0 0
        %2432 = vmatpush2.bf16.msra.mxu0 0
        %2433 = vmatprep.subr.bf16.mxu0 0
        %2434 = vmatpush2.bf16.msra.mxu0 0
        %2435 = vmatprep.mubr.bf16.mxu0 0
        %2436 = vmatmul.mubr.bf16.gmra.mxu0 %v2337
        %v2437 = vpop.f32.mrf.mxu0
        %v2438 = vadd.f32 0.0, %v2437
        %v2439 = vpop.f32.mrf.mxu0
        %v2440 = vpop.f32.mrf.mxu0
        %v2441 = vpop.f32.mrf.mxu0
        %2442 = vdwg.mxu0
        %v2443 = vadd.f32 %v2335, %v2438
        %v2444 = vld [vmem:[#allocation3 + $0x11] sm:$0xff]
        %v2445 = vpack.c.bf16 %v2444, %v2444
        %s2446 = scalar_lea.vmem [#allocation13], 512
        %v2447 = vld [vmem:[%s2446] sm:$0xf]
        %v2448 = vld [vmem:[%s2446 + $0x4] sm:$0xf]
        %v2449 = vld [vmem:[%s2446 + $0x8] sm:$0xf]
        %v2450 = vld [vmem:[%s2446 + $0xc] sm:$0xf]
        %v2451 = vld [vmem:[%s2446 + $0x10] sm:$0xf]
        %v2452 = vld [vmem:[%s2446 + $0x14] sm:$0xf]
        %v2453 = vld [vmem:[%s2446 + $0x18] sm:$0xf]
        %v2454 = vld [vmem:[%s2446 + $0x1c] sm:$0xf]
        %v2455 = vld [vmem:[%s2446 + $0x20] sm:$0xf]
        %v2456 = vld [vmem:[%s2446 + $0x24] sm:$0xf]
        %v2457 = vld [vmem:[%s2446 + $0x28] sm:$0xf]
        %v2458 = vld [vmem:[%s2446 + $0x2c] sm:$0xf]
        %v2459 = vld [vmem:[%s2446 + $0x30] sm:$0xf]
        %v2460 = vld [vmem:[%s2446 + $0x34] sm:$0xf]
        %v2461 = vld [vmem:[%s2446 + $0x38] sm:$0xf]
        %v2462 = vld [vmem:[%s2446 + $0x3c] sm:$0xf]
        %v2479 = vunpack.c.l.b16 %v2447
        %v2480 = vunpack.c.l.b16 %v2448
        %v2481 = vunpack.c.l.b16 %v2449
        %v2482 = vunpack.c.l.b16 %v2450
        %v2483 = vunpack.c.l.b16 %v2451
        %v2484 = vunpack.c.l.b16 %v2452
        %v2485 = vunpack.c.l.b16 %v2453
        %v2486 = vunpack.c.l.b16 %v2454
        %v2487 = vunpack.c.l.b16 %v2455
        %v2488 = vunpack.c.l.b16 %v2456
        %v2489 = vunpack.c.l.b16 %v2457
        %v2490 = vunpack.c.l.b16 %v2458
        %v2491 = vunpack.c.l.b16 %v2459
        %v2492 = vunpack.c.l.b16 %v2460
        %v2493 = vunpack.c.l.b16 %v2461
        %v2494 = vunpack.c.l.b16 %v2462
        %v2495 = vpack.c.b16 %v2480, %v2479
        %v2496 = vpack.c.b16 %v2482, %v2481
        %v2497 = vpack.c.b16 %v2484, %v2483
        %v2498 = vpack.c.b16 %v2486, %v2485
        %v2499 = vpack.c.b16 %v2488, %v2487
        %v2500 = vpack.c.b16 %v2490, %v2489
        %v2501 = vpack.c.b16 %v2492, %v2491
        %v2502 = vpack.c.b16 %v2494, %v2493
        %2511 = vmatprep.subr.bf16.mxu0 0
        %2512 = vmatpush1.bf16.msra.mxu0 %v2502
        %2513 = vmatprep.subr.bf16.mxu0 0
        %2514 = vmatpush1.bf16.msra.mxu0 %v2501
        %2515 = vmatprep.subr.bf16.mxu0 0
        %2516 = vmatpush1.bf16.msra.mxu0 %v2500
        %2517 = vmatprep.subr.bf16.mxu0 0
        %2518 = vmatpush1.bf16.msra.mxu0 %v2499
        %2519 = vmatprep.subr.bf16.mxu0 0
        %2520 = vmatpush1.bf16.msra.mxu0 %v2498
        %2521 = vmatprep.subr.bf16.mxu0 0
        %2522 = vmatpush1.bf16.msra.mxu0 %v2497
        %2523 = vmatprep.subr.bf16.mxu0 0
        %2524 = vmatpush1.bf16.msra.mxu0 %v2496
        %2525 = vmatprep.subr.bf16.mxu0 0
        %2526 = vmatpush1.bf16.msra.mxu0 %v2495
        %2527 = vmatprep.subr.bf16.mxu0 0
        %2528 = vmatpush2.bf16.msra.mxu0 0
        %2529 = vmatprep.subr.bf16.mxu0 0
        %2530 = vmatpush2.bf16.msra.mxu0 0
        %2531 = vmatprep.subr.bf16.mxu0 0
        %2532 = vmatpush2.bf16.msra.mxu0 0
        %2533 = vmatprep.subr.bf16.mxu0 0
        %2534 = vmatpush2.bf16.msra.mxu0 0
        %2535 = vmatprep.subr.bf16.mxu0 0
        %2536 = vmatpush2.bf16.msra.mxu0 0
        %2537 = vmatprep.subr.bf16.mxu0 0
        %2538 = vmatpush2.bf16.msra.mxu0 0
        %2539 = vmatprep.subr.bf16.mxu0 0
        %2540 = vmatpush2.bf16.msra.mxu0 0
        %2541 = vmatprep.subr.bf16.mxu0 0
        %2542 = vmatpush2.bf16.msra.mxu0 0
        %2543 = vmatprep.mubr.bf16.mxu0 0
        %2544 = vmatmul.mubr.bf16.gmra.mxu0 %v2445
        %v2545 = vpop.f32.mrf.mxu0
        %v2546 = vadd.f32 0.0, %v2545
        %v2547 = vpop.f32.mrf.mxu0
        %v2548 = vpop.f32.mrf.mxu0
        %v2549 = vpop.f32.mrf.mxu0
        %2550 = vdwg.mxu0
        %v2551 = vadd.f32 %v2443, %v2546
        %v2552 = vmax.f32 %v2551, 0.0
        %v2553 = vpack.c.bf16 %v2552, %v2552
        %s2554 = scalar_lea.vmem [#allocation15], 128
        %v2555 = vld [vmem:[%s2554] sm:$0xf]
        %v2556 = vld [vmem:[%s2554 + $0x4] sm:$0xf]
        %v2557 = vld [vmem:[%s2554 + $0x8] sm:$0xf]
        %v2558 = vld [vmem:[%s2554 + $0xc] sm:$0xf]
        %v2559 = vld [vmem:[%s2554 + $0x10] sm:$0xf]
        %v2560 = vld [vmem:[%s2554 + $0x14] sm:$0xf]
        %v2561 = vld [vmem:[%s2554 + $0x18] sm:$0xf]
        %v2562 = vld [vmem:[%s2554 + $0x1c] sm:$0xf]
        %v2563 = vld [vmem:[%s2554 + $0x20] sm:$0xf]
        %v2564 = vld [vmem:[%s2554 + $0x24] sm:$0xf]
        %v2565 = vld [vmem:[%s2554 + $0x28] sm:$0xf]
        %v2566 = vld [vmem:[%s2554 + $0x2c] sm:$0xf]
        %v2567 = vld [vmem:[%s2554 + $0x30] sm:$0xf]
        %v2568 = vld [vmem:[%s2554 + $0x34] sm:$0xf]
        %v2569 = vld [vmem:[%s2554 + $0x38] sm:$0xf]
        %v2570 = vld [vmem:[%s2554 + $0x3c] sm:$0xf]
        %s2571 = scalar_lea.vmem %s8, 2
        %v2572 = vld [vmem:[%s2571] sm:$0x1]
        %v2574 = vlaneseq
        %v2575 = vshrl.u32 %v2574, 7
        %v2576 = vsub.s32 0, %v2575
        %v2577 = vrot.slane %v2572, %v2576
        %v2595 = vunpack.c.l.b16 %v2555
        %v2596 = vunpack.c.l.b16 %v2556
        %v2597 = vunpack.c.l.b16 %v2557
        %v2598 = vunpack.c.l.b16 %v2558
        %v2599 = vunpack.c.l.b16 %v2559
        %v2600 = vunpack.c.l.b16 %v2560
        %v2601 = vunpack.c.l.b16 %v2561
        %v2602 = vunpack.c.l.b16 %v2562
        %v2603 = vunpack.c.l.b16 %v2563
        %v2604 = vunpack.c.l.b16 %v2564
        %v2605 = vunpack.c.l.b16 %v2565
        %v2606 = vunpack.c.l.b16 %v2566
        %v2607 = vunpack.c.l.b16 %v2567
        %v2608 = vunpack.c.l.b16 %v2568
        %v2609 = vunpack.c.l.b16 %v2569
        %v2610 = vunpack.c.l.b16 %v2570
        %v2611 = vpack.c.b16 %v2596, %v2595
        %v2612 = vpack.c.b16 %v2598, %v2597
        %v2613 = vpack.c.b16 %v2600, %v2599
        %v2614 = vpack.c.b16 %v2602, %v2601
        %v2615 = vpack.c.b16 %v2604, %v2603
        %v2616 = vpack.c.b16 %v2606, %v2605
        %v2617 = vpack.c.b16 %v2608, %v2607
        %v2618 = vpack.c.b16 %v2610, %v2609
        %2627 = vmatprep.subr.bf16.mxu0 0
        %2628 = vmatpush1.bf16.msra.mxu0 %v2618
        %2629 = vmatprep.subr.bf16.mxu0 0
        %2630 = vmatpush1.bf16.msra.mxu0 %v2617
        %2631 = vmatprep.subr.bf16.mxu0 0
        %2632 = vmatpush1.bf16.msra.mxu0 %v2616
        %2633 = vmatprep.subr.bf16.mxu0 0
        %2634 = vmatpush1.bf16.msra.mxu0 %v2615
        %2635 = vmatprep.subr.bf16.mxu0 0
        %2636 = vmatpush1.bf16.msra.mxu0 %v2614
        %2637 = vmatprep.subr.bf16.mxu0 0
        %2638 = vmatpush1.bf16.msra.mxu0 %v2613
        %2639 = vmatprep.subr.bf16.mxu0 0
        %2640 = vmatpush1.bf16.msra.mxu0 %v2612
        %2641 = vmatprep.subr.bf16.mxu0 0
        %2642 = vmatpush1.bf16.msra.mxu0 %v2611
        %2643 = vmatprep.subr.bf16.mxu0 0
        %2644 = vmatpush2.bf16.msra.mxu0 0
        %2645 = vmatprep.subr.bf16.mxu0 0
        %2646 = vmatpush2.bf16.msra.mxu0 0
        %2647 = vmatprep.subr.bf16.mxu0 0
        %2648 = vmatpush2.bf16.msra.mxu0 0
        %2649 = vmatprep.subr.bf16.mxu0 0
        %2650 = vmatpush2.bf16.msra.mxu0 0
        %2651 = vmatprep.subr.bf16.mxu0 0
        %2652 = vmatpush2.bf16.msra.mxu0 0
        %2653 = vmatprep.subr.bf16.mxu0 0
        %2654 = vmatpush2.bf16.msra.mxu0 0
        %2655 = vmatprep.subr.bf16.mxu0 0
        %2656 = vmatpush2.bf16.msra.mxu0 0
        %2657 = vmatprep.subr.bf16.mxu0 0
        %2658 = vmatpush2.bf16.msra.mxu0 0
        %2659 = vmatprep.mubr.bf16.mxu0 0
        %2660 = vmatmul.mubr.bf16.gmra.mxu0 %v2553
        %v2661 = vpop.f32.mrf.mxu0
        %v2662 = vadd.f32 %v2577, %v2661
        %v2663 = vpop.f32.mrf.mxu0
        %v2664 = vpop.f32.mrf.mxu0
        %v2665 = vpop.f32.mrf.mxu0
        %2666 = vdwg.mxu0
        %v2667 = vld [vmem:[#allocation2 + $0x10] sm:$0xff]
        %v2668 = vadd.f32 %v2662, %v2667
        %2669 = vst [vmem:[#allocation3 + $0x10] sm:$0xff] %v2668
        %s2670 = scalar_lea.vmem [#allocation12], 1
        %v2671 = vld [vmem:[%s2670] sm:$0x1]
        %v2673 = vlaneseq
        %v2674 = vshrl.u32 %v2673, 7
        %v2675 = vsub.s32 0, %v2674
        %v2676 = vrot.slane %v2671, %v2675
        %v2678 = vadd.f32 %v2676, 0.0
        %v2679 = vld [vmem:[%s874] ss:$2 sm:$0xf]
        %v2680 = vpack.c.bf16 %v2679, %v2679
        %s2681 = scalar_lea.vmem [#allocation10], 256
        %v2682 = vld [vmem:[%s2681] sm:$0xf]
        %v2683 = vld [vmem:[%s2681 + $0x4] sm:$0xf]
        %v2684 = vld [vmem:[%s2681 + $0x8] sm:$0xf]
        %v2685 = vld [vmem:[%s2681 + $0xc] sm:$0xf]
        %v2686 = vld [vmem:[%s2681 + $0x10] sm:$0xf]
        %v2687 = vld [vmem:[%s2681 + $0x14] sm:$0xf]
        %v2688 = vld [vmem:[%s2681 + $0x18] sm:$0xf]
        %v2689 = vld [vmem:[%s2681 + $0x1c] sm:$0xf]
        %v2690 = vld [vmem:[%s2681 + $0x20] sm:$0xf]
        %v2691 = vld [vmem:[%s2681 + $0x24] sm:$0xf]
        %v2692 = vld [vmem:[%s2681 + $0x28] sm:$0xf]
        %v2693 = vld [vmem:[%s2681 + $0x2c] sm:$0xf]
        %v2694 = vld [vmem:[%s2681 + $0x30] sm:$0xf]
        %v2695 = vld [vmem:[%s2681 + $0x34] sm:$0xf]
        %v2696 = vld [vmem:[%s2681 + $0x38] sm:$0xf]
        %v2697 = vld [vmem:[%s2681 + $0x3c] sm:$0xf]
        %v2714 = vunpack.c.l.b16 %v2682
        %v2715 = vunpack.c.l.b16 %v2683
        %v2716 = vunpack.c.l.b16 %v2684
        %v2717 = vunpack.c.l.b16 %v2685
        %v2718 = vunpack.c.l.b16 %v2686
        %v2719 = vunpack.c.l.b16 %v2687
        %v2720 = vunpack.c.l.b16 %v2688
        %v2721 = vunpack.c.l.b16 %v2689
        %v2722 = vunpack.c.l.b16 %v2690
        %v2723 = vunpack.c.l.b16 %v2691
        %v2724 = vunpack.c.l.b16 %v2692
        %v2725 = vunpack.c.l.b16 %v2693
        %v2726 = vunpack.c.l.b16 %v2694
        %v2727 = vunpack.c.l.b16 %v2695
        %v2728 = vunpack.c.l.b16 %v2696
        %v2729 = vunpack.c.l.b16 %v2697
        %v2730 = vpack.c.b16 %v2715, %v2714
        %v2731 = vpack.c.b16 %v2717, %v2716
        %v2732 = vpack.c.b16 %v2719, %v2718
        %v2733 = vpack.c.b16 %v2721, %v2720
        %v2734 = vpack.c.b16 %v2723, %v2722
        %v2735 = vpack.c.b16 %v2725, %v2724
        %v2736 = vpack.c.b16 %v2727, %v2726
        %v2737 = vpack.c.b16 %v2729, %v2728
        %2746 = vmatprep.subr.bf16.mxu0 0
        %2747 = vmatpush1.bf16.msra.mxu0 %v2737
        %2748 = vmatprep.subr.bf16.mxu0 0
        %2749 = vmatpush1.bf16.msra.mxu0 %v2736
        %2750 = vmatprep.subr.bf16.mxu0 0
        %2751 = vmatpush1.bf16.msra.mxu0 %v2735
        %2752 = vmatprep.subr.bf16.mxu0 0
        %2753 = vmatpush1.bf16.msra.mxu0 %v2734
        %2754 = vmatprep.subr.bf16.mxu0 0
        %2755 = vmatpush1.bf16.msra.mxu0 %v2733
        %2756 = vmatprep.subr.bf16.mxu0 0
        %2757 = vmatpush1.bf16.msra.mxu0 %v2732
        %2758 = vmatprep.subr.bf16.mxu0 0
        %2759 = vmatpush1.bf16.msra.mxu0 %v2731
        %2760 = vmatprep.subr.bf16.mxu0 0
        %2761 = vmatpush1.bf16.msra.mxu0 %v2730
        %2762 = vmatprep.subr.bf16.mxu0 0
        %2763 = vmatpush2.bf16.msra.mxu0 0
        %2764 = vmatprep.subr.bf16.mxu0 0
        %2765 = vmatpush2.bf16.msra.mxu0 0
        %2766 = vmatprep.subr.bf16.mxu0 0
        %2767 = vmatpush2.bf16.msra.mxu0 0
        %2768 = vmatprep.subr.bf16.mxu0 0
        %2769 = vmatpush2.bf16.msra.mxu0 0
        %2770 = vmatprep.subr.bf16.mxu0 0
        %2771 = vmatpush2.bf16.msra.mxu0 0
        %2772 = vmatprep.subr.bf16.mxu0 0
        %2773 = vmatpush2.bf16.msra.mxu0 0
        %2774 = vmatprep.subr.bf16.mxu0 0
        %2775 = vmatpush2.bf16.msra.mxu0 0
        %2776 = vmatprep.subr.bf16.mxu0 0
        %2777 = vmatpush2.bf16.msra.mxu0 0
        %2778 = vmatprep.mubr.bf16.mxu0 0
        %2779 = vmatmul.mubr.bf16.gmra.mxu0 %v2680
        %v2780 = vpop.f32.mrf.mxu0
        %v2781 = vadd.f32 0.0, %v2780
        %v2782 = vpop.f32.mrf.mxu0
        %v2783 = vpop.f32.mrf.mxu0
        %v2784 = vpop.f32.mrf.mxu0
        %2785 = vdwg.mxu0
        %v2786 = vadd.f32 %v2678, %v2781
        %v2787 = vld [vmem:[%s982] ss:$2 sm:$0xf]
        %v2788 = vpack.c.bf16 %v2787, %v2787
        %s2789 = scalar_lea.vmem [#allocation10], 320
        %v2790 = vld [vmem:[%s2789] sm:$0xf]
        %v2791 = vld [vmem:[%s2789 + $0x4] sm:$0xf]
        %v2792 = vld [vmem:[%s2789 + $0x8] sm:$0xf]
        %v2793 = vld [vmem:[%s2789 + $0xc] sm:$0xf]
        %v2794 = vld [vmem:[%s2789 + $0x10] sm:$0xf]
        %v2795 = vld [vmem:[%s2789 + $0x14] sm:$0xf]
        %v2796 = vld [vmem:[%s2789 + $0x18] sm:$0xf]
        %v2797 = vld [vmem:[%s2789 + $0x1c] sm:$0xf]
        %v2798 = vld [vmem:[%s2789 + $0x20] sm:$0xf]
        %v2799 = vld [vmem:[%s2789 + $0x24] sm:$0xf]
        %v2800 = vld [vmem:[%s2789 + $0x28] sm:$0xf]
        %v2801 = vld [vmem:[%s2789 + $0x2c] sm:$0xf]
        %v2802 = vld [vmem:[%s2789 + $0x30] sm:$0xf]
        %v2803 = vld [vmem:[%s2789 + $0x34] sm:$0xf]
        %v2804 = vld [vmem:[%s2789 + $0x38] sm:$0xf]
        %v2805 = vld [vmem:[%s2789 + $0x3c] sm:$0xf]
        %v2822 = vunpack.c.l.b16 %v2790
        %v2823 = vunpack.c.l.b16 %v2791
        %v2824 = vunpack.c.l.b16 %v2792
        %v2825 = vunpack.c.l.b16 %v2793
        %v2826 = vunpack.c.l.b16 %v2794
        %v2827 = vunpack.c.l.b16 %v2795
        %v2828 = vunpack.c.l.b16 %v2796
        %v2829 = vunpack.c.l.b16 %v2797
        %v2830 = vunpack.c.l.b16 %v2798
        %v2831 = vunpack.c.l.b16 %v2799
        %v2832 = vunpack.c.l.b16 %v2800
        %v2833 = vunpack.c.l.b16 %v2801
        %v2834 = vunpack.c.l.b16 %v2802
        %v2835 = vunpack.c.l.b16 %v2803
        %v2836 = vunpack.c.l.b16 %v2804
        %v2837 = vunpack.c.l.b16 %v2805
        %v2838 = vpack.c.b16 %v2823, %v2822
        %v2839 = vpack.c.b16 %v2825, %v2824
        %v2840 = vpack.c.b16 %v2827, %v2826
        %v2841 = vpack.c.b16 %v2829, %v2828
        %v2842 = vpack.c.b16 %v2831, %v2830
        %v2843 = vpack.c.b16 %v2833, %v2832
        %v2844 = vpack.c.b16 %v2835, %v2834
        %v2845 = vpack.c.b16 %v2837, %v2836
        %2854 = vmatprep.subr.bf16.mxu0 0
        %2855 = vmatpush1.bf16.msra.mxu0 %v2845
        %2856 = vmatprep.subr.bf16.mxu0 0
        %2857 = vmatpush1.bf16.msra.mxu0 %v2844
        %2858 = vmatprep.subr.bf16.mxu0 0
        %2859 = vmatpush1.bf16.msra.mxu0 %v2843
        %2860 = vmatprep.subr.bf16.mxu0 0
        %2861 = vmatpush1.bf16.msra.mxu0 %v2842
        %2862 = vmatprep.subr.bf16.mxu0 0
        %2863 = vmatpush1.bf16.msra.mxu0 %v2841
        %2864 = vmatprep.subr.bf16.mxu0 0
        %2865 = vmatpush1.bf16.msra.mxu0 %v2840
        %2866 = vmatprep.subr.bf16.mxu0 0
        %2867 = vmatpush1.bf16.msra.mxu0 %v2839
        %2868 = vmatprep.subr.bf16.mxu0 0
        %2869 = vmatpush1.bf16.msra.mxu0 %v2838
        %2870 = vmatprep.subr.bf16.mxu0 0
        %2871 = vmatpush2.bf16.msra.mxu0 0
        %2872 = vmatprep.subr.bf16.mxu0 0
        %2873 = vmatpush2.bf16.msra.mxu0 0
        %2874 = vmatprep.subr.bf16.mxu0 0
        %2875 = vmatpush2.bf16.msra.mxu0 0
        %2876 = vmatprep.subr.bf16.mxu0 0
        %2877 = vmatpush2.bf16.msra.mxu0 0
        %2878 = vmatprep.subr.bf16.mxu0 0
        %2879 = vmatpush2.bf16.msra.mxu0 0
        %2880 = vmatprep.subr.bf16.mxu0 0
        %2881 = vmatpush2.bf16.msra.mxu0 0
        %2882 = vmatprep.subr.bf16.mxu0 0
        %2883 = vmatpush2.bf16.msra.mxu0 0
        %2884 = vmatprep.subr.bf16.mxu0 0
        %2885 = vmatpush2.bf16.msra.mxu0 0
        %2886 = vmatprep.mubr.bf16.mxu0 0
        %2887 = vmatmul.mubr.bf16.gmra.mxu0 %v2788
        %v2888 = vpop.f32.mrf.mxu0
        %v2889 = vadd.f32 0.0, %v2888
        %v2890 = vpop.f32.mrf.mxu0
        %v2891 = vpop.f32.mrf.mxu0
        %v2892 = vpop.f32.mrf.mxu0
        %2893 = vdwg.mxu0
        %v2894 = vadd.f32 %v2786, %v2889
        %v2895 = vld [vmem:[%s1091] ss:$2 sm:$0xf]
        %v2896 = vpack.c.bf16 %v2895, %v2895
        %s2897 = scalar_lea.vmem [#allocation10], 384
        %v2898 = vld [vmem:[%s2897] sm:$0xf]
        %v2899 = vld [vmem:[%s2897 + $0x4] sm:$0xf]
        %v2900 = vld [vmem:[%s2897 + $0x8] sm:$0xf]
        %v2901 = vld [vmem:[%s2897 + $0xc] sm:$0xf]
        %v2902 = vld [vmem:[%s2897 + $0x10] sm:$0xf]
        %v2903 = vld [vmem:[%s2897 + $0x14] sm:$0xf]
        %v2904 = vld [vmem:[%s2897 + $0x18] sm:$0xf]
        %v2905 = vld [vmem:[%s2897 + $0x1c] sm:$0xf]
        %v2906 = vld [vmem:[%s2897 + $0x20] sm:$0xf]
        %v2907 = vld [vmem:[%s2897 + $0x24] sm:$0xf]
        %v2908 = vld [vmem:[%s2897 + $0x28] sm:$0xf]
        %v2909 = vld [vmem:[%s2897 + $0x2c] sm:$0xf]
        %v2910 = vld [vmem:[%s2897 + $0x30] sm:$0xf]
        %v2911 = vld [vmem:[%s2897 + $0x34] sm:$0xf]
        %v2912 = vld [vmem:[%s2897 + $0x38] sm:$0xf]
        %v2913 = vld [vmem:[%s2897 + $0x3c] sm:$0xf]
        %v2930 = vunpack.c.l.b16 %v2898
        %v2931 = vunpack.c.l.b16 %v2899
        %v2932 = vunpack.c.l.b16 %v2900
        %v2933 = vunpack.c.l.b16 %v2901
        %v2934 = vunpack.c.l.b16 %v2902
        %v2935 = vunpack.c.l.b16 %v2903
        %v2936 = vunpack.c.l.b16 %v2904
        %v2937 = vunpack.c.l.b16 %v2905
        %v2938 = vunpack.c.l.b16 %v2906
        %v2939 = vunpack.c.l.b16 %v2907
        %v2940 = vunpack.c.l.b16 %v2908
        %v2941 = vunpack.c.l.b16 %v2909
        %v2942 = vunpack.c.l.b16 %v2910
        %v2943 = vunpack.c.l.b16 %v2911
        %v2944 = vunpack.c.l.b16 %v2912
        %v2945 = vunpack.c.l.b16 %v2913
        %v2946 = vpack.c.b16 %v2931, %v2930
        %v2947 = vpack.c.b16 %v2933, %v2932
        %v2948 = vpack.c.b16 %v2935, %v2934
        %v2949 = vpack.c.b16 %v2937, %v2936
        %v2950 = vpack.c.b16 %v2939, %v2938
        %v2951 = vpack.c.b16 %v2941, %v2940
        %v2952 = vpack.c.b16 %v2943, %v2942
        %v2953 = vpack.c.b16 %v2945, %v2944
        %2962 = vmatprep.subr.bf16.mxu0 0
        %2963 = vmatpush1.bf16.msra.mxu0 %v2953
        %2964 = vmatprep.subr.bf16.mxu0 0
        %2965 = vmatpush1.bf16.msra.mxu0 %v2952
        %2966 = vmatprep.subr.bf16.mxu0 0
        %2967 = vmatpush1.bf16.msra.mxu0 %v2951
        %2968 = vmatprep.subr.bf16.mxu0 0
        %2969 = vmatpush1.bf16.msra.mxu0 %v2950
        %2970 = vmatprep.subr.bf16.mxu0 0
        %2971 = vmatpush1.bf16.msra.mxu0 %v2949
        %2972 = vmatprep.subr.bf16.mxu0 0
        %2973 = vmatpush1.bf16.msra.mxu0 %v2948
        %2974 = vmatprep.subr.bf16.mxu0 0
        %2975 = vmatpush1.bf16.msra.mxu0 %v2947
        %2976 = vmatprep.subr.bf16.mxu0 0
        %2977 = vmatpush1.bf16.msra.mxu0 %v2946
        %2978 = vmatprep.subr.bf16.mxu0 0
        %2979 = vmatpush2.bf16.msra.mxu0 0
        %2980 = vmatprep.subr.bf16.mxu0 0
        %2981 = vmatpush2.bf16.msra.mxu0 0
        %2982 = vmatprep.subr.bf16.mxu0 0
        %2983 = vmatpush2.bf16.msra.mxu0 0
        %2984 = vmatprep.subr.bf16.mxu0 0
        %2985 = vmatpush2.bf16.msra.mxu0 0
        %2986 = vmatprep.subr.bf16.mxu0 0
        %2987 = vmatpush2.bf16.msra.mxu0 0
        %2988 = vmatprep.subr.bf16.mxu0 0
        %2989 = vmatpush2.bf16.msra.mxu0 0
        %2990 = vmatprep.subr.bf16.mxu0 0
        %2991 = vmatpush2.bf16.msra.mxu0 0
        %2992 = vmatprep.subr.bf16.mxu0 0
        %2993 = vmatpush2.bf16.msra.mxu0 0
        %2994 = vmatprep.mubr.bf16.mxu0 0
        %2995 = vmatmul.mubr.bf16.gmra.mxu0 %v2896
        %v2996 = vpop.f32.mrf.mxu0
        %v2997 = vadd.f32 0.0, %v2996
        %v2998 = vpop.f32.mrf.mxu0
        %v2999 = vpop.f32.mrf.mxu0
        %v3000 = vpop.f32.mrf.mxu0
        %3001 = vdwg.mxu0
        %v3002 = vadd.f32 %v2894, %v2997
        %v3003 = vld [vmem:[%s1200] ss:$2 sm:$0xf]
        %v3004 = vpack.c.bf16 %v3003, %v3003
        %s3005 = scalar_lea.vmem [#allocation10], 448
        %v3006 = vld [vmem:[%s3005] sm:$0xf]
        %v3007 = vld [vmem:[%s3005 + $0x4] sm:$0xf]
        %v3008 = vld [vmem:[%s3005 + $0x8] sm:$0xf]
        %v3009 = vld [vmem:[%s3005 + $0xc] sm:$0xf]
        %v3010 = vld [vmem:[%s3005 + $0x10] sm:$0xf]
        %v3011 = vld [vmem:[%s3005 + $0x14] sm:$0xf]
        %v3012 = vld [vmem:[%s3005 + $0x18] sm:$0xf]
        %v3013 = vld [vmem:[%s3005 + $0x1c] sm:$0xf]
        %v3014 = vld [vmem:[%s3005 + $0x20] sm:$0xf]
        %v3015 = vld [vmem:[%s3005 + $0x24] sm:$0xf]
        %v3016 = vld [vmem:[%s3005 + $0x28] sm:$0xf]
        %v3017 = vld [vmem:[%s3005 + $0x2c] sm:$0xf]
        %v3018 = vld [vmem:[%s3005 + $0x30] sm:$0xf]
        %v3019 = vld [vmem:[%s3005 + $0x34] sm:$0xf]
        %v3020 = vld [vmem:[%s3005 + $0x38] sm:$0xf]
        %v3021 = vld [vmem:[%s3005 + $0x3c] sm:$0xf]
        %v3038 = vunpack.c.l.b16 %v3006
        %v3039 = vunpack.c.l.b16 %v3007
        %v3040 = vunpack.c.l.b16 %v3008
        %v3041 = vunpack.c.l.b16 %v3009
        %v3042 = vunpack.c.l.b16 %v3010
        %v3043 = vunpack.c.l.b16 %v3011
        %v3044 = vunpack.c.l.b16 %v3012
        %v3045 = vunpack.c.l.b16 %v3013
        %v3046 = vunpack.c.l.b16 %v3014
        %v3047 = vunpack.c.l.b16 %v3015
        %v3048 = vunpack.c.l.b16 %v3016
        %v3049 = vunpack.c.l.b16 %v3017
        %v3050 = vunpack.c.l.b16 %v3018
        %v3051 = vunpack.c.l.b16 %v3019
        %v3052 = vunpack.c.l.b16 %v3020
        %v3053 = vunpack.c.l.b16 %v3021
        %v3054 = vpack.c.b16 %v3039, %v3038
        %v3055 = vpack.c.b16 %v3041, %v3040
        %v3056 = vpack.c.b16 %v3043, %v3042
        %v3057 = vpack.c.b16 %v3045, %v3044
        %v3058 = vpack.c.b16 %v3047, %v3046
        %v3059 = vpack.c.b16 %v3049, %v3048
        %v3060 = vpack.c.b16 %v3051, %v3050
        %v3061 = vpack.c.b16 %v3053, %v3052
        %3070 = vmatprep.subr.bf16.mxu0 0
        %3071 = vmatpush1.bf16.msra.mxu0 %v3061
        %3072 = vmatprep.subr.bf16.mxu0 0
        %3073 = vmatpush1.bf16.msra.mxu0 %v3060
        %3074 = vmatprep.subr.bf16.mxu0 0
        %3075 = vmatpush1.bf16.msra.mxu0 %v3059
        %3076 = vmatprep.subr.bf16.mxu0 0
        %3077 = vmatpush1.bf16.msra.mxu0 %v3058
        %3078 = vmatprep.subr.bf16.mxu0 0
        %3079 = vmatpush1.bf16.msra.mxu0 %v3057
        %3080 = vmatprep.subr.bf16.mxu0 0
        %3081 = vmatpush1.bf16.msra.mxu0 %v3056
        %3082 = vmatprep.subr.bf16.mxu0 0
        %3083 = vmatpush1.bf16.msra.mxu0 %v3055
        %3084 = vmatprep.subr.bf16.mxu0 0
        %3085 = vmatpush1.bf16.msra.mxu0 %v3054
        %3086 = vmatprep.subr.bf16.mxu0 0
        %3087 = vmatpush2.bf16.msra.mxu0 0
        %3088 = vmatprep.subr.bf16.mxu0 0
        %3089 = vmatpush2.bf16.msra.mxu0 0
        %3090 = vmatprep.subr.bf16.mxu0 0
        %3091 = vmatpush2.bf16.msra.mxu0 0
        %3092 = vmatprep.subr.bf16.mxu0 0
        %3093 = vmatpush2.bf16.msra.mxu0 0
        %3094 = vmatprep.subr.bf16.mxu0 0
        %3095 = vmatpush2.bf16.msra.mxu0 0
        %3096 = vmatprep.subr.bf16.mxu0 0
        %3097 = vmatpush2.bf16.msra.mxu0 0
        %3098 = vmatprep.subr.bf16.mxu0 0
        %3099 = vmatpush2.bf16.msra.mxu0 0
        %3100 = vmatprep.subr.bf16.mxu0 0
        %3101 = vmatpush2.bf16.msra.mxu0 0
        %3102 = vmatprep.mubr.bf16.mxu0 0
        %3103 = vmatmul.mubr.bf16.gmra.mxu0 %v3004
        %v3104 = vpop.f32.mrf.mxu0
        %v3105 = vadd.f32 0.0, %v3104
        %v3106 = vpop.f32.mrf.mxu0
        %v3107 = vpop.f32.mrf.mxu0
        %v3108 = vpop.f32.mrf.mxu0
        %3109 = vdwg.mxu0
        %v3110 = vadd.f32 %v3002, %v3105
        %3111 = vst [vmem:[#allocation2 + $0x10] sm:$0xf] %v3110
        %3112 = vst [vmem:[#allocation2 + $0x14] sm:$0xf] 0.0
        %v3113 = vld [vmem:[#allocation2 + $0x10] sm:$0xf]
        %v3114 = vmax.f32 %v3113, 0.0
        %3115 = vst [vmem:[#allocation3 + $0x10] sm:$0xf] %v3114
        %3116 = vst [vmem:[#allocation3 + $0x14] sm:$0xf] 0.0
        %s3117 = scalar_lea.vmem %s6, 3
        %v3118 = vld [vmem:[%s3117] sm:$0x1]
        %v3120 = vlaneseq
        %v3121 = vshrl.u32 %v3120, 7
        %v3122 = vsub.s32 0, %v3121
        %v3123 = vrot.slane %v3118, %v3122
        %v3125 = vadd.f32 %v3123, 0.0
        %v3126 = vld [vmem:[#allocation3 + $0x7] sm:$0xf]
        %v3127 = vpack.c.bf16 %v3126, %v3126
        %s3128 = scalar_lea.vmem [#allocation13], 576
        %v3129 = vld [vmem:[%s3128] sm:$0xf]
        %v3130 = vld [vmem:[%s3128 + $0x4] sm:$0xf]
        %v3131 = vld [vmem:[%s3128 + $0x8] sm:$0xf]
        %v3132 = vld [vmem:[%s3128 + $0xc] sm:$0xf]
        %v3133 = vld [vmem:[%s3128 + $0x10] sm:$0xf]
        %v3134 = vld [vmem:[%s3128 + $0x14] sm:$0xf]
        %v3135 = vld [vmem:[%s3128 + $0x18] sm:$0xf]
        %v3136 = vld [vmem:[%s3128 + $0x1c] sm:$0xf]
        %v3137 = vld [vmem:[%s3128 + $0x20] sm:$0xf]
        %v3138 = vld [vmem:[%s3128 + $0x24] sm:$0xf]
        %v3139 = vld [vmem:[%s3128 + $0x28] sm:$0xf]
        %v3140 = vld [vmem:[%s3128 + $0x2c] sm:$0xf]
        %v3141 = vld [vmem:[%s3128 + $0x30] sm:$0xf]
        %v3142 = vld [vmem:[%s3128 + $0x34] sm:$0xf]
        %v3143 = vld [vmem:[%s3128 + $0x38] sm:$0xf]
        %v3144 = vld [vmem:[%s3128 + $0x3c] sm:$0xf]
        %v3161 = vunpack.c.l.b16 %v3129
        %v3162 = vunpack.c.l.b16 %v3130
        %v3163 = vunpack.c.l.b16 %v3131
        %v3164 = vunpack.c.l.b16 %v3132
        %v3165 = vunpack.c.l.b16 %v3133
        %v3166 = vunpack.c.l.b16 %v3134
        %v3167 = vunpack.c.l.b16 %v3135
        %v3168 = vunpack.c.l.b16 %v3136
        %v3169 = vunpack.c.l.b16 %v3137
        %v3170 = vunpack.c.l.b16 %v3138
        %v3171 = vunpack.c.l.b16 %v3139
        %v3172 = vunpack.c.l.b16 %v3140
        %v3173 = vunpack.c.l.b16 %v3141
        %v3174 = vunpack.c.l.b16 %v3142
        %v3175 = vunpack.c.l.b16 %v3143
        %v3176 = vunpack.c.l.b16 %v3144
        %v3177 = vpack.c.b16 %v3162, %v3161
        %v3178 = vpack.c.b16 %v3164, %v3163
        %v3179 = vpack.c.b16 %v3166, %v3165
        %v3180 = vpack.c.b16 %v3168, %v3167
        %v3181 = vpack.c.b16 %v3170, %v3169
        %v3182 = vpack.c.b16 %v3172, %v3171
        %v3183 = vpack.c.b16 %v3174, %v3173
        %v3184 = vpack.c.b16 %v3176, %v3175
        %3193 = vmatprep.subr.bf16.mxu0 0
        %3194 = vmatpush1.bf16.msra.mxu0 %v3184
        %3195 = vmatprep.subr.bf16.mxu0 0
        %3196 = vmatpush1.bf16.msra.mxu0 %v3183
        %3197 = vmatprep.subr.bf16.mxu0 0
        %3198 = vmatpush1.bf16.msra.mxu0 %v3182
        %3199 = vmatprep.subr.bf16.mxu0 0
        %3200 = vmatpush1.bf16.msra.mxu0 %v3181
        %3201 = vmatprep.subr.bf16.mxu0 0
        %3202 = vmatpush1.bf16.msra.mxu0 %v3180
        %3203 = vmatprep.subr.bf16.mxu0 0
        %3204 = vmatpush1.bf16.msra.mxu0 %v3179
        %3205 = vmatprep.subr.bf16.mxu0 0
        %3206 = vmatpush1.bf16.msra.mxu0 %v3178
        %3207 = vmatprep.subr.bf16.mxu0 0
        %3208 = vmatpush1.bf16.msra.mxu0 %v3177
        %3209 = vmatprep.subr.bf16.mxu0 0
        %3210 = vmatpush2.bf16.msra.mxu0 0
        %3211 = vmatprep.subr.bf16.mxu0 0
        %3212 = vmatpush2.bf16.msra.mxu0 0
        %3213 = vmatprep.subr.bf16.mxu0 0
        %3214 = vmatpush2.bf16.msra.mxu0 0
        %3215 = vmatprep.subr.bf16.mxu0 0
        %3216 = vmatpush2.bf16.msra.mxu0 0
        %3217 = vmatprep.subr.bf16.mxu0 0
        %3218 = vmatpush2.bf16.msra.mxu0 0
        %3219 = vmatprep.subr.bf16.mxu0 0
        %3220 = vmatpush2.bf16.msra.mxu0 0
        %3221 = vmatprep.subr.bf16.mxu0 0
        %3222 = vmatpush2.bf16.msra.mxu0 0
        %3223 = vmatprep.subr.bf16.mxu0 0
        %3224 = vmatpush2.bf16.msra.mxu0 0
        %3225 = vmatprep.mubr.bf16.mxu0 0
        %3226 = vmatmul.mubr.bf16.gmra.mxu0 %v3127
        %v3227 = vpop.f32.mrf.mxu0
        %v3228 = vadd.f32 0.0, %v3227
        %v3229 = vpop.f32.mrf.mxu0
        %v3230 = vpop.f32.mrf.mxu0
        %v3231 = vpop.f32.mrf.mxu0
        %3232 = vdwg.mxu0
        %v3233 = vadd.f32 %v3125, %v3228
        %v3234 = vld [vmem:[#allocation3 + $0x10] sm:$0xf]
        %v3235 = vpack.c.bf16 %v3234, %v3234
        %s3236 = scalar_lea.vmem [#allocation13], 640
        %v3237 = vld [vmem:[%s3236] sm:$0xf]
        %v3238 = vld [vmem:[%s3236 + $0x4] sm:$0xf]
        %v3239 = vld [vmem:[%s3236 + $0x8] sm:$0xf]
        %v3240 = vld [vmem:[%s3236 + $0xc] sm:$0xf]
        %v3241 = vld [vmem:[%s3236 + $0x10] sm:$0xf]
        %v3242 = vld [vmem:[%s3236 + $0x14] sm:$0xf]
        %v3243 = vld [vmem:[%s3236 + $0x18] sm:$0xf]
        %v3244 = vld [vmem:[%s3236 + $0x1c] sm:$0xf]
        %v3245 = vld [vmem:[%s3236 + $0x20] sm:$0xf]
        %v3246 = vld [vmem:[%s3236 + $0x24] sm:$0xf]
        %v3247 = vld [vmem:[%s3236 + $0x28] sm:$0xf]
        %v3248 = vld [vmem:[%s3236 + $0x2c] sm:$0xf]
        %v3249 = vld [vmem:[%s3236 + $0x30] sm:$0xf]
        %v3250 = vld [vmem:[%s3236 + $0x34] sm:$0xf]
        %v3251 = vld [vmem:[%s3236 + $0x38] sm:$0xf]
        %v3252 = vld [vmem:[%s3236 + $0x3c] sm:$0xf]
        %v3269 = vunpack.c.l.b16 %v3237
        %v3270 = vunpack.c.l.b16 %v3238
        %v3271 = vunpack.c.l.b16 %v3239
        %v3272 = vunpack.c.l.b16 %v3240
        %v3273 = vunpack.c.l.b16 %v3241
        %v3274 = vunpack.c.l.b16 %v3242
        %v3275 = vunpack.c.l.b16 %v3243
        %v3276 = vunpack.c.l.b16 %v3244
        %v3277 = vunpack.c.l.b16 %v3245
        %v3278 = vunpack.c.l.b16 %v3246
        %v3279 = vunpack.c.l.b16 %v3247
        %v3280 = vunpack.c.l.b16 %v3248
        %v3281 = vunpack.c.l.b16 %v3249
        %v3282 = vunpack.c.l.b16 %v3250
        %v3283 = vunpack.c.l.b16 %v3251
        %v3284 = vunpack.c.l.b16 %v3252
        %v3285 = vpack.c.b16 %v3270, %v3269
        %v3286 = vpack.c.b16 %v3272, %v3271
        %v3287 = vpack.c.b16 %v3274, %v3273
        %v3288 = vpack.c.b16 %v3276, %v3275
        %v3289 = vpack.c.b16 %v3278, %v3277
        %v3290 = vpack.c.b16 %v3280, %v3279
        %v3291 = vpack.c.b16 %v3282, %v3281
        %v3292 = vpack.c.b16 %v3284, %v3283
        %3301 = vmatprep.subr.bf16.mxu0 0
        %3302 = vmatpush1.bf16.msra.mxu0 %v3292
        %3303 = vmatprep.subr.bf16.mxu0 0
        %3304 = vmatpush1.bf16.msra.mxu0 %v3291
        %3305 = vmatprep.subr.bf16.mxu0 0
        %3306 = vmatpush1.bf16.msra.mxu0 %v3290
        %3307 = vmatprep.subr.bf16.mxu0 0
        %3308 = vmatpush1.bf16.msra.mxu0 %v3289
        %3309 = vmatprep.subr.bf16.mxu0 0
        %3310 = vmatpush1.bf16.msra.mxu0 %v3288
        %3311 = vmatprep.subr.bf16.mxu0 0
        %3312 = vmatpush1.bf16.msra.mxu0 %v3287
        %3313 = vmatprep.subr.bf16.mxu0 0
        %3314 = vmatpush1.bf16.msra.mxu0 %v3286
        %3315 = vmatprep.subr.bf16.mxu0 0
        %3316 = vmatpush1.bf16.msra.mxu0 %v3285
        %3317 = vmatprep.subr.bf16.mxu0 0
        %3318 = vmatpush2.bf16.msra.mxu0 0
        %3319 = vmatprep.subr.bf16.mxu0 0
        %3320 = vmatpush2.bf16.msra.mxu0 0
        %3321 = vmatprep.subr.bf16.mxu0 0
        %3322 = vmatpush2.bf16.msra.mxu0 0
        %3323 = vmatprep.subr.bf16.mxu0 0
        %3324 = vmatpush2.bf16.msra.mxu0 0
        %3325 = vmatprep.subr.bf16.mxu0 0
        %3326 = vmatpush2.bf16.msra.mxu0 0
        %3327 = vmatprep.subr.bf16.mxu0 0
        %3328 = vmatpush2.bf16.msra.mxu0 0
        %3329 = vmatprep.subr.bf16.mxu0 0
        %3330 = vmatpush2.bf16.msra.mxu0 0
        %3331 = vmatprep.subr.bf16.mxu0 0
        %3332 = vmatpush2.bf16.msra.mxu0 0
        %3333 = vmatprep.mubr.bf16.mxu0 0
        %3334 = vmatmul.mubr.bf16.gmra.mxu0 %v3235
        %v3335 = vpop.f32.mrf.mxu0
        %v3336 = vadd.f32 0.0, %v3335
        %v3337 = vpop.f32.mrf.mxu0
        %v3338 = vpop.f32.mrf.mxu0
        %v3339 = vpop.f32.mrf.mxu0
        %3340 = vdwg.mxu0
        %v3341 = vadd.f32 %v3233, %v3336
        %v3342 = vld [vmem:[#allocation3 + $0x19] sm:$0xf]
        %v3343 = vpack.c.bf16 %v3342, %v3342
        %s3344 = scalar_lea.vmem [#allocation13], 704
        %v3345 = vld [vmem:[%s3344] sm:$0xf]
        %v3346 = vld [vmem:[%s3344 + $0x4] sm:$0xf]
        %v3347 = vld [vmem:[%s3344 + $0x8] sm:$0xf]
        %v3348 = vld [vmem:[%s3344 + $0xc] sm:$0xf]
        %v3349 = vld [vmem:[%s3344 + $0x10] sm:$0xf]
        %v3350 = vld [vmem:[%s3344 + $0x14] sm:$0xf]
        %v3351 = vld [vmem:[%s3344 + $0x18] sm:$0xf]
        %v3352 = vld [vmem:[%s3344 + $0x1c] sm:$0xf]
        %v3353 = vld [vmem:[%s3344 + $0x20] sm:$0xf]
        %v3354 = vld [vmem:[%s3344 + $0x24] sm:$0xf]
        %v3355 = vld [vmem:[%s3344 + $0x28] sm:$0xf]
        %v3356 = vld [vmem:[%s3344 + $0x2c] sm:$0xf]
        %v3357 = vld [vmem:[%s3344 + $0x30] sm:$0xf]
        %v3358 = vld [vmem:[%s3344 + $0x34] sm:$0xf]
        %v3359 = vld [vmem:[%s3344 + $0x38] sm:$0xf]
        %v3360 = vld [vmem:[%s3344 + $0x3c] sm:$0xf]
        %v3377 = vunpack.c.l.b16 %v3345
        %v3378 = vunpack.c.l.b16 %v3346
        %v3379 = vunpack.c.l.b16 %v3347
        %v3380 = vunpack.c.l.b16 %v3348
        %v3381 = vunpack.c.l.b16 %v3349
        %v3382 = vunpack.c.l.b16 %v3350
        %v3383 = vunpack.c.l.b16 %v3351
        %v3384 = vunpack.c.l.b16 %v3352
        %v3385 = vunpack.c.l.b16 %v3353
        %v3386 = vunpack.c.l.b16 %v3354
        %v3387 = vunpack.c.l.b16 %v3355
        %v3388 = vunpack.c.l.b16 %v3356
        %v3389 = vunpack.c.l.b16 %v3357
        %v3390 = vunpack.c.l.b16 %v3358
        %v3391 = vunpack.c.l.b16 %v3359
        %v3392 = vunpack.c.l.b16 %v3360
        %v3393 = vpack.c.b16 %v3378, %v3377
        %v3394 = vpack.c.b16 %v3380, %v3379
        %v3395 = vpack.c.b16 %v3382, %v3381
        %v3396 = vpack.c.b16 %v3384, %v3383
        %v3397 = vpack.c.b16 %v3386, %v3385
        %v3398 = vpack.c.b16 %v3388, %v3387
        %v3399 = vpack.c.b16 %v3390, %v3389
        %v3400 = vpack.c.b16 %v3392, %v3391
        %3409 = vmatprep.subr.bf16.mxu0 0
        %3410 = vmatpush1.bf16.msra.mxu0 %v3400
        %3411 = vmatprep.subr.bf16.mxu0 0
        %3412 = vmatpush1.bf16.msra.mxu0 %v3399
        %3413 = vmatprep.subr.bf16.mxu0 0
        %3414 = vmatpush1.bf16.msra.mxu0 %v3398
        %3415 = vmatprep.subr.bf16.mxu0 0
        %3416 = vmatpush1.bf16.msra.mxu0 %v3397
        %3417 = vmatprep.subr.bf16.mxu0 0
        %3418 = vmatpush1.bf16.msra.mxu0 %v3396
        %3419 = vmatprep.subr.bf16.mxu0 0
        %3420 = vmatpush1.bf16.msra.mxu0 %v3395
        %3421 = vmatprep.subr.bf16.mxu0 0
        %3422 = vmatpush1.bf16.msra.mxu0 %v3394
        %3423 = vmatprep.subr.bf16.mxu0 0
        %3424 = vmatpush1.bf16.msra.mxu0 %v3393
        %3425 = vmatprep.subr.bf16.mxu0 0
        %3426 = vmatpush2.bf16.msra.mxu0 0
        %3427 = vmatprep.subr.bf16.mxu0 0
        %3428 = vmatpush2.bf16.msra.mxu0 0
        %3429 = vmatprep.subr.bf16.mxu0 0
        %3430 = vmatpush2.bf16.msra.mxu0 0
        %3431 = vmatprep.subr.bf16.mxu0 0
        %3432 = vmatpush2.bf16.msra.mxu0 0
        %3433 = vmatprep.subr.bf16.mxu0 0
        %3434 = vmatpush2.bf16.msra.mxu0 0
        %3435 = vmatprep.subr.bf16.mxu0 0
        %3436 = vmatpush2.bf16.msra.mxu0 0
        %3437 = vmatprep.subr.bf16.mxu0 0
        %3438 = vmatpush2.bf16.msra.mxu0 0
        %3439 = vmatprep.subr.bf16.mxu0 0
        %3440 = vmatpush2.bf16.msra.mxu0 0
        %3441 = vmatprep.mubr.bf16.mxu0 0
        %3442 = vmatmul.mubr.bf16.gmra.mxu0 %v3343
        %v3443 = vpop.f32.mrf.mxu0
        %v3444 = vadd.f32 0.0, %v3443
        %v3445 = vpop.f32.mrf.mxu0
        %v3446 = vpop.f32.mrf.mxu0
        %v3447 = vpop.f32.mrf.mxu0
        %3448 = vdwg.mxu0
        %v3449 = vadd.f32 %v3341, %v3444
        %v3450 = vmax.f32 %v3449, 0.0
        %v3451 = vpack.c.bf16 %v3450, %v3450
        %s3452 = scalar_lea.vmem [#allocation15], 192
        %v3453 = vld [vmem:[%s3452] sm:$0xf]
        %v3454 = vld [vmem:[%s3452 + $0x4] sm:$0xf]
        %v3455 = vld [vmem:[%s3452 + $0x8] sm:$0xf]
        %v3456 = vld [vmem:[%s3452 + $0xc] sm:$0xf]
        %v3457 = vld [vmem:[%s3452 + $0x10] sm:$0xf]
        %v3458 = vld [vmem:[%s3452 + $0x14] sm:$0xf]
        %v3459 = vld [vmem:[%s3452 + $0x18] sm:$0xf]
        %v3460 = vld [vmem:[%s3452 + $0x1c] sm:$0xf]
        %v3461 = vld [vmem:[%s3452 + $0x20] sm:$0xf]
        %v3462 = vld [vmem:[%s3452 + $0x24] sm:$0xf]
        %v3463 = vld [vmem:[%s3452 + $0x28] sm:$0xf]
        %v3464 = vld [vmem:[%s3452 + $0x2c] sm:$0xf]
        %v3465 = vld [vmem:[%s3452 + $0x30] sm:$0xf]
        %v3466 = vld [vmem:[%s3452 + $0x34] sm:$0xf]
        %v3467 = vld [vmem:[%s3452 + $0x38] sm:$0xf]
        %v3468 = vld [vmem:[%s3452 + $0x3c] sm:$0xf]
        %s3469 = scalar_lea.vmem %s8, 3
        %v3470 = vld [vmem:[%s3469] sm:$0x1]
        %v3472 = vlaneseq
        %v3473 = vshrl.u32 %v3472, 7
        %v3474 = vsub.s32 0, %v3473
        %v3475 = vrot.slane %v3470, %v3474
        %v3493 = vunpack.c.l.b16 %v3453
        %v3494 = vunpack.c.l.b16 %v3454
        %v3495 = vunpack.c.l.b16 %v3455
        %v3496 = vunpack.c.l.b16 %v3456
        %v3497 = vunpack.c.l.b16 %v3457
        %v3498 = vunpack.c.l.b16 %v3458
        %v3499 = vunpack.c.l.b16 %v3459
        %v3500 = vunpack.c.l.b16 %v3460
        %v3501 = vunpack.c.l.b16 %v3461
        %v3502 = vunpack.c.l.b16 %v3462
        %v3503 = vunpack.c.l.b16 %v3463
        %v3504 = vunpack.c.l.b16 %v3464
        %v3505 = vunpack.c.l.b16 %v3465
        %v3506 = vunpack.c.l.b16 %v3466
        %v3507 = vunpack.c.l.b16 %v3467
        %v3508 = vunpack.c.l.b16 %v3468
        %v3509 = vpack.c.b16 %v3494, %v3493
        %v3510 = vpack.c.b16 %v3496, %v3495
        %v3511 = vpack.c.b16 %v3498, %v3497
        %v3512 = vpack.c.b16 %v3500, %v3499
        %v3513 = vpack.c.b16 %v3502, %v3501
        %v3514 = vpack.c.b16 %v3504, %v3503
        %v3515 = vpack.c.b16 %v3506, %v3505
        %v3516 = vpack.c.b16 %v3508, %v3507
        %3525 = vmatprep.subr.bf16.mxu0 0
        %3526 = vmatpush1.bf16.msra.mxu0 %v3516
        %3527 = vmatprep.subr.bf16.mxu0 0
        %3528 = vmatpush1.bf16.msra.mxu0 %v3515
        %3529 = vmatprep.subr.bf16.mxu0 0
        %3530 = vmatpush1.bf16.msra.mxu0 %v3514
        %3531 = vmatprep.subr.bf16.mxu0 0
        %3532 = vmatpush1.bf16.msra.mxu0 %v3513
        %3533 = vmatprep.subr.bf16.mxu0 0
        %3534 = vmatpush1.bf16.msra.mxu0 %v3512
        %3535 = vmatprep.subr.bf16.mxu0 0
        %3536 = vmatpush1.bf16.msra.mxu0 %v3511
        %3537 = vmatprep.subr.bf16.mxu0 0
        %3538 = vmatpush1.bf16.msra.mxu0 %v3510
        %3539 = vmatprep.subr.bf16.mxu0 0
        %3540 = vmatpush1.bf16.msra.mxu0 %v3509
        %3541 = vmatprep.subr.bf16.mxu0 0
        %3542 = vmatpush2.bf16.msra.mxu0 0
        %3543 = vmatprep.subr.bf16.mxu0 0
        %3544 = vmatpush2.bf16.msra.mxu0 0
        %3545 = vmatprep.subr.bf16.mxu0 0
        %3546 = vmatpush2.bf16.msra.mxu0 0
        %3547 = vmatprep.subr.bf16.mxu0 0
        %3548 = vmatpush2.bf16.msra.mxu0 0
        %3549 = vmatprep.subr.bf16.mxu0 0
        %3550 = vmatpush2.bf16.msra.mxu0 0
        %3551 = vmatprep.subr.bf16.mxu0 0
        %3552 = vmatpush2.bf16.msra.mxu0 0
        %3553 = vmatprep.subr.bf16.mxu0 0
        %3554 = vmatpush2.bf16.msra.mxu0 0
        %3555 = vmatprep.subr.bf16.mxu0 0
        %3556 = vmatpush2.bf16.msra.mxu0 0
        %3557 = vmatprep.mubr.bf16.mxu0 0
        %3558 = vmatmul.mubr.bf16.gmra.mxu0 %v3451
        %v3559 = vpop.f32.mrf.mxu0
        %v3560 = vadd.f32 %v3475, %v3559
        %v3561 = vpop.f32.mrf.mxu0
        %v3562 = vpop.f32.mrf.mxu0
        %v3563 = vpop.f32.mrf.mxu0
        %3564 = vdwg.mxu0
        %v3565 = vld [vmem:[#allocation2 + $0x10] sm:$0xf]
        %v3566 = vadd.f32 %v3560, %v3565
        %3567 = vst [vmem:[#allocation3 + $0x10] sm:$0xf] %v3566
        %v3568 = vld [vmem:[#allocation3 + $0x10] sm:$0xf]
        %v3569 = vmax.f32 %v3568, 0.0
        %3570 = vst [vmem:[#allocation2 + $0x10] sm:$0xf] %v3569
        %s3571 = scalar_lea.vmem %s6, 4
        %v3572 = vld [vmem:[%s3571] sm:$0x1]
        %v3574 = vlaneseq
        %v3575 = vshrl.u32 %v3574, 7
        %v3576 = vsub.s32 0, %v3575
        %v3577 = vrot.slane %v3572, %v3576
        %v3579 = vadd.f32 %v3577, 0.0
        %v3580 = vld [vmem:[#allocation2 + $0xd] sm:$0xf]
        %v3581 = vpack.c.bf16 %v3580, %v3580
        %s3582 = scalar_lea.vmem [#allocation13], 768
        %v3583 = vld [vmem:[%s3582] sm:$0xf]
        %v3584 = vld [vmem:[%s3582 + $0x4] sm:$0xf]
        %v3585 = vld [vmem:[%s3582 + $0x8] sm:$0xf]
        %v3586 = vld [vmem:[%s3582 + $0xc] sm:$0xf]
        %v3587 = vld [vmem:[%s3582 + $0x10] sm:$0xf]
        %v3588 = vld [vmem:[%s3582 + $0x14] sm:$0xf]
        %v3589 = vld [vmem:[%s3582 + $0x18] sm:$0xf]
        %v3590 = vld [vmem:[%s3582 + $0x1c] sm:$0xf]
        %v3591 = vld [vmem:[%s3582 + $0x20] sm:$0xf]
        %v3592 = vld [vmem:[%s3582 + $0x24] sm:$0xf]
        %v3593 = vld [vmem:[%s3582 + $0x28] sm:$0xf]
        %v3594 = vld [vmem:[%s3582 + $0x2c] sm:$0xf]
        %v3595 = vld [vmem:[%s3582 + $0x30] sm:$0xf]
        %v3596 = vld [vmem:[%s3582 + $0x34] sm:$0xf]
        %v3597 = vld [vmem:[%s3582 + $0x38] sm:$0xf]
        %v3598 = vld [vmem:[%s3582 + $0x3c] sm:$0xf]
        %v3615 = vunpack.c.l.b16 %v3583
        %v3616 = vunpack.c.l.b16 %v3584
        %v3617 = vunpack.c.l.b16 %v3585
        %v3618 = vunpack.c.l.b16 %v3586
        %v3619 = vunpack.c.l.b16 %v3587
        %v3620 = vunpack.c.l.b16 %v3588
        %v3621 = vunpack.c.l.b16 %v3589
        %v3622 = vunpack.c.l.b16 %v3590
        %v3623 = vunpack.c.l.b16 %v3591
        %v3624 = vunpack.c.l.b16 %v3592
        %v3625 = vunpack.c.l.b16 %v3593
        %v3626 = vunpack.c.l.b16 %v3594
        %v3627 = vunpack.c.l.b16 %v3595
        %v3628 = vunpack.c.l.b16 %v3596
        %v3629 = vunpack.c.l.b16 %v3597
        %v3630 = vunpack.c.l.b16 %v3598
        %v3631 = vpack.c.b16 %v3616, %v3615
        %v3632 = vpack.c.b16 %v3618, %v3617
        %v3633 = vpack.c.b16 %v3620, %v3619
        %v3634 = vpack.c.b16 %v3622, %v3621
        %v3635 = vpack.c.b16 %v3624, %v3623
        %v3636 = vpack.c.b16 %v3626, %v3625
        %v3637 = vpack.c.b16 %v3628, %v3627
        %v3638 = vpack.c.b16 %v3630, %v3629
        %3647 = vmatprep.subr.bf16.mxu0 0
        %3648 = vmatpush1.bf16.msra.mxu0 %v3638
        %3649 = vmatprep.subr.bf16.mxu0 0
        %3650 = vmatpush1.bf16.msra.mxu0 %v3637
        %3651 = vmatprep.subr.bf16.mxu0 0
        %3652 = vmatpush1.bf16.msra.mxu0 %v3636
        %3653 = vmatprep.subr.bf16.mxu0 0
        %3654 = vmatpush1.bf16.msra.mxu0 %v3635
        %3655 = vmatprep.subr.bf16.mxu0 0
        %3656 = vmatpush1.bf16.msra.mxu0 %v3634
        %3657 = vmatprep.subr.bf16.mxu0 0
        %3658 = vmatpush1.bf16.msra.mxu0 %v3633
        %3659 = vmatprep.subr.bf16.mxu0 0
        %3660 = vmatpush1.bf16.msra.mxu0 %v3632
        %3661 = vmatprep.subr.bf16.mxu0 0
        %3662 = vmatpush1.bf16.msra.mxu0 %v3631
        %3663 = vmatprep.subr.bf16.mxu0 0
        %3664 = vmatpush2.bf16.msra.mxu0 0
        %3665 = vmatprep.subr.bf16.mxu0 0
        %3666 = vmatpush2.bf16.msra.mxu0 0
        %3667 = vmatprep.subr.bf16.mxu0 0
        %3668 = vmatpush2.bf16.msra.mxu0 0
        %3669 = vmatprep.subr.bf16.mxu0 0
        %3670 = vmatpush2.bf16.msra.mxu0 0
        %3671 = vmatprep.subr.bf16.mxu0 0
        %3672 = vmatpush2.bf16.msra.mxu0 0
        %3673 = vmatprep.subr.bf16.mxu0 0
        %3674 = vmatpush2.bf16.msra.mxu0 0
        %3675 = vmatprep.subr.bf16.mxu0 0
        %3676 = vmatpush2.bf16.msra.mxu0 0
        %3677 = vmatprep.subr.bf16.mxu0 0
        %3678 = vmatpush2.bf16.msra.mxu0 0
        %3679 = vmatprep.mubr.bf16.mxu0 0
        %3680 = vmatmul.mubr.bf16.gmra.mxu0 %v3581
        %v3681 = vpop.f32.mrf.mxu0
        %v3682 = vadd.f32 0.0, %v3681
        %v3683 = vpop.f32.mrf.mxu0
        %v3684 = vpop.f32.mrf.mxu0
        %v3685 = vpop.f32.mrf.mxu0
        %3686 = vdwg.mxu0
        %v3687 = vadd.f32 %v3579, %v3682
        %v3688 = vld [vmem:[#allocation2 + $0x10] sm:$0xf]
        %v3689 = vpack.c.bf16 %v3688, %v3688
        %s3690 = scalar_lea.vmem [#allocation13], 832
        %v3691 = vld [vmem:[%s3690] sm:$0xf]
        %v3692 = vld [vmem:[%s3690 + $0x4] sm:$0xf]
        %v3693 = vld [vmem:[%s3690 + $0x8] sm:$0xf]
        %v3694 = vld [vmem:[%s3690 + $0xc] sm:$0xf]
        %v3695 = vld [vmem:[%s3690 + $0x10] sm:$0xf]
        %v3696 = vld [vmem:[%s3690 + $0x14] sm:$0xf]
        %v3697 = vld [vmem:[%s3690 + $0x18] sm:$0xf]
        %v3698 = vld [vmem:[%s3690 + $0x1c] sm:$0xf]
        %v3699 = vld [vmem:[%s3690 + $0x20] sm:$0xf]
        %v3700 = vld [vmem:[%s3690 + $0x24] sm:$0xf]
        %v3701 = vld [vmem:[%s3690 + $0x28] sm:$0xf]
        %v3702 = vld [vmem:[%s3690 + $0x2c] sm:$0xf]
        %v3703 = vld [vmem:[%s3690 + $0x30] sm:$0xf]
        %v3704 = vld [vmem:[%s3690 + $0x34] sm:$0xf]
        %v3705 = vld [vmem:[%s3690 + $0x38] sm:$0xf]
        %v3706 = vld [vmem:[%s3690 + $0x3c] sm:$0xf]
        %v3723 = vunpack.c.l.b16 %v3691
        %v3724 = vunpack.c.l.b16 %v3692
        %v3725 = vunpack.c.l.b16 %v3693
        %v3726 = vunpack.c.l.b16 %v3694
        %v3727 = vunpack.c.l.b16 %v3695
        %v3728 = vunpack.c.l.b16 %v3696
        %v3729 = vunpack.c.l.b16 %v3697
        %v3730 = vunpack.c.l.b16 %v3698
        %v3731 = vunpack.c.l.b16 %v3699
        %v3732 = vunpack.c.l.b16 %v3700
        %v3733 = vunpack.c.l.b16 %v3701
        %v3734 = vunpack.c.l.b16 %v3702
        %v3735 = vunpack.c.l.b16 %v3703
        %v3736 = vunpack.c.l.b16 %v3704
        %v3737 = vunpack.c.l.b16 %v3705
        %v3738 = vunpack.c.l.b16 %v3706
        %v3739 = vpack.c.b16 %v3724, %v3723
        %v3740 = vpack.c.b16 %v3726, %v3725
        %v3741 = vpack.c.b16 %v3728, %v3727
        %v3742 = vpack.c.b16 %v3730, %v3729
        %v3743 = vpack.c.b16 %v3732, %v3731
        %v3744 = vpack.c.b16 %v3734, %v3733
        %v3745 = vpack.c.b16 %v3736, %v3735
        %v3746 = vpack.c.b16 %v3738, %v3737
        %3755 = vmatprep.subr.bf16.mxu0 0
        %3756 = vmatpush1.bf16.msra.mxu0 %v3746
        %3757 = vmatprep.subr.bf16.mxu0 0
        %3758 = vmatpush1.bf16.msra.mxu0 %v3745
        %3759 = vmatprep.subr.bf16.mxu0 0
        %3760 = vmatpush1.bf16.msra.mxu0 %v3744
        %3761 = vmatprep.subr.bf16.mxu0 0
        %3762 = vmatpush1.bf16.msra.mxu0 %v3743
        %3763 = vmatprep.subr.bf16.mxu0 0
        %3764 = vmatpush1.bf16.msra.mxu0 %v3742
        %3765 = vmatprep.subr.bf16.mxu0 0
        %3766 = vmatpush1.bf16.msra.mxu0 %v3741
        %3767 = vmatprep.subr.bf16.mxu0 0
        %3768 = vmatpush1.bf16.msra.mxu0 %v3740
        %3769 = vmatprep.subr.bf16.mxu0 0
        %3770 = vmatpush1.bf16.msra.mxu0 %v3739
        %3771 = vmatprep.subr.bf16.mxu0 0
        %3772 = vmatpush2.bf16.msra.mxu0 0
        %3773 = vmatprep.subr.bf16.mxu0 0
        %3774 = vmatpush2.bf16.msra.mxu0 0
        %3775 = vmatprep.subr.bf16.mxu0 0
        %3776 = vmatpush2.bf16.msra.mxu0 0
        %3777 = vmatprep.subr.bf16.mxu0 0
        %3778 = vmatpush2.bf16.msra.mxu0 0
        %3779 = vmatprep.subr.bf16.mxu0 0
        %3780 = vmatpush2.bf16.msra.mxu0 0
        %3781 = vmatprep.subr.bf16.mxu0 0
        %3782 = vmatpush2.bf16.msra.mxu0 0
        %3783 = vmatprep.subr.bf16.mxu0 0
        %3784 = vmatpush2.bf16.msra.mxu0 0
        %3785 = vmatprep.subr.bf16.mxu0 0
        %3786 = vmatpush2.bf16.msra.mxu0 0
        %3787 = vmatprep.mubr.bf16.mxu0 0
        %3788 = vmatmul.mubr.bf16.gmra.mxu0 %v3689
        %v3789 = vpop.f32.mrf.mxu0
        %v3790 = vadd.f32 0.0, %v3789
        %v3791 = vpop.f32.mrf.mxu0
        %v3792 = vpop.f32.mrf.mxu0
        %v3793 = vpop.f32.mrf.mxu0
        %3794 = vdwg.mxu0
        %v3795 = vadd.f32 %v3687, %v3790
        %v3796 = vld [vmem:[#allocation2 + $0x13] sm:$0xf]
        %v3797 = vpack.c.bf16 %v3796, %v3796
        %s3798 = scalar_lea.vmem [#allocation13], 896
        %v3799 = vld [vmem:[%s3798] sm:$0xf]
        %v3800 = vld [vmem:[%s3798 + $0x4] sm:$0xf]
        %v3801 = vld [vmem:[%s3798 + $0x8] sm:$0xf]
        %v3802 = vld [vmem:[%s3798 + $0xc] sm:$0xf]
        %v3803 = vld [vmem:[%s3798 + $0x10] sm:$0xf]
        %v3804 = vld [vmem:[%s3798 + $0x14] sm:$0xf]
        %v3805 = vld [vmem:[%s3798 + $0x18] sm:$0xf]
        %v3806 = vld [vmem:[%s3798 + $0x1c] sm:$0xf]
        %v3807 = vld [vmem:[%s3798 + $0x20] sm:$0xf]
        %v3808 = vld [vmem:[%s3798 + $0x24] sm:$0xf]
        %v3809 = vld [vmem:[%s3798 + $0x28] sm:$0xf]
        %v3810 = vld [vmem:[%s3798 + $0x2c] sm:$0xf]
        %v3811 = vld [vmem:[%s3798 + $0x30] sm:$0xf]
        %v3812 = vld [vmem:[%s3798 + $0x34] sm:$0xf]
        %v3813 = vld [vmem:[%s3798 + $0x38] sm:$0xf]
        %v3814 = vld [vmem:[%s3798 + $0x3c] sm:$0xf]
        %v3831 = vunpack.c.l.b16 %v3799
        %v3832 = vunpack.c.l.b16 %v3800
        %v3833 = vunpack.c.l.b16 %v3801
        %v3834 = vunpack.c.l.b16 %v3802
        %v3835 = vunpack.c.l.b16 %v3803
        %v3836 = vunpack.c.l.b16 %v3804
        %v3837 = vunpack.c.l.b16 %v3805
        %v3838 = vunpack.c.l.b16 %v3806
        %v3839 = vunpack.c.l.b16 %v3807
        %v3840 = vunpack.c.l.b16 %v3808
        %v3841 = vunpack.c.l.b16 %v3809
        %v3842 = vunpack.c.l.b16 %v3810
        %v3843 = vunpack.c.l.b16 %v3811
        %v3844 = vunpack.c.l.b16 %v3812
        %v3845 = vunpack.c.l.b16 %v3813
        %v3846 = vunpack.c.l.b16 %v3814
        %v3847 = vpack.c.b16 %v3832, %v3831
        %v3848 = vpack.c.b16 %v3834, %v3833
        %v3849 = vpack.c.b16 %v3836, %v3835
        %v3850 = vpack.c.b16 %v3838, %v3837
        %v3851 = vpack.c.b16 %v3840, %v3839
        %v3852 = vpack.c.b16 %v3842, %v3841
        %v3853 = vpack.c.b16 %v3844, %v3843
        %v3854 = vpack.c.b16 %v3846, %v3845
        %3863 = vmatprep.subr.bf16.mxu0 0
        %3864 = vmatpush1.bf16.msra.mxu0 %v3854
        %3865 = vmatprep.subr.bf16.mxu0 0
        %3866 = vmatpush1.bf16.msra.mxu0 %v3853
        %3867 = vmatprep.subr.bf16.mxu0 0
        %3868 = vmatpush1.bf16.msra.mxu0 %v3852
        %3869 = vmatprep.subr.bf16.mxu0 0
        %3870 = vmatpush1.bf16.msra.mxu0 %v3851
        %3871 = vmatprep.subr.bf16.mxu0 0
        %3872 = vmatpush1.bf16.msra.mxu0 %v3850
        %3873 = vmatprep.subr.bf16.mxu0 0
        %3874 = vmatpush1.bf16.msra.mxu0 %v3849
        %3875 = vmatprep.subr.bf16.mxu0 0
        %3876 = vmatpush1.bf16.msra.mxu0 %v3848
        %3877 = vmatprep.subr.bf16.mxu0 0
        %3878 = vmatpush1.bf16.msra.mxu0 %v3847
        %3879 = vmatprep.subr.bf16.mxu0 0
        %3880 = vmatpush2.bf16.msra.mxu0 0
        %3881 = vmatprep.subr.bf16.mxu0 0
        %3882 = vmatpush2.bf16.msra.mxu0 0
        %3883 = vmatprep.subr.bf16.mxu0 0
        %3884 = vmatpush2.bf16.msra.mxu0 0
        %3885 = vmatprep.subr.bf16.mxu0 0
        %3886 = vmatpush2.bf16.msra.mxu0 0
        %3887 = vmatprep.subr.bf16.mxu0 0
        %3888 = vmatpush2.bf16.msra.mxu0 0
        %3889 = vmatprep.subr.bf16.mxu0 0
        %3890 = vmatpush2.bf16.msra.mxu0 0
        %3891 = vmatprep.subr.bf16.mxu0 0
        %3892 = vmatpush2.bf16.msra.mxu0 0
        %3893 = vmatprep.subr.bf16.mxu0 0
        %3894 = vmatpush2.bf16.msra.mxu0 0
        %3895 = vmatprep.mubr.bf16.mxu0 0
        %3896 = vmatmul.mubr.bf16.gmra.mxu0 %v3797
        %v3897 = vpop.f32.mrf.mxu0
        %v3898 = vadd.f32 0.0, %v3897
        %v3899 = vpop.f32.mrf.mxu0
        %v3900 = vpop.f32.mrf.mxu0
        %v3901 = vpop.f32.mrf.mxu0
        %3902 = vdwg.mxu0
        %v3903 = vadd.f32 %v3795, %v3898
        %v3904 = vmax.f32 %v3903, 0.0
        %v3905 = vpack.c.bf16 %v3904, %v3904
        %s3906 = scalar_lea.vmem [#allocation15], 256
        %v3907 = vld [vmem:[%s3906] sm:$0xf]
        %v3908 = vld [vmem:[%s3906 + $0x4] sm:$0xf]
        %v3909 = vld [vmem:[%s3906 + $0x8] sm:$0xf]
        %v3910 = vld [vmem:[%s3906 + $0xc] sm:$0xf]
        %v3911 = vld [vmem:[%s3906 + $0x10] sm:$0xf]
        %v3912 = vld [vmem:[%s3906 + $0x14] sm:$0xf]
        %v3913 = vld [vmem:[%s3906 + $0x18] sm:$0xf]
        %v3914 = vld [vmem:[%s3906 + $0x1c] sm:$0xf]
        %v3915 = vld [vmem:[%s3906 + $0x20] sm:$0xf]
        %v3916 = vld [vmem:[%s3906 + $0x24] sm:$0xf]
        %v3917 = vld [vmem:[%s3906 + $0x28] sm:$0xf]
        %v3918 = vld [vmem:[%s3906 + $0x2c] sm:$0xf]
        %v3919 = vld [vmem:[%s3906 + $0x30] sm:$0xf]
        %v3920 = vld [vmem:[%s3906 + $0x34] sm:$0xf]
        %v3921 = vld [vmem:[%s3906 + $0x38] sm:$0xf]
        %v3922 = vld [vmem:[%s3906 + $0x3c] sm:$0xf]
        %s3923 = scalar_lea.vmem %s8, 4
        %v3924 = vld [vmem:[%s3923] sm:$0x1]
        %v3926 = vlaneseq
        %v3927 = vshrl.u32 %v3926, 7
        %v3928 = vsub.s32 0, %v3927
        %v3929 = vrot.slane %v3924, %v3928
        %v3947 = vunpack.c.l.b16 %v3907
        %v3948 = vunpack.c.l.b16 %v3908
        %v3949 = vunpack.c.l.b16 %v3909
        %v3950 = vunpack.c.l.b16 %v3910
        %v3951 = vunpack.c.l.b16 %v3911
        %v3952 = vunpack.c.l.b16 %v3912
        %v3953 = vunpack.c.l.b16 %v3913
        %v3954 = vunpack.c.l.b16 %v3914
        %v3955 = vunpack.c.l.b16 %v3915
        %v3956 = vunpack.c.l.b16 %v3916
        %v3957 = vunpack.c.l.b16 %v3917
        %v3958 = vunpack.c.l.b16 %v3918
        %v3959 = vunpack.c.l.b16 %v3919
        %v3960 = vunpack.c.l.b16 %v3920
        %v3961 = vunpack.c.l.b16 %v3921
        %v3962 = vunpack.c.l.b16 %v3922
        %v3963 = vpack.c.b16 %v3948, %v3947
        %v3964 = vpack.c.b16 %v3950, %v3949
        %v3965 = vpack.c.b16 %v3952, %v3951
        %v3966 = vpack.c.b16 %v3954, %v3953
        %v3967 = vpack.c.b16 %v3956, %v3955
        %v3968 = vpack.c.b16 %v3958, %v3957
        %v3969 = vpack.c.b16 %v3960, %v3959
        %v3970 = vpack.c.b16 %v3962, %v3961
        %3979 = vmatprep.subr.bf16.mxu0 0
        %3980 = vmatpush1.bf16.msra.mxu0 %v3970
        %3981 = vmatprep.subr.bf16.mxu0 0
        %3982 = vmatpush1.bf16.msra.mxu0 %v3969
        %3983 = vmatprep.subr.bf16.mxu0 0
        %3984 = vmatpush1.bf16.msra.mxu0 %v3968
        %3985 = vmatprep.subr.bf16.mxu0 0
        %3986 = vmatpush1.bf16.msra.mxu0 %v3967
        %3987 = vmatprep.subr.bf16.mxu0 0
        %3988 = vmatpush1.bf16.msra.mxu0 %v3966
        %3989 = vmatprep.subr.bf16.mxu0 0
        %3990 = vmatpush1.bf16.msra.mxu0 %v3965
        %3991 = vmatprep.subr.bf16.mxu0 0
        %3992 = vmatpush1.bf16.msra.mxu0 %v3964
        %3993 = vmatprep.subr.bf16.mxu0 0
        %3994 = vmatpush1.bf16.msra.mxu0 %v3963
        %3995 = vmatprep.subr.bf16.mxu0 0
        %3996 = vmatpush2.bf16.msra.mxu0 0
        %3997 = vmatprep.subr.bf16.mxu0 0
        %3998 = vmatpush2.bf16.msra.mxu0 0
        %3999 = vmatprep.subr.bf16.mxu0 0
        %4000 = vmatpush2.bf16.msra.mxu0 0
        %4001 = vmatprep.subr.bf16.mxu0 0
        %4002 = vmatpush2.bf16.msra.mxu0 0
        %4003 = vmatprep.subr.bf16.mxu0 0
        %4004 = vmatpush2.bf16.msra.mxu0 0
        %4005 = vmatprep.subr.bf16.mxu0 0
        %4006 = vmatpush2.bf16.msra.mxu0 0
        %4007 = vmatprep.subr.bf16.mxu0 0
        %4008 = vmatpush2.bf16.msra.mxu0 0
        %4009 = vmatprep.subr.bf16.mxu0 0
        %4010 = vmatpush2.bf16.msra.mxu0 0
        %4011 = vmatprep.mubr.bf16.mxu0 0
        %4012 = vmatmul.mubr.bf16.gmra.mxu0 %v3905
        %v4013 = vpop.f32.mrf.mxu0
        %v4014 = vadd.f32 %v3929, %v4013
        %v4015 = vpop.f32.mrf.mxu0
        %v4016 = vpop.f32.mrf.mxu0
        %v4017 = vpop.f32.mrf.mxu0
        %4018 = vdwg.mxu0
        %v4019 = vld [vmem:[#allocation3 + $0x10] sm:$0xf]
        %v4020 = vadd.f32 %v4014, %v4019
        %4021 = vst [vmem:[#allocation2 + $0x10] sm:$0xf] %v4020
        %v4022 = vld [vmem:[#allocation2 + $0x10] sm:$0xf]
        %v4023 = vmax.f32 %v4022, 0.0
        %4024 = vst [vmem:[#allocation3 + $0x10] sm:$0xf] %v4023
        %s4025 = scalar_lea.vmem %s6, 5
        %v4026 = vld [vmem:[%s4025] sm:$0x1]
        %v4028 = vlaneseq
        %v4029 = vshrl.u32 %v4028, 7
        %v4030 = vsub.s32 0, %v4029
        %v4031 = vrot.slane %v4026, %v4030
        %v4033 = vadd.f32 %v4031, 0.0
        %v4034 = vld [vmem:[#allocation3 + $0xf] sm:$0xf]
        %v4035 = vpack.c.bf16 %v4034, %v4034
        %s4036 = scalar_lea.vmem [#allocation13], 960
        %v4037 = vld [vmem:[%s4036] sm:$0xf]
        %v4038 = vld [vmem:[%s4036 + $0x4] sm:$0xf]
        %v4039 = vld [vmem:[%s4036 + $0x8] sm:$0xf]
        %v4040 = vld [vmem:[%s4036 + $0xc] sm:$0xf]
        %v4041 = vld [vmem:[%s4036 + $0x10] sm:$0xf]
        %v4042 = vld [vmem:[%s4036 + $0x14] sm:$0xf]
        %v4043 = vld [vmem:[%s4036 + $0x18] sm:$0xf]
        %v4044 = vld [vmem:[%s4036 + $0x1c] sm:$0xf]
        %v4045 = vld [vmem:[%s4036 + $0x20] sm:$0xf]
        %v4046 = vld [vmem:[%s4036 + $0x24] sm:$0xf]
        %v4047 = vld [vmem:[%s4036 + $0x28] sm:$0xf]
        %v4048 = vld [vmem:[%s4036 + $0x2c] sm:$0xf]
        %v4049 = vld [vmem:[%s4036 + $0x30] sm:$0xf]
        %v4050 = vld [vmem:[%s4036 + $0x34] sm:$0xf]
        %v4051 = vld [vmem:[%s4036 + $0x38] sm:$0xf]
        %v4052 = vld [vmem:[%s4036 + $0x3c] sm:$0xf]
        %v4069 = vunpack.c.l.b16 %v4037
        %v4070 = vunpack.c.l.b16 %v4038
        %v4071 = vunpack.c.l.b16 %v4039
        %v4072 = vunpack.c.l.b16 %v4040
        %v4073 = vunpack.c.l.b16 %v4041
        %v4074 = vunpack.c.l.b16 %v4042
        %v4075 = vunpack.c.l.b16 %v4043
        %v4076 = vunpack.c.l.b16 %v4044
        %v4077 = vunpack.c.l.b16 %v4045
        %v4078 = vunpack.c.l.b16 %v4046
        %v4079 = vunpack.c.l.b16 %v4047
        %v4080 = vunpack.c.l.b16 %v4048
        %v4081 = vunpack.c.l.b16 %v4049
        %v4082 = vunpack.c.l.b16 %v4050
        %v4083 = vunpack.c.l.b16 %v4051
        %v4084 = vunpack.c.l.b16 %v4052
        %v4085 = vpack.c.b16 %v4070, %v4069
        %v4086 = vpack.c.b16 %v4072, %v4071
        %v4087 = vpack.c.b16 %v4074, %v4073
        %v4088 = vpack.c.b16 %v4076, %v4075
        %v4089 = vpack.c.b16 %v4078, %v4077
        %v4090 = vpack.c.b16 %v4080, %v4079
        %v4091 = vpack.c.b16 %v4082, %v4081
        %v4092 = vpack.c.b16 %v4084, %v4083
        %4101 = vmatprep.subr.bf16.mxu0 0
        %4102 = vmatpush1.bf16.msra.mxu0 %v4092
        %4103 = vmatprep.subr.bf16.mxu0 0
        %4104 = vmatpush1.bf16.msra.mxu0 %v4091
        %4105 = vmatprep.subr.bf16.mxu0 0
        %4106 = vmatpush1.bf16.msra.mxu0 %v4090
        %4107 = vmatprep.subr.bf16.mxu0 0
        %4108 = vmatpush1.bf16.msra.mxu0 %v4089
        %4109 = vmatprep.subr.bf16.mxu0 0
        %4110 = vmatpush1.bf16.msra.mxu0 %v4088
        %4111 = vmatprep.subr.bf16.mxu0 0
        %4112 = vmatpush1.bf16.msra.mxu0 %v4087
        %4113 = vmatprep.subr.bf16.mxu0 0
        %4114 = vmatpush1.bf16.msra.mxu0 %v4086
        %4115 = vmatprep.subr.bf16.mxu0 0
        %4116 = vmatpush1.bf16.msra.mxu0 %v4085
        %4117 = vmatprep.subr.bf16.mxu0 0
        %4118 = vmatpush2.bf16.msra.mxu0 0
        %4119 = vmatprep.subr.bf16.mxu0 0
        %4120 = vmatpush2.bf16.msra.mxu0 0
        %4121 = vmatprep.subr.bf16.mxu0 0
        %4122 = vmatpush2.bf16.msra.mxu0 0
        %4123 = vmatprep.subr.bf16.mxu0 0
        %4124 = vmatpush2.bf16.msra.mxu0 0
        %4125 = vmatprep.subr.bf16.mxu0 0
        %4126 = vmatpush2.bf16.msra.mxu0 0
        %4127 = vmatprep.subr.bf16.mxu0 0
        %4128 = vmatpush2.bf16.msra.mxu0 0
        %4129 = vmatprep.subr.bf16.mxu0 0
        %4130 = vmatpush2.bf16.msra.mxu0 0
        %4131 = vmatprep.subr.bf16.mxu0 0
        %4132 = vmatpush2.bf16.msra.mxu0 0
        %4133 = vmatprep.mubr.bf16.mxu0 0
        %4134 = vmatmul.mubr.bf16.gmra.mxu0 %v4035
        %v4135 = vpop.f32.mrf.mxu0
        %v4136 = vadd.f32 0.0, %v4135
        %v4137 = vpop.f32.mrf.mxu0
        %v4138 = vpop.f32.mrf.mxu0
        %v4139 = vpop.f32.mrf.mxu0
        %4140 = vdwg.mxu0
        %v4141 = vadd.f32 %v4033, %v4136
        %v4142 = vld [vmem:[#allocation3 + $0x10] sm:$0xf]
        %v4143 = vpack.c.bf16 %v4142, %v4142
        %s4144 = scalar_lea.vmem [#allocation13], 1024
        %v4145 = vld [vmem:[%s4144] sm:$0xf]
        %v4146 = vld [vmem:[%s4144 + $0x4] sm:$0xf]
        %v4147 = vld [vmem:[%s4144 + $0x8] sm:$0xf]
        %v4148 = vld [vmem:[%s4144 + $0xc] sm:$0xf]
        %v4149 = vld [vmem:[%s4144 + $0x10] sm:$0xf]
        %v4150 = vld [vmem:[%s4144 + $0x14] sm:$0xf]
        %v4151 = vld [vmem:[%s4144 + $0x18] sm:$0xf]
        %v4152 = vld [vmem:[%s4144 + $0x1c] sm:$0xf]
        %v4153 = vld [vmem:[%s4144 + $0x20] sm:$0xf]
        %v4154 = vld [vmem:[%s4144 + $0x24] sm:$0xf]
        %v4155 = vld [vmem:[%s4144 + $0x28] sm:$0xf]
        %v4156 = vld [vmem:[%s4144 + $0x2c] sm:$0xf]
        %v4157 = vld [vmem:[%s4144 + $0x30] sm:$0xf]
        %v4158 = vld [vmem:[%s4144 + $0x34] sm:$0xf]
        %v4159 = vld [vmem:[%s4144 + $0x38] sm:$0xf]
        %v4160 = vld [vmem:[%s4144 + $0x3c] sm:$0xf]
        %v4177 = vunpack.c.l.b16 %v4145
        %v4178 = vunpack.c.l.b16 %v4146
        %v4179 = vunpack.c.l.b16 %v4147
        %v4180 = vunpack.c.l.b16 %v4148
        %v4181 = vunpack.c.l.b16 %v4149
        %v4182 = vunpack.c.l.b16 %v4150
        %v4183 = vunpack.c.l.b16 %v4151
        %v4184 = vunpack.c.l.b16 %v4152
        %v4185 = vunpack.c.l.b16 %v4153
        %v4186 = vunpack.c.l.b16 %v4154
        %v4187 = vunpack.c.l.b16 %v4155
        %v4188 = vunpack.c.l.b16 %v4156
        %v4189 = vunpack.c.l.b16 %v4157
        %v4190 = vunpack.c.l.b16 %v4158
        %v4191 = vunpack.c.l.b16 %v4159
        %v4192 = vunpack.c.l.b16 %v4160
        %v4193 = vpack.c.b16 %v4178, %v4177
        %v4194 = vpack.c.b16 %v4180, %v4179
        %v4195 = vpack.c.b16 %v4182, %v4181
        %v4196 = vpack.c.b16 %v4184, %v4183
        %v4197 = vpack.c.b16 %v4186, %v4185
        %v4198 = vpack.c.b16 %v4188, %v4187
        %v4199 = vpack.c.b16 %v4190, %v4189
        %v4200 = vpack.c.b16 %v4192, %v4191
        %4209 = vmatprep.subr.bf16.mxu0 0
        %4210 = vmatpush1.bf16.msra.mxu0 %v4200
        %4211 = vmatprep.subr.bf16.mxu0 0
        %4212 = vmatpush1.bf16.msra.mxu0 %v4199
        %4213 = vmatprep.subr.bf16.mxu0 0
        %4214 = vmatpush1.bf16.msra.mxu0 %v4198
        %4215 = vmatprep.subr.bf16.mxu0 0
        %4216 = vmatpush1.bf16.msra.mxu0 %v4197
        %4217 = vmatprep.subr.bf16.mxu0 0
        %4218 = vmatpush1.bf16.msra.mxu0 %v4196
        %4219 = vmatprep.subr.bf16.mxu0 0
        %4220 = vmatpush1.bf16.msra.mxu0 %v4195
        %4221 = vmatprep.subr.bf16.mxu0 0
        %4222 = vmatpush1.bf16.msra.mxu0 %v4194
        %4223 = vmatprep.subr.bf16.mxu0 0
        %4224 = vmatpush1.bf16.msra.mxu0 %v4193
        %4225 = vmatprep.subr.bf16.mxu0 0
        %4226 = vmatpush2.bf16.msra.mxu0 0
        %4227 = vmatprep.subr.bf16.mxu0 0
        %4228 = vmatpush2.bf16.msra.mxu0 0
        %4229 = vmatprep.subr.bf16.mxu0 0
        %4230 = vmatpush2.bf16.msra.mxu0 0
        %4231 = vmatprep.subr.bf16.mxu0 0
        %4232 = vmatpush2.bf16.msra.mxu0 0
        %4233 = vmatprep.subr.bf16.mxu0 0
        %4234 = vmatpush2.bf16.msra.mxu0 0
        %4235 = vmatprep.subr.bf16.mxu0 0
        %4236 = vmatpush2.bf16.msra.mxu0 0
        %4237 = vmatprep.subr.bf16.mxu0 0
        %4238 = vmatpush2.bf16.msra.mxu0 0
        %4239 = vmatprep.subr.bf16.mxu0 0
        %4240 = vmatpush2.bf16.msra.mxu0 0
        %4241 = vmatprep.mubr.bf16.mxu0 0
        %4242 = vmatmul.mubr.bf16.gmra.mxu0 %v4143
        %v4243 = vpop.f32.mrf.mxu0
        %v4244 = vadd.f32 0.0, %v4243
        %v4245 = vpop.f32.mrf.mxu0
        %v4246 = vpop.f32.mrf.mxu0
        %v4247 = vpop.f32.mrf.mxu0
        %4248 = vdwg.mxu0
        %v4249 = vadd.f32 %v4141, %v4244
        %v4250 = vld [vmem:[#allocation3 + $0x11] sm:$0xf]
        %v4251 = vpack.c.bf16 %v4250, %v4250
        %s4252 = scalar_lea.vmem [#allocation13], 1088
        %v4253 = vld [vmem:[%s4252] sm:$0xf]
        %v4254 = vld [vmem:[%s4252 + $0x4] sm:$0xf]
        %v4255 = vld [vmem:[%s4252 + $0x8] sm:$0xf]
        %v4256 = vld [vmem:[%s4252 + $0xc] sm:$0xf]
        %v4257 = vld [vmem:[%s4252 + $0x10] sm:$0xf]
        %v4258 = vld [vmem:[%s4252 + $0x14] sm:$0xf]
        %v4259 = vld [vmem:[%s4252 + $0x18] sm:$0xf]
        %v4260 = vld [vmem:[%s4252 + $0x1c] sm:$0xf]
        %v4261 = vld [vmem:[%s4252 + $0x20] sm:$0xf]
        %v4262 = vld [vmem:[%s4252 + $0x24] sm:$0xf]
        %v4263 = vld [vmem:[%s4252 + $0x28] sm:$0xf]
        %v4264 = vld [vmem:[%s4252 + $0x2c] sm:$0xf]
        %v4265 = vld [vmem:[%s4252 + $0x30] sm:$0xf]
        %v4266 = vld [vmem:[%s4252 + $0x34] sm:$0xf]
        %v4267 = vld [vmem:[%s4252 + $0x38] sm:$0xf]
        %v4268 = vld [vmem:[%s4252 + $0x3c] sm:$0xf]
        %v4285 = vunpack.c.l.b16 %v4253
        %v4286 = vunpack.c.l.b16 %v4254
        %v4287 = vunpack.c.l.b16 %v4255
        %v4288 = vunpack.c.l.b16 %v4256
        %v4289 = vunpack.c.l.b16 %v4257
        %v4290 = vunpack.c.l.b16 %v4258
        %v4291 = vunpack.c.l.b16 %v4259
        %v4292 = vunpack.c.l.b16 %v4260
        %v4293 = vunpack.c.l.b16 %v4261
        %v4294 = vunpack.c.l.b16 %v4262
        %v4295 = vunpack.c.l.b16 %v4263
        %v4296 = vunpack.c.l.b16 %v4264
        %v4297 = vunpack.c.l.b16 %v4265
        %v4298 = vunpack.c.l.b16 %v4266
        %v4299 = vunpack.c.l.b16 %v4267
        %v4300 = vunpack.c.l.b16 %v4268
        %v4301 = vpack.c.b16 %v4286, %v4285
        %v4302 = vpack.c.b16 %v4288, %v4287
        %v4303 = vpack.c.b16 %v4290, %v4289
        %v4304 = vpack.c.b16 %v4292, %v4291
        %v4305 = vpack.c.b16 %v4294, %v4293
        %v4306 = vpack.c.b16 %v4296, %v4295
        %v4307 = vpack.c.b16 %v4298, %v4297
        %v4308 = vpack.c.b16 %v4300, %v4299
        %4317 = vmatprep.subr.bf16.mxu0 0
        %4318 = vmatpush1.bf16.msra.mxu0 %v4308
        %4319 = vmatprep.subr.bf16.mxu0 0
        %4320 = vmatpush1.bf16.msra.mxu0 %v4307
        %4321 = vmatprep.subr.bf16.mxu0 0
        %4322 = vmatpush1.bf16.msra.mxu0 %v4306
        %4323 = vmatprep.subr.bf16.mxu0 0
        %4324 = vmatpush1.bf16.msra.mxu0 %v4305
        %4325 = vmatprep.subr.bf16.mxu0 0
        %4326 = vmatpush1.bf16.msra.mxu0 %v4304
        %4327 = vmatprep.subr.bf16.mxu0 0
        %4328 = vmatpush1.bf16.msra.mxu0 %v4303
        %4329 = vmatprep.subr.bf16.mxu0 0
        %4330 = vmatpush1.bf16.msra.mxu0 %v4302
        %4331 = vmatprep.subr.bf16.mxu0 0
        %4332 = vmatpush1.bf16.msra.mxu0 %v4301
        %4333 = vmatprep.subr.bf16.mxu0 0
        %4334 = vmatpush2.bf16.msra.mxu0 0
        %4335 = vmatprep.subr.bf16.mxu0 0
        %4336 = vmatpush2.bf16.msra.mxu0 0
        %4337 = vmatprep.subr.bf16.mxu0 0
        %4338 = vmatpush2.bf16.msra.mxu0 0
        %4339 = vmatprep.subr.bf16.mxu0 0
        %4340 = vmatpush2.bf16.msra.mxu0 0
        %4341 = vmatprep.subr.bf16.mxu0 0
        %4342 = vmatpush2.bf16.msra.mxu0 0
        %4343 = vmatprep.subr.bf16.mxu0 0
        %4344 = vmatpush2.bf16.msra.mxu0 0
        %4345 = vmatprep.subr.bf16.mxu0 0
        %4346 = vmatpush2.bf16.msra.mxu0 0
        %4347 = vmatprep.subr.bf16.mxu0 0
        %4348 = vmatpush2.bf16.msra.mxu0 0
        %4349 = vmatprep.mubr.bf16.mxu0 0
        %4350 = vmatmul.mubr.bf16.gmra.mxu0 %v4251
        %v4351 = vpop.f32.mrf.mxu0
        %v4352 = vadd.f32 0.0, %v4351
        %v4353 = vpop.f32.mrf.mxu0
        %v4354 = vpop.f32.mrf.mxu0
        %v4355 = vpop.f32.mrf.mxu0
        %4356 = vdwg.mxu0
        %v4357 = vadd.f32 %v4249, %v4352
        %v4358 = vmax.f32 %v4357, 0.0
        %v4359 = vpack.c.bf16 %v4358, %v4358
        %s4360 = scalar_lea.vmem [#allocation15], 320
        %v4361 = vld [vmem:[%s4360] sm:$0xf]
        %v4362 = vld [vmem:[%s4360 + $0x4] sm:$0xf]
        %v4363 = vld [vmem:[%s4360 + $0x8] sm:$0xf]
        %v4364 = vld [vmem:[%s4360 + $0xc] sm:$0xf]
        %v4365 = vld [vmem:[%s4360 + $0x10] sm:$0xf]
        %v4366 = vld [vmem:[%s4360 + $0x14] sm:$0xf]
        %v4367 = vld [vmem:[%s4360 + $0x18] sm:$0xf]
        %v4368 = vld [vmem:[%s4360 + $0x1c] sm:$0xf]
        %v4369 = vld [vmem:[%s4360 + $0x20] sm:$0xf]
        %v4370 = vld [vmem:[%s4360 + $0x24] sm:$0xf]
        %v4371 = vld [vmem:[%s4360 + $0x28] sm:$0xf]
        %v4372 = vld [vmem:[%s4360 + $0x2c] sm:$0xf]
        %v4373 = vld [vmem:[%s4360 + $0x30] sm:$0xf]
        %v4374 = vld [vmem:[%s4360 + $0x34] sm:$0xf]
        %v4375 = vld [vmem:[%s4360 + $0x38] sm:$0xf]
        %v4376 = vld [vmem:[%s4360 + $0x3c] sm:$0xf]
        %s4377 = scalar_lea.vmem %s8, 5
        %v4378 = vld [vmem:[%s4377] sm:$0x1]
        %v4380 = vlaneseq
        %v4381 = vshrl.u32 %v4380, 7
        %v4382 = vsub.s32 0, %v4381
        %v4383 = vrot.slane %v4378, %v4382
        %v4401 = vunpack.c.l.b16 %v4361
        %v4402 = vunpack.c.l.b16 %v4362
        %v4403 = vunpack.c.l.b16 %v4363
        %v4404 = vunpack.c.l.b16 %v4364
        %v4405 = vunpack.c.l.b16 %v4365
        %v4406 = vunpack.c.l.b16 %v4366
        %v4407 = vunpack.c.l.b16 %v4367
        %v4408 = vunpack.c.l.b16 %v4368
        %v4409 = vunpack.c.l.b16 %v4369
        %v4410 = vunpack.c.l.b16 %v4370
        %v4411 = vunpack.c.l.b16 %v4371
        %v4412 = vunpack.c.l.b16 %v4372
        %v4413 = vunpack.c.l.b16 %v4373
        %v4414 = vunpack.c.l.b16 %v4374
        %v4415 = vunpack.c.l.b16 %v4375
        %v4416 = vunpack.c.l.b16 %v4376
        %v4417 = vpack.c.b16 %v4402, %v4401
        %v4418 = vpack.c.b16 %v4404, %v4403
        %v4419 = vpack.c.b16 %v4406, %v4405
        %v4420 = vpack.c.b16 %v4408, %v4407
        %v4421 = vpack.c.b16 %v4410, %v4409
        %v4422 = vpack.c.b16 %v4412, %v4411
        %v4423 = vpack.c.b16 %v4414, %v4413
        %v4424 = vpack.c.b16 %v4416, %v4415
        %4433 = vmatprep.subr.bf16.mxu0 0
        %4434 = vmatpush1.bf16.msra.mxu0 %v4424
        %4435 = vmatprep.subr.bf16.mxu0 0
        %4436 = vmatpush1.bf16.msra.mxu0 %v4423
        %4437 = vmatprep.subr.bf16.mxu0 0
        %4438 = vmatpush1.bf16.msra.mxu0 %v4422
        %4439 = vmatprep.subr.bf16.mxu0 0
        %4440 = vmatpush1.bf16.msra.mxu0 %v4421
        %4441 = vmatprep.subr.bf16.mxu0 0
        %4442 = vmatpush1.bf16.msra.mxu0 %v4420
        %4443 = vmatprep.subr.bf16.mxu0 0
        %4444 = vmatpush1.bf16.msra.mxu0 %v4419
        %4445 = vmatprep.subr.bf16.mxu0 0
        %4446 = vmatpush1.bf16.msra.mxu0 %v4418
        %4447 = vmatprep.subr.bf16.mxu0 0
        %4448 = vmatpush1.bf16.msra.mxu0 %v4417
        %4449 = vmatprep.subr.bf16.mxu0 0
        %4450 = vmatpush2.bf16.msra.mxu0 0
        %4451 = vmatprep.subr.bf16.mxu0 0
        %4452 = vmatpush2.bf16.msra.mxu0 0
        %4453 = vmatprep.subr.bf16.mxu0 0
        %4454 = vmatpush2.bf16.msra.mxu0 0
        %4455 = vmatprep.subr.bf16.mxu0 0
        %4456 = vmatpush2.bf16.msra.mxu0 0
        %4457 = vmatprep.subr.bf16.mxu0 0
        %4458 = vmatpush2.bf16.msra.mxu0 0
        %4459 = vmatprep.subr.bf16.mxu0 0
        %4460 = vmatpush2.bf16.msra.mxu0 0
        %4461 = vmatprep.subr.bf16.mxu0 0
        %4462 = vmatpush2.bf16.msra.mxu0 0
        %4463 = vmatprep.subr.bf16.mxu0 0
        %4464 = vmatpush2.bf16.msra.mxu0 0
        %4465 = vmatprep.mubr.bf16.mxu0 0
        %4466 = vmatmul.mubr.bf16.gmra.mxu0 %v4359
        %v4467 = vpop.f32.mrf.mxu0
        %v4468 = vadd.f32 %v4383, %v4467
        %v4469 = vpop.f32.mrf.mxu0
        %v4470 = vpop.f32.mrf.mxu0
        %v4471 = vpop.f32.mrf.mxu0
        %4472 = vdwg.mxu0
        %v4473 = vld [vmem:[#allocation2 + $0x10] sm:$0xf]
        %v4474 = vadd.f32 %v4468, %v4473
        %4475 = vst [vmem:[#allocation3 + $0x10] sm:$0xf] %v4474
        %v4476 = vld [vmem:[%s10] sm:$0x1]
        %v4478 = vlaneseq
        %v4479 = vshrl.u32 %v4478, 7
        %v4480 = vsub.s32 0, %v4479
        %v4481 = vrot.slane %v4476, %v4480
        %v4483 = vadd.f32 %v4481, 0.0
        %v4484 = vld [vmem:[#allocation3 + $0xf] sm:$0xf]
        %v4485 = vpack.c.bf16 %v4484, %v4484
        %v4486 = vld [vmem:[#allocation16] sm:$0xf]
        %v4487 = vld [vmem:[#allocation16 + $0x4] sm:$0xf]
        %v4488 = vld [vmem:[#allocation16 + $0x8] sm:$0xf]
        %v4489 = vld [vmem:[#allocation16 + $0xc] sm:$0xf]
        %v4490 = vld [vmem:[#allocation16 + $0x10] sm:$0xf]
        %v4491 = vld [vmem:[#allocation16 + $0x14] sm:$0xf]
        %v4492 = vld [vmem:[#allocation16 + $0x18] sm:$0xf]
        %v4493 = vld [vmem:[#allocation16 + $0x1c] sm:$0xf]
        %v4494 = vld [vmem:[#allocation16 + $0x20] sm:$0xf]
        %v4495 = vld [vmem:[#allocation16 + $0x24] sm:$0xf]
        %v4496 = vld [vmem:[#allocation16 + $0x28] sm:$0xf]
        %v4497 = vld [vmem:[#allocation16 + $0x2c] sm:$0xf]
        %v4498 = vld [vmem:[#allocation16 + $0x30] sm:$0xf]
        %v4499 = vld [vmem:[#allocation16 + $0x34] sm:$0xf]
        %v4500 = vld [vmem:[#allocation16 + $0x38] sm:$0xf]
        %v4501 = vld [vmem:[#allocation16 + $0x3c] sm:$0xf]
        %v4518 = vunpack.c.l.b16 %v4486
        %v4519 = vunpack.c.l.b16 %v4487
        %v4520 = vunpack.c.l.b16 %v4488
        %v4521 = vunpack.c.l.b16 %v4489
        %v4522 = vunpack.c.l.b16 %v4490
        %v4523 = vunpack.c.l.b16 %v4491
        %v4524 = vunpack.c.l.b16 %v4492
        %v4525 = vunpack.c.l.b16 %v4493
        %v4526 = vunpack.c.l.b16 %v4494
        %v4527 = vunpack.c.l.b16 %v4495
        %v4528 = vunpack.c.l.b16 %v4496
        %v4529 = vunpack.c.l.b16 %v4497
        %v4530 = vunpack.c.l.b16 %v4498
        %v4531 = vunpack.c.l.b16 %v4499
        %v4532 = vunpack.c.l.b16 %v4500
        %v4533 = vunpack.c.l.b16 %v4501
        %v4534 = vpack.c.b16 %v4519, %v4518
        %v4535 = vpack.c.b16 %v4521, %v4520
        %v4536 = vpack.c.b16 %v4523, %v4522
        %v4537 = vpack.c.b16 %v4525, %v4524
        %v4538 = vpack.c.b16 %v4527, %v4526
        %v4539 = vpack.c.b16 %v4529, %v4528
        %v4540 = vpack.c.b16 %v4531, %v4530
        %v4541 = vpack.c.b16 %v4533, %v4532
        %4550 = vmatprep.subr.bf16.mxu0 0
        %4551 = vmatpush1.bf16.msra.mxu0 %v4541
        %4552 = vmatprep.subr.bf16.mxu0 0
        %4553 = vmatpush1.bf16.msra.mxu0 %v4540
        %4554 = vmatprep.subr.bf16.mxu0 0
        %4555 = vmatpush1.bf16.msra.mxu0 %v4539
        %4556 = vmatprep.subr.bf16.mxu0 0
        %4557 = vmatpush1.bf16.msra.mxu0 %v4538
        %4558 = vmatprep.subr.bf16.mxu0 0
        %4559 = vmatpush1.bf16.msra.mxu0 %v4537
        %4560 = vmatprep.subr.bf16.mxu0 0
        %4561 = vmatpush1.bf16.msra.mxu0 %v4536
        %4562 = vmatprep.subr.bf16.mxu0 0
        %4563 = vmatpush1.bf16.msra.mxu0 %v4535
        %4564 = vmatprep.subr.bf16.mxu0 0
        %4565 = vmatpush1.bf16.msra.mxu0 %v4534
        %4566 = vmatprep.subr.bf16.mxu0 0
        %4567 = vmatpush2.bf16.msra.mxu0 0
        %4568 = vmatprep.subr.bf16.mxu0 0
        %4569 = vmatpush2.bf16.msra.mxu0 0
        %4570 = vmatprep.subr.bf16.mxu0 0
        %4571 = vmatpush2.bf16.msra.mxu0 0
        %4572 = vmatprep.subr.bf16.mxu0 0
        %4573 = vmatpush2.bf16.msra.mxu0 0
        %4574 = vmatprep.subr.bf16.mxu0 0
        %4575 = vmatpush2.bf16.msra.mxu0 0
        %4576 = vmatprep.subr.bf16.mxu0 0
        %4577 = vmatpush2.bf16.msra.mxu0 0
        %4578 = vmatprep.subr.bf16.mxu0 0
        %4579 = vmatpush2.bf16.msra.mxu0 0
        %4580 = vmatprep.subr.bf16.mxu0 0
        %4581 = vmatpush2.bf16.msra.mxu0 0
        %4582 = vmatprep.mubr.bf16.mxu0 0
        %4583 = vmatmul.mubr.bf16.gmra.mxu0 %v4485
        %v4584 = vpop.f32.mrf.mxu0
        %v4585 = vadd.f32 0.0, %v4584
        %v4586 = vpop.f32.mrf.mxu0
        %v4587 = vpop.f32.mrf.mxu0
        %v4588 = vpop.f32.mrf.mxu0
        %4589 = vdwg.mxu0
        %v4590 = vadd.f32 %v4483, %v4585
        %v4591 = vld [vmem:[#allocation3 + $0x10] sm:$0xf]
        %v4592 = vpack.c.bf16 %v4591, %v4591
        %s4593 = scalar_lea.vmem [#allocation16], 64
        %v4594 = vld [vmem:[%s4593] sm:$0xf]
        %v4595 = vld [vmem:[%s4593 + $0x4] sm:$0xf]
        %v4596 = vld [vmem:[%s4593 + $0x8] sm:$0xf]
        %v4597 = vld [vmem:[%s4593 + $0xc] sm:$0xf]
        %v4598 = vld [vmem:[%s4593 + $0x10] sm:$0xf]
        %v4599 = vld [vmem:[%s4593 + $0x14] sm:$0xf]
        %v4600 = vld [vmem:[%s4593 + $0x18] sm:$0xf]
        %v4601 = vld [vmem:[%s4593 + $0x1c] sm:$0xf]
        %v4602 = vld [vmem:[%s4593 + $0x20] sm:$0xf]
        %v4603 = vld [vmem:[%s4593 + $0x24] sm:$0xf]
        %v4604 = vld [vmem:[%s4593 + $0x28] sm:$0xf]
        %v4605 = vld [vmem:[%s4593 + $0x2c] sm:$0xf]
        %v4606 = vld [vmem:[%s4593 + $0x30] sm:$0xf]
        %v4607 = vld [vmem:[%s4593 + $0x34] sm:$0xf]
        %v4608 = vld [vmem:[%s4593 + $0x38] sm:$0xf]
        %v4609 = vld [vmem:[%s4593 + $0x3c] sm:$0xf]
        %v4626 = vunpack.c.l.b16 %v4594
        %v4627 = vunpack.c.l.b16 %v4595
        %v4628 = vunpack.c.l.b16 %v4596
        %v4629 = vunpack.c.l.b16 %v4597
        %v4630 = vunpack.c.l.b16 %v4598
        %v4631 = vunpack.c.l.b16 %v4599
        %v4632 = vunpack.c.l.b16 %v4600
        %v4633 = vunpack.c.l.b16 %v4601
        %v4634 = vunpack.c.l.b16 %v4602
        %v4635 = vunpack.c.l.b16 %v4603
        %v4636 = vunpack.c.l.b16 %v4604
        %v4637 = vunpack.c.l.b16 %v4605
        %v4638 = vunpack.c.l.b16 %v4606
        %v4639 = vunpack.c.l.b16 %v4607
        %v4640 = vunpack.c.l.b16 %v4608
        %v4641 = vunpack.c.l.b16 %v4609
        %v4642 = vpack.c.b16 %v4627, %v4626
        %v4643 = vpack.c.b16 %v4629, %v4628
        %v4644 = vpack.c.b16 %v4631, %v4630
        %v4645 = vpack.c.b16 %v4633, %v4632
        %v4646 = vpack.c.b16 %v4635, %v4634
        %v4647 = vpack.c.b16 %v4637, %v4636
        %v4648 = vpack.c.b16 %v4639, %v4638
        %v4649 = vpack.c.b16 %v4641, %v4640
        %4658 = vmatprep.subr.bf16.mxu0 0
        %4659 = vmatpush1.bf16.msra.mxu0 %v4649
        %4660 = vmatprep.subr.bf16.mxu0 0
        %4661 = vmatpush1.bf16.msra.mxu0 %v4648
        %4662 = vmatprep.subr.bf16.mxu0 0
        %4663 = vmatpush1.bf16.msra.mxu0 %v4647
        %4664 = vmatprep.subr.bf16.mxu0 0
        %4665 = vmatpush1.bf16.msra.mxu0 %v4646
        %4666 = vmatprep.subr.bf16.mxu0 0
        %4667 = vmatpush1.bf16.msra.mxu0 %v4645
        %4668 = vmatprep.subr.bf16.mxu0 0
        %4669 = vmatpush1.bf16.msra.mxu0 %v4644
        %4670 = vmatprep.subr.bf16.mxu0 0
        %4671 = vmatpush1.bf16.msra.mxu0 %v4643
        %4672 = vmatprep.subr.bf16.mxu0 0
        %4673 = vmatpush1.bf16.msra.mxu0 %v4642
        %4674 = vmatprep.subr.bf16.mxu0 0
        %4675 = vmatpush2.bf16.msra.mxu0 0
        %4676 = vmatprep.subr.bf16.mxu0 0
        %4677 = vmatpush2.bf16.msra.mxu0 0
        %4678 = vmatprep.subr.bf16.mxu0 0
        %4679 = vmatpush2.bf16.msra.mxu0 0
        %4680 = vmatprep.subr.bf16.mxu0 0
        %4681 = vmatpush2.bf16.msra.mxu0 0
        %4682 = vmatprep.subr.bf16.mxu0 0
        %4683 = vmatpush2.bf16.msra.mxu0 0
        %4684 = vmatprep.subr.bf16.mxu0 0
        %4685 = vmatpush2.bf16.msra.mxu0 0
        %4686 = vmatprep.subr.bf16.mxu0 0
        %4687 = vmatpush2.bf16.msra.mxu0 0
        %4688 = vmatprep.subr.bf16.mxu0 0
        %4689 = vmatpush2.bf16.msra.mxu0 0
        %4690 = vmatprep.mubr.bf16.mxu0 0
        %4691 = vmatmul.mubr.bf16.gmra.mxu0 %v4592
        %v4692 = vpop.f32.mrf.mxu0
        %v4693 = vadd.f32 0.0, %v4692
        %v4694 = vpop.f32.mrf.mxu0
        %v4695 = vpop.f32.mrf.mxu0
        %v4696 = vpop.f32.mrf.mxu0
        %4697 = vdwg.mxu0
        %v4698 = vadd.f32 %v4590, %v4693
        %v4699 = vld [vmem:[#allocation3 + $0x11] sm:$0xf]
        %v4700 = vpack.c.bf16 %v4699, %v4699
        %s4701 = scalar_lea.vmem [#allocation16], 128
        %v4702 = vld [vmem:[%s4701] sm:$0xf]
        %v4703 = vld [vmem:[%s4701 + $0x4] sm:$0xf]
        %v4704 = vld [vmem:[%s4701 + $0x8] sm:$0xf]
        %v4705 = vld [vmem:[%s4701 + $0xc] sm:$0xf]
        %v4706 = vld [vmem:[%s4701 + $0x10] sm:$0xf]
        %v4707 = vld [vmem:[%s4701 + $0x14] sm:$0xf]
        %v4708 = vld [vmem:[%s4701 + $0x18] sm:$0xf]
        %v4709 = vld [vmem:[%s4701 + $0x1c] sm:$0xf]
        %v4710 = vld [vmem:[%s4701 + $0x20] sm:$0xf]
        %v4711 = vld [vmem:[%s4701 + $0x24] sm:$0xf]
        %v4712 = vld [vmem:[%s4701 + $0x28] sm:$0xf]
        %v4713 = vld [vmem:[%s4701 + $0x2c] sm:$0xf]
        %v4714 = vld [vmem:[%s4701 + $0x30] sm:$0xf]
        %v4715 = vld [vmem:[%s4701 + $0x34] sm:$0xf]
        %v4716 = vld [vmem:[%s4701 + $0x38] sm:$0xf]
        %v4717 = vld [vmem:[%s4701 + $0x3c] sm:$0xf]
        %v4734 = vunpack.c.l.b16 %v4702
        %v4735 = vunpack.c.l.b16 %v4703
        %v4736 = vunpack.c.l.b16 %v4704
        %v4737 = vunpack.c.l.b16 %v4705
        %v4738 = vunpack.c.l.b16 %v4706
        %v4739 = vunpack.c.l.b16 %v4707
        %v4740 = vunpack.c.l.b16 %v4708
        %v4741 = vunpack.c.l.b16 %v4709
        %v4742 = vunpack.c.l.b16 %v4710
        %v4743 = vunpack.c.l.b16 %v4711
        %v4744 = vunpack.c.l.b16 %v4712
        %v4745 = vunpack.c.l.b16 %v4713
        %v4746 = vunpack.c.l.b16 %v4714
        %v4747 = vunpack.c.l.b16 %v4715
        %v4748 = vunpack.c.l.b16 %v4716
        %v4749 = vunpack.c.l.b16 %v4717
        %v4750 = vpack.c.b16 %v4735, %v4734
        %v4751 = vpack.c.b16 %v4737, %v4736
        %v4752 = vpack.c.b16 %v4739, %v4738
        %v4753 = vpack.c.b16 %v4741, %v4740
        %v4754 = vpack.c.b16 %v4743, %v4742
        %v4755 = vpack.c.b16 %v4745, %v4744
        %v4756 = vpack.c.b16 %v4747, %v4746
        %v4757 = vpack.c.b16 %v4749, %v4748
        %4766 = vmatprep.subr.bf16.mxu0 0
        %4767 = vmatpush1.bf16.msra.mxu0 %v4757
        %4768 = vmatprep.subr.bf16.mxu0 0
        %4769 = vmatpush1.bf16.msra.mxu0 %v4756
        %4770 = vmatprep.subr.bf16.mxu0 0
        %4771 = vmatpush1.bf16.msra.mxu0 %v4755
        %4772 = vmatprep.subr.bf16.mxu0 0
        %4773 = vmatpush1.bf16.msra.mxu0 %v4754
        %4774 = vmatprep.subr.bf16.mxu0 0
        %4775 = vmatpush1.bf16.msra.mxu0 %v4753
        %4776 = vmatprep.subr.bf16.mxu0 0
        %4777 = vmatpush1.bf16.msra.mxu0 %v4752
        %4778 = vmatprep.subr.bf16.mxu0 0
        %4779 = vmatpush1.bf16.msra.mxu0 %v4751
        %4780 = vmatprep.subr.bf16.mxu0 0
        %4781 = vmatpush1.bf16.msra.mxu0 %v4750
        %4782 = vmatprep.subr.bf16.mxu0 0
        %4783 = vmatpush2.bf16.msra.mxu0 0
        %4784 = vmatprep.subr.bf16.mxu0 0
        %4785 = vmatpush2.bf16.msra.mxu0 0
        %4786 = vmatprep.subr.bf16.mxu0 0
        %4787 = vmatpush2.bf16.msra.mxu0 0
        %4788 = vmatprep.subr.bf16.mxu0 0
        %4789 = vmatpush2.bf16.msra.mxu0 0
        %4790 = vmatprep.subr.bf16.mxu0 0
        %4791 = vmatpush2.bf16.msra.mxu0 0
        %4792 = vmatprep.subr.bf16.mxu0 0
        %4793 = vmatpush2.bf16.msra.mxu0 0
        %4794 = vmatprep.subr.bf16.mxu0 0
        %4795 = vmatpush2.bf16.msra.mxu0 0
        %4796 = vmatprep.subr.bf16.mxu0 0
        %4797 = vmatpush2.bf16.msra.mxu0 0
        %4798 = vmatprep.mubr.bf16.mxu0 0
        %4799 = vmatmul.mubr.bf16.gmra.mxu0 %v4700
        %v4800 = vpop.f32.mrf.mxu0
        %v4801 = vadd.f32 0.0, %v4800
        %v4802 = vpop.f32.mrf.mxu0
        %v4803 = vpop.f32.mrf.mxu0
        %v4804 = vpop.f32.mrf.mxu0
        %4805 = vdwg.mxu0
        %v4806 = vadd.f32 %v4698, %v4801
        %4807 = vst [vmem:[%s504] sm:$0xf] %v4806
        %s4808 = sand.u32 %s276, 1
        %s4809 = scalar_lea.sflag [#allocation6], %s4808
        %s4810 = sand.u32 %s276, 1
        %s4811 = smul.addr %s4810, 4
        %s4812 = scalar_lea.vmem [#allocation18], %s4811
        // Predicated region
        $region97: #{tpu_custom_call.1} parent=63 // pred_check
          %p4813 = pneg %p286
        $region98: #{tpu_custom_call.1} parent=63 // pred_check_branch
          %4815 = sbr.rel (%p4813) target = $region100
        $region99: #{tpu_custom_call.1} parent=63 // pred_region
          %s4817 = ssub.s32 64, 64
          %4818 = vsyncadd %s4809, %s4817
          %s4819 = smul.addr %s32, 64
          %s4820 = scalar_lea.hbm %s11, %s4819
          %s4822 = sshll.u32 %s4812, 4
          %s4823 = int_to_ptr.vmem [resolvable:$true] %s4822
          %4825 = dma.vmem_to_hbm [thread:$0]  %s4823, 64, %s4820, %s4809
        $region100: #{tpu_custom_call.1} parent=63 // pred_fallthru
          _
      $region64: #{tpu_custom_call.1} parent=5 // pred_fallthru
        _
      %p4826 = scmp.le.s32.totalorder 2, %s27
      // Predicated region
      $region101: #{tpu_custom_call.1} parent=5 // pred_check
        %p4827 = pneg %p4826
      $region102: #{tpu_custom_call.1} parent=5 // pred_check_branch
        %4829 = sbr.rel (%p4827) target = $region104
      $region103: #{tpu_custom_call.1} parent=5 // pred_region
        %s4830 = ssub.s32 %s27, 2
        // Predicated region
        $region105: #{tpu_custom_call.1} parent=103 // pred_check
          %p4831 = pneg %p292
        $region106: #{tpu_custom_call.1} parent=103 // pred_check_branch
          %4833 = sbr.rel (%p4831) target = $region108
        $region107: #{tpu_custom_call.1} parent=103 // pred_region
          %s4834 = sand.u32 %s277, 1
          %s4835 = scalar_lea.sflag [#allocation6], %s4834
          %s4836 = sand.u32 %s277, 1
          %s4837 = smul.addr %s4836, 4
          %s4838 = scalar_lea.vmem [#allocation18], %s4837
          %4839 = dma.done %s4835, 64
        $region108: #{tpu_custom_call.1} parent=103 // pred_fallthru
          _
      $region104: #{tpu_custom_call.1} parent=5 // pred_fallthru
        _
    $region6: #{tpu_custom_call.1} parent=1 // loop_footer
      %s31 = sadd.s32 1, %s27
    $region7: #{tpu_custom_call.1} parent=1 // loop_footer_branch
      %26 = sbr.rel target = $region3
    $region8: #{tpu_custom_call.1} parent=1 // loop_exit
      _
    %4840 = vsyncpa [#allocation5], 1
    %s4841 = scalar_lea.sflag [#allocation5], 1
    %4842 = vsyncpa %s4841, 1
    %4843 = vsyncpa [#allocation8], 1
    %4844 = vsyncpa [#allocation11], 1
    %4845 = vsyncpa [#allocation14], 1
    %4846 = vsyncpa [#allocation17], 1
    %4847 = vsyncpa [#allocation6], 1
    %s4848 = scalar_lea.sflag [#allocation6], 1
    %4849 = vsyncpa %s4848, 1

</llo_original>
